<compile_context>
chip_gen: v5e
topology: v5e:2x2
jax: 0.10.0
libtpu: 0.0.40
codegen_flags: <defaults>
</compile_context>

<pallas_src>
import functools

import jax
import jax.numpy as jnp
from jax.experimental import pallas as pl
from jax.experimental.pallas import tpu as pltpu


def _round_up(x, m):
    return ((x + m - 1) // m) * m


# --------------------------------------------------------------------------
# Kernel body: the full fused 5-matmul MLP on one (tile, dim_in) batch slab.
# --------------------------------------------------------------------------
def _autoencoder_kernel(x_ref,
                        w1_ref, b1_ref, w2_ref, b2_ref, w34_ref, b34_ref,
                        w5_ref, b5_ref, w6_ref, b6_ref,
                        o_ref):
    f32 = jnp.float32
    cdt = w1_ref.dtype  # compute dtype for MXU inputs (bfloat16)

    x = x_ref[...].astype(cdt)

    # ---- encoder: Linear(dim_in,512) -> ReLU -> Linear(512,256) -> ReLU ----
    h = jnp.dot(x, w1_ref[...], preferred_element_type=f32) + b1_ref[...]
    h = jnp.maximum(h, 0.0).astype(cdt)
    h = jnp.dot(h, w2_ref[...], preferred_element_type=f32) + b2_ref[...]
    h = jnp.maximum(h, 0.0).astype(cdt)

    # ---- folded bottleneck: (h @ W3 + b3) @ W4 + b4 == h @ W34 + b34 ----
    # (there is no ReLU between encoder layer 3 and decoder layer 1)
    h = jnp.dot(h, w34_ref[...], preferred_element_type=f32) + b34_ref[...]
    h = jnp.maximum(h, 0.0).astype(cdt)          # ReLU after decoder layer 1

    # ---- decoder tail: Linear(256,512) -> ReLU -> Linear(512,dim_in) ----
    h = jnp.dot(h, w5_ref[...], preferred_element_type=f32) + b5_ref[...]
    h = jnp.maximum(h, 0.0).astype(cdt)
    y = jnp.dot(h, w6_ref[...], preferred_element_type=f32) + b6_ref[...]

    o_ref[...] = y.astype(o_ref.dtype)


# --------------------------------------------------------------------------
# Parameter preparation: fold the bottleneck (in f32) and cast weights to bf16.
# --------------------------------------------------------------------------
def prepare_params(params, compute_dtype=jnp.bfloat16):
    f32 = jnp.float32
    w3 = params["W3"].astype(f32)
    w4 = params["W4"].astype(f32)
    w34 = w3 @ w4
    b34 = params["b3"].astype(f32) @ w4 + params["b4"].astype(f32)
    # TODO(synk): optional fp8 weight quantization for v7x's fp8 MXU path
    # (per-output-channel scales folded into the bias epilogue) — not portable
    # to v5e/v6e, so left out of this generation-agnostic version.
    return {
        "W1": params["W1"].astype(compute_dtype), "b1": params["b1"].astype(f32),
        "W2": params["W2"].astype(compute_dtype), "b2": params["b2"].astype(f32),
        "W34": w34.astype(compute_dtype),         "b34": b34.astype(f32),
        "W5": params["W5"].astype(compute_dtype), "b5": params["b5"].astype(f32),
        "W6": params["W6"].astype(compute_dtype), "b6": params["b6"].astype(f32),
    }


def _choose_batch_tile(B, batch_tile):
    """Pick a batch tile that minimizes padded work and keeps >=4 grid steps.

    * tile is a multiple of 8 (sublane constraint) unless it covers the full
      batch, in which case block dim == array dim is always legal.
    * >= 4 grid steps (2 per TensorCore on v7x megacore) whenever the batch is
      large enough; otherwise a single full-array block.
    * never exceeds (a rounded-up) batch_tile, so per-step VMEM stays bounded.
    """
    min_steps = 4 if B >= 32 else 1
    n_steps = max(pl.cdiv(B, batch_tile), min_steps)
    tile = _round_up(pl.cdiv(B, n_steps), 8)
    if tile >= B:
        return B            # single block covering the whole (possibly odd) batch
    return tile


# --------------------------------------------------------------------------
# Wrapper: one pallas_call over the batch grid.  No pad / slice round-trips.
# --------------------------------------------------------------------------
@functools.partial(jax.jit, static_argnames=("batch_tile", "out_dtype"))
def autoencoder_forward(x, prep, *, batch_tile=512, out_dtype=None):
    """x: (B, dim_in) float32 (or bfloat16). prep: output of prepare_params."""
    B, dim_in = x.shape
    out_dtype = x.dtype if out_dtype is None else jnp.dtype(out_dtype)

    tile = _choose_batch_tile(B, batch_tile)
    grid = (pl.cdiv(B, tile),)   # partial edge block handled by masked writeback

    order = ["W1", "b1", "W2", "b2", "W34", "b34", "W5", "b5", "W6", "b6"]
    args = [prep[k] for k in order]

    def replicated(shape):
        # Full-array block, same (0, 0) block index for every batch-tile step:
        # the pipeline fetches it once and keeps it resident in VMEM.
        return pl.BlockSpec(shape, lambda i: (0, 0))

    in_specs = ([pl.BlockSpec((tile, dim_in), lambda i: (i, 0))]
                + [replicated(a.shape) for a in args])
    out_spec = pl.BlockSpec((tile, dim_in), lambda i: (i, 0))

    # ---- tile-aware VMEM budget (perf review #7) ----
    in_item = jnp.dtype(x.dtype).itemsize
    out_item = out_dtype.itemsize
    weight_bytes = sum(int(a.size) * a.dtype.itemsize for a in args)
    io_bytes = 2 * tile * dim_in * (in_item + out_item)       # double-buffered I/O tiles
    act_bytes = 4 * tile * max(512, dim_in) * 4               # live f32 intermediates
    vmem_limit = int(1.5 * (2 * weight_bytes + io_bytes + act_bytes)) + (8 << 20)

    # ---- advisory cost estimate ----
    flops = 2 * B * sum(
        prep[k].shape[0] * prep[k].shape[1] for k in ("W1", "W2", "W34", "W5", "W6"))
    bytes_accessed = (int(x.size) * in_item
                      + B * dim_in * out_item
                      + weight_bytes)

    return pl.pallas_call(
        _autoencoder_kernel,
        out_shape=jax.ShapeDtypeStruct((B, dim_in), out_dtype),
        grid_spec=pltpu.PrefetchScalarGridSpec(
            num_scalar_prefetch=0,
            grid=grid,
            in_specs=in_specs,
            out_specs=out_spec,
        ),
        compiler_params=pltpu.CompilerParams(
            dimension_semantics=("parallel",),
            vmem_limit_bytes=vmem_limit,
        ),
        cost_estimate=pl.CostEstimate(
            flops=flops, transcendentals=0, bytes_accessed=bytes_accessed),
    )(x, *args)


# --------------------------------------------------------------------------
# Synthetic init + references.
# --------------------------------------------------------------------------
def init_params(key, dim_in, dim_latent):
    """Deterministic synthetic init (uniform, roughly PyTorch-like scale)."""
    dims = [(dim_in, 512), (512, 256), (256, dim_latent),   # encoder
            (dim_latent, 256), (256, 512), (512, dim_in)]   # decoder
    params = {}
    keys = jax.random.split(key, 2 * len(dims))
    for idx, (fan_in, fan_out) in enumerate(dims):
        bound = 1.0 / (fan_in ** 0.5)
        params[f"W{idx + 1}"] = jax.random.uniform(
            keys[2 * idx], (fan_in, fan_out), jnp.float32, -bound, bound)
        params[f"b{idx + 1}"] = jax.random.uniform(
            keys[2 * idx + 1], (1, fan_out), jnp.float32, -bound, bound)
    return params


def reference_forward_f32(x, params):
    """Plain-JAX f32 reference matching the original 6-layer PyTorch forward."""
    h = jnp.maximum(x @ params["W1"] + params["b1"], 0.0)
    h = jnp.maximum(h @ params["W2"] + params["b2"], 0.0)
    z = h @ params["W3"] + params["b3"]
    h = jnp.maximum(z @ params["W4"] + params["b4"], 0.0)
    h = jnp.maximum(h @ params["W5"] + params["b5"], 0.0)
    return h @ params["W6"] + params["b6"]


def reference_forward_prepared(x, prep):
    """Plain-JAX reference using the same folded/bf16 params as the kernel."""
    f32, cdt = jnp.float32, prep["W1"].dtype
    h = x.astype(cdt)
    h = jnp.maximum(jnp.dot(h, prep["W1"], preferred_element_type=f32) + prep["b1"], 0.0).astype(cdt)
    h = jnp.maximum(jnp.dot(h, prep["W2"], preferred_element_type=f32) + prep["b2"], 0.0).astype(cdt)
    h = jnp.maximum(jnp.dot(h, prep["W34"], preferred_element_type=f32) + prep["b34"], 0.0).astype(cdt)
    h = jnp.maximum(jnp.dot(h, prep["W5"], preferred_element_type=f32) + prep["b5"], 0.0).astype(cdt)
    return jnp.dot(h, prep["W6"], preferred_element_type=f32) + prep["b6"]


if __name__ == "__main__":
    dim_in, dim_latent = 256, 64
    key = jax.random.PRNGKey(0)
    k_x, k_p = jax.random.split(key)
    params = init_params(k_p, dim_in, dim_latent)
    prep = prepare_params(params)

    # Batch 300: not a tile multiple -> exercises multi-step grid (tile=80,
    # grid=4) with a masked partial edge block and no pad/slice HBM round-trip.
    x = jax.random.normal(k_x, (300, dim_in), jnp.float32)
    out = jax.block_until_ready(autoencoder_forward(x, prep))
    assert out.shape == (300, dim_in)

    # Exact-structure check: same folded bf16 params, f32 accumulation.
    ref_matched = reference_forward_prepared(x, prep)
    assert jnp.allclose(out, ref_matched, atol=2e-3, rtol=2e-3), \
        "mismatch vs matched (folded bf16) reference"

    # Semantics check vs the original unfused f32 forward (bf16 quantization
    # noise only; a structural bug would blow well past this tolerance).
    ref_f32 = reference_forward_f32(x, params)
    assert jnp.allclose(out, ref_f32, atol=5e-2, rtol=5e-2), \
        "mismatch vs full-precision reference"

    # Tiny-batch path (B < 8): single full-array block, no 8-row padding needed.
    x_small = jax.random.normal(k_x, (6, dim_in), jnp.float32)
    out_small = jax.block_until_ready(autoencoder_forward(x_small, prep))
    assert out_small.shape == (6, dim_in)
    assert jnp.allclose(out_small, reference_forward_prepared(x_small, prep),
                        atol=2e-3, rtol=2e-3), "mismatch on tiny-batch path"

    print("KERNEL_OK")
</pallas_src>

<mosaic_0001>
module attributes {stable_mosaic.version = 11 : i64} {
  func.func @_autoencoder_kernel(%arg0: i32, %arg1: memref<80x256xf32, #tpu.memory_space<vmem>>, %arg2: memref<256x512xbf16, #tpu.memory_space<vmem>>, %arg3: memref<1x512xf32, #tpu.memory_space<vmem>>, %arg4: memref<512x256xbf16, #tpu.memory_space<vmem>>, %arg5: memref<1x256xf32, #tpu.memory_space<vmem>>, %arg6: memref<256x256xbf16, #tpu.memory_space<vmem>>, %arg7: memref<1x256xf32, #tpu.memory_space<vmem>>, %arg8: memref<256x512xbf16, #tpu.memory_space<vmem>>, %arg9: memref<1x512xf32, #tpu.memory_space<vmem>>, %arg10: memref<512x256xbf16, #tpu.memory_space<vmem>>, %arg11: memref<1x256xf32, #tpu.memory_space<vmem>>, %arg12: memref<80x256xf32, #tpu.memory_space<vmem>>) attributes {dimension_semantics = [#tpu.dimension_semantics<parallel>], iteration_bounds = array<i64: 4>, scalar_prefetch = 0 : i64, scratch_operands = 0 : i64, tpu.core_type = #tpu.core_type<tc>, window_params = [{transform_indices = @transform_0, window_bounds = array<i64: 80, 256>}, {pipeline_mode = #tpu.pipeline_mode<synchronous>, transform_indices = @transform_1, window_bounds = array<i64: 256, 512>}, {pipeline_mode = #tpu.pipeline_mode<synchronous>, transform_indices = @transform_2, window_bounds = array<i64: 1, 512>}, {pipeline_mode = #tpu.pipeline_mode<synchronous>, transform_indices = @transform_3, window_bounds = array<i64: 512, 256>}, {pipeline_mode = #tpu.pipeline_mode<synchronous>, transform_indices = @transform_4, window_bounds = array<i64: 1, 256>}, {pipeline_mode = #tpu.pipeline_mode<synchronous>, transform_indices = @transform_5, window_bounds = array<i64: 256, 256>}, {pipeline_mode = #tpu.pipeline_mode<synchronous>, transform_indices = @transform_6, window_bounds = array<i64: 1, 256>}, {pipeline_mode = #tpu.pipeline_mode<synchronous>, transform_indices = @transform_7, window_bounds = array<i64: 256, 512>}, {pipeline_mode = #tpu.pipeline_mode<synchronous>, transform_indices = @transform_8, window_bounds = array<i64: 1, 512>}, {pipeline_mode = #tpu.pipeline_mode<synchronous>, transform_indices = @transform_9, window_bounds = array<i64: 512, 256>}, {pipeline_mode = #tpu.pipeline_mode<synchronous>, transform_indices = @transform_10, window_bounds = array<i64: 1, 256>}, {transform_indices = @transform_11, window_bounds = array<i64: 80, 256>}]} {
    %c0 = arith.constant 0 : index
    %c0_0 = arith.constant 0 : index
    %0 = vector.load %arg1[%c0, %c0_0] : memref<80x256xf32, #tpu.memory_space<vmem>>, vector<80x256xf32>
    %1 = arith.truncf %0 : vector<80x256xf32> to vector<80x256xbf16>
    %c0_1 = arith.constant 0 : index
    %c0_2 = arith.constant 0 : index
    %2 = vector.load %arg2[%c0_1, %c0_2] : memref<256x512xbf16, #tpu.memory_space<vmem>>, vector<256x512xbf16>
    %cst = arith.constant dense<0.000000e+00> : vector<80x512xf32>
    %3 = tpu.matmul %1, %2, %cst {dimension_numbers = #tpu.dot_dimension_numbers<[1], [0], [0], [1], [0, 0, 1, 1], [], []>} : vector<80x256xbf16>, vector<256x512xbf16>, vector<80x512xf32> -> vector<80x512xf32>
    %c0_3 = arith.constant 0 : index
    %c0_4 = arith.constant 0 : index
    %4 = vector.load %arg3[%c0_3, %c0_4] : memref<1x512xf32, #tpu.memory_space<vmem>>, vector<1x512xf32>
    %5 = vector.broadcast %4 : vector<1x512xf32> to vector<80x512xf32>
    %6 = arith.addf %3, %5 : vector<80x512xf32>
    %cst_5 = arith.constant 0.000000e+00 : f32
    %7 = vector.broadcast %cst_5 : f32 to vector<80x512xf32>
    %8 = arith.maximumf %6, %7 : vector<80x512xf32>
    %9 = arith.truncf %8 : vector<80x512xf32> to vector<80x512xbf16>
    %c0_6 = arith.constant 0 : index
    %c0_7 = arith.constant 0 : index
    %10 = vector.load %arg4[%c0_6, %c0_7] : memref<512x256xbf16, #tpu.memory_space<vmem>>, vector<512x256xbf16>
    %cst_8 = arith.constant dense<0.000000e+00> : vector<80x256xf32>
    %11 = tpu.matmul %9, %10, %cst_8 {dimension_numbers = #tpu.dot_dimension_numbers<[1], [0], [0], [1], [0, 0, 1, 1], [], []>} : vector<80x512xbf16>, vector<512x256xbf16>, vector<80x256xf32> -> vector<80x256xf32>
    %c0_9 = arith.constant 0 : index
    %c0_10 = arith.constant 0 : index
    %12 = vector.load %arg5[%c0_9, %c0_10] : memref<1x256xf32, #tpu.memory_space<vmem>>, vector<1x256xf32>
    %13 = vector.broadcast %12 : vector<1x256xf32> to vector<80x256xf32>
    %14 = arith.addf %11, %13 : vector<80x256xf32>
    %cst_11 = arith.constant 0.000000e+00 : f32
    %15 = vector.broadcast %cst_11 : f32 to vector<80x256xf32>
    %16 = arith.maximumf %14, %15 : vector<80x256xf32>
    %17 = arith.truncf %16 : vector<80x256xf32> to vector<80x256xbf16>
    %c0_12 = arith.constant 0 : index
    %c0_13 = arith.constant 0 : index
    %18 = vector.load %arg6[%c0_12, %c0_13] : memref<256x256xbf16, #tpu.memory_space<vmem>>, vector<256x256xbf16>
    %cst_14 = arith.constant dense<0.000000e+00> : vector<80x256xf32>
    %19 = tpu.matmul %17, %18, %cst_14 {dimension_numbers = #tpu.dot_dimension_numbers<[1], [0], [0], [1], [0, 0, 1, 1], [], []>} : vector<80x256xbf16>, vector<256x256xbf16>, vector<80x256xf32> -> vector<80x256xf32>
    %c0_15 = arith.constant 0 : index
    %c0_16 = arith.constant 0 : index
    %20 = vector.load %arg7[%c0_15, %c0_16] : memref<1x256xf32, #tpu.memory_space<vmem>>, vector<1x256xf32>
    %21 = vector.broadcast %20 : vector<1x256xf32> to vector<80x256xf32>
    %22 = arith.addf %19, %21 : vector<80x256xf32>
    %cst_17 = arith.constant 0.000000e+00 : f32
    %23 = vector.broadcast %cst_17 : f32 to vector<80x256xf32>
    %24 = arith.maximumf %22, %23 : vector<80x256xf32>
    %25 = arith.truncf %24 : vector<80x256xf32> to vector<80x256xbf16>
    %c0_18 = arith.constant 0 : index
    %c0_19 = arith.constant 0 : index
    %26 = vector.load %arg8[%c0_18, %c0_19] : memref<256x512xbf16, #tpu.memory_space<vmem>>, vector<256x512xbf16>
    %cst_20 = arith.constant dense<0.000000e+00> : vector<80x512xf32>
    %27 = tpu.matmul %25, %26, %cst_20 {dimension_numbers = #tpu.dot_dimension_numbers<[1], [0], [0], [1], [0, 0, 1, 1], [], []>} : vector<80x256xbf16>, vector<256x512xbf16>, vector<80x512xf32> -> vector<80x512xf32>
    %c0_21 = arith.constant 0 : index
    %c0_22 = arith.constant 0 : index
    %28 = vector.load %arg9[%c0_21, %c0_22] : memref<1x512xf32, #tpu.memory_space<vmem>>, vector<1x512xf32>
    %29 = vector.broadcast %28 : vector<1x512xf32> to vector<80x512xf32>
    %30 = arith.addf %27, %29 : vector<80x512xf32>
    %cst_23 = arith.constant 0.000000e+00 : f32
    %31 = vector.broadcast %cst_23 : f32 to vector<80x512xf32>
    %32 = arith.maximumf %30, %31 : vector<80x512xf32>
    %33 = arith.truncf %32 : vector<80x512xf32> to vector<80x512xbf16>
    %c0_24 = arith.constant 0 : index
    %c0_25 = arith.constant 0 : index
    %34 = vector.load %arg10[%c0_24, %c0_25] : memref<512x256xbf16, #tpu.memory_space<vmem>>, vector<512x256xbf16>
    %cst_26 = arith.constant dense<0.000000e+00> : vector<80x256xf32>
    %35 = tpu.matmul %33, %34, %cst_26 {dimension_numbers = #tpu.dot_dimension_numbers<[1], [0], [0], [1], [0, 0, 1, 1], [], []>} : vector<80x512xbf16>, vector<512x256xbf16>, vector<80x256xf32> -> vector<80x256xf32>
    %c0_27 = arith.constant 0 : index
    %c0_28 = arith.constant 0 : index
    %36 = vector.load %arg11[%c0_27, %c0_28] : memref<1x256xf32, #tpu.memory_space<vmem>>, vector<1x256xf32>
    %37 = vector.broadcast %36 : vector<1x256xf32> to vector<80x256xf32>
    %38 = arith.addf %35, %37 : vector<80x256xf32>
    %c0_29 = arith.constant 0 : index
    %c0_30 = arith.constant 0 : index
    %39 = vector.load %arg12[%c0_29, %c0_30] : memref<80x256xf32, #tpu.memory_space<vmem>>, vector<80x256xf32>
    tpu.vector_store %arg12[%c0_29, %c0_30], %38 {strides = array<i32>} : memref<80x256xf32, #tpu.memory_space<vmem>>, vector<80x256xf32>,
    return
  }
  func.func @transform_0(%arg0: i32) -> (i32, i32) {
    %c0_i32 = arith.constant 0 : i32
    %c0_i32_0 = arith.constant 0 : i32
    return %arg0, %c0_i32 : i32, i32
  }
  func.func @transform_1(%arg0: i32) -> (i32, i32) {
    %c0_i32 = arith.constant 0 : i32
    %c0_i32_0 = arith.constant 0 : i32
    %c0_i32_1 = arith.constant 0 : i32
    return %c0_i32, %c0_i32_0 : i32, i32
  }
  func.func @transform_2(%arg0: i32) -> (i32, i32) {
    %c0_i32 = arith.constant 0 : i32
    %c0_i32_0 = arith.constant 0 : i32
    %c0_i32_1 = arith.constant 0 : i32
    return %c0_i32, %c0_i32_0 : i32, i32
  }
  func.func @transform_3(%arg0: i32) -> (i32, i32) {
    %c0_i32 = arith.constant 0 : i32
    %c0_i32_0 = arith.constant 0 : i32
    %c0_i32_1 = arith.constant 0 : i32
    return %c0_i32, %c0_i32_0 : i32, i32
  }
  func.func @transform_4(%arg0: i32) -> (i32, i32) {
    %c0_i32 = arith.constant 0 : i32
    %c0_i32_0 = arith.constant 0 : i32
    %c0_i32_1 = arith.constant 0 : i32
    return %c0_i32, %c0_i32_0 : i32, i32
  }
  func.func @transform_5(%arg0: i32) -> (i32, i32) {
    %c0_i32 = arith.constant 0 : i32
    %c0_i32_0 = arith.constant 0 : i32
    %c0_i32_1 = arith.constant 0 : i32
    return %c0_i32, %c0_i32_0 : i32, i32
  }
  func.func @transform_6(%arg0: i32) -> (i32, i32) {
    %c0_i32 = arith.constant 0 : i32
    %c0_i32_0 = arith.constant 0 : i32
    %c0_i32_1 = arith.constant 0 : i32
    return %c0_i32, %c0_i32_0 : i32, i32
  }
  func.func @transform_7(%arg0: i32) -> (i32, i32) {
    %c0_i32 = arith.constant 0 : i32
    %c0_i32_0 = arith.constant 0 : i32
    %c0_i32_1 = arith.constant 0 : i32
    return %c0_i32, %c0_i32_0 : i32, i32
  }
  func.func @transform_8(%arg0: i32) -> (i32, i32) {
    %c0_i32 = arith.constant 0 : i32
    %c0_i32_0 = arith.constant 0 : i32
    %c0_i32_1 = arith.constant 0 : i32
    return %c0_i32, %c0_i32_0 : i32, i32
  }
  func.func @transform_9(%arg0: i32) -> (i32, i32) {
    %c0_i32 = arith.constant 0 : i32
    %c0_i32_0 = arith.constant 0 : i32
    %c0_i32_1 = arith.constant 0 : i32
    return %c0_i32, %c0_i32_0 : i32, i32
  }
  func.func @transform_10(%arg0: i32) -> (i32, i32) {
    %c0_i32 = arith.constant 0 : i32
    %c0_i32_0 = arith.constant 0 : i32
    %c0_i32_1 = arith.constant 0 : i32
    return %c0_i32, %c0_i32_0 : i32, i32
  }
  func.func @transform_11(%arg0: i32) -> (i32, i32) {
    %c0_i32 = arith.constant 0 : i32
    %c0_i32_0 = arith.constant 0 : i32
    return %arg0, %c0_i32 : i32, i32
  }
}

</mosaic_0001>

<llo_original>
// kernel: autoencoder_forward.1
$region0: #{autoencoder_forward.1}
  #allocation0 [shape = 'u32[]', space=smem, size = 0x4, offset = 0x4, fixed_abs, tag = 'smem constant byte address 0x4 - core index']
  #allocation1 [shape = 'u32[72,128]{1,0:T(1,128)}', space=vmem, size = 0x9000, scoped, tag = 'internal scratch']
  %s0 = inlined_call_operand.hbm [shape: f32[300,256], index: 0, kind: input, shape index: {}]
  %s1 = inlined_call_operand.hbm [shape: bf16[256,512], index: 1, kind: input, shape index: {}]
  %s2 = inlined_call_operand.vmem [shape: f32[1,512], index: 2, kind: input, shape index: {}]
  %s3 = inlined_call_operand.hbm [shape: bf16[512,256], index: 3, kind: input, shape index: {}]
  %s4 = inlined_call_operand.hbm [shape: f32[1,256], index: 4, kind: input, shape index: {}]
  %s5 = inlined_call_operand.hbm [shape: bf16[256,256], index: 5, kind: input, shape index: {}]
  %s6 = inlined_call_operand.hbm [shape: f32[1,256], index: 6, kind: input, shape index: {}]
  %s7 = inlined_call_operand.hbm [shape: bf16[256,512], index: 7, kind: input, shape index: {}]
  %s8 = inlined_call_operand.vmem [shape: f32[1,512], index: 8, kind: input, shape index: {}]
  %s9 = inlined_call_operand.hbm [shape: bf16[512,256], index: 9, kind: input, shape index: {}]
  %s10 = inlined_call_operand.hbm [shape: f32[1,256], index: 10, kind: input, shape index: {}]
  %s11 = inlined_call_operand.hbm [shape: f32[300,256], index: 11, kind: output, shape index: {}]
  %s12 = sld [smem:[#allocation0]]
  $region113: #{autoencoder_forward.1} parent=0
    _
  %s14 = ssub.s32 1, %s12
  %s15 = scalar_select 0, %s14, %s12
  $region1: #{autoencoder_forward.1} parent=0
    #allocation2 [shape = 'u8[163840]{0}', space=vmem, size = 0x28000, scoped, tag = 'input window, operand 0']
    #allocation3 [shape = 's32[2]{0}', space=sflag, size = 0x8, scoped, tag = 'scoped memory for autoencoder_forward.1']
    #allocation4 [shape = 's32[2]{0}', space=sflag, size = 0x8, scoped, tag = 'scoped memory for autoencoder_forward.1']
    #allocation5 [shape = 'u8[262144]{0}', space=vmem, size = 0x40000, scoped, tag = 'input window, operand 1, single buffered']
    #allocation6 [shape = 's32[1]{0}', space=sflag, size = 0x4, scoped, tag = 'scoped memory for autoencoder_forward.1']
    #allocation7 [shape = 'u8[262144]{0}', space=vmem, size = 0x40000, scoped, tag = 'input window, operand 3, single buffered']
    #allocation8 [shape = 'u8[1024]{0}', space=vmem, size = 0x400, scoped, tag = 'input window, operand 4, single buffered']
    #allocation9 [shape = 's32[1]{0}', space=sflag, size = 0x4, scoped, tag = 'scoped memory for autoencoder_forward.1']
    #allocation10 [shape = 'u8[131072]{0}', space=vmem, size = 0x20000, scoped, tag = 'input window, operand 5, single buffered']
    #allocation11 [shape = 'u8[1024]{0}', space=vmem, size = 0x400, scoped, tag = 'input window, operand 6, single buffered']
    #allocation12 [shape = 's32[1]{0}', space=sflag, size = 0x4, scoped, tag = 'scoped memory for autoencoder_forward.1']
    #allocation13 [shape = 'u8[262144]{0}', space=vmem, size = 0x40000, scoped, tag = 'input window, operand 7, single buffered']
    #allocation14 [shape = 'u8[262144]{0}', space=vmem, size = 0x40000, scoped, tag = 'input window, operand 9, single buffered']
    #allocation15 [shape = 's32[1]{0}', space=sflag, size = 0x4, scoped, tag = 'scoped memory for autoencoder_forward.1']
    #allocation16 [shape = 'u8[1024]{0}', space=vmem, size = 0x400, scoped, tag = 'input window, operand 10, single buffered']
    #allocation17 [shape = 'u8[163840]{0}', space=vmem, size = 0x28000, scoped, tag = 'output window, operand 0']
    %16 = vsyncpa [#allocation3], 0
    %s17 = scalar_lea.sflag [#allocation3], 1
    %18 = vsyncpa %s17, 0
    %19 = vsyncpa [#allocation6], 0
    %20 = vsyncpa [#allocation9], 0
    %21 = vsyncpa [#allocation12], 0
    %22 = vsyncpa [#allocation15], 0
    %23 = vsyncpa [#allocation4], 0
    %s24 = scalar_lea.sflag [#allocation4], 1
    %25 = vsyncpa %s24, 0
    loop: start=0, step=1, limit=6
    $region2: #{autoencoder_forward.1} parent=1 // loop_pre_header
      _
    $region3: #{autoencoder_forward.1} parent=1 // loop_header
      %s27 = sphi 0, %s31
      %p28 = scmp.ge.s32.totalorder %s27, 6
      %s37 = sphi 0, %s39
      %s40 = sphi 0, %s37
      %s41 = sphi 0, %s40
      %s57 = sphi 0, %s41
      %s61 = sphi 0, %s61
      %s63 = sphi 0, %s61
      %s64 = sphi 0, %s63
      %s78 = sphi 0, %s64
      %s82 = sphi 0, %s82
      %s84 = sphi 0, %s82
      %s85 = sphi 0, %s84
      %s99 = sphi 0, %s85
      %s103 = sphi 0, %s103
      %s105 = sphi 0, %s103
      %s106 = sphi 0, %s105
      %s120 = sphi 0, %s106
      %s124 = sphi 0, %s124
      %s126 = sphi 0, %s124
      %s127 = sphi 0, %s126
      %s141 = sphi 0, %s127
      %s145 = sphi 0, %s145
      %s147 = sphi 0, %s145
      %s148 = sphi 0, %s147
      %s162 = sphi 0, %s148
      %s166 = sphi 0, %s166
      %s168 = sphi 0, %s166
      %s169 = sphi 0, %s168
      %s183 = sphi 0, %s169
      %s187 = sphi 0, %s187
      %s189 = sphi 0, %s187
      %s190 = sphi 0, %s189
      %s204 = sphi 0, %s190
      %s208 = sphi 0, %s208
      %s210 = sphi 0, %s208
      %s211 = sphi 0, %s210
      %s225 = sphi 0, %s211
      %s229 = sphi 0, %s229
      %s231 = sphi 0, %s229
      %s232 = sphi 0, %s231
      %s246 = sphi 0, %s232
      %s250 = sphi 0, %s250
      %s252 = sphi 0, %s250
      %s253 = sphi 0, %s252
      %s267 = sphi 0, %s253
      %s273 = sphi 0, %s275
      %s276 = sphi 0, %s273
      %s277 = sphi 0, %s276
      %s293 = sphi 0, %s277
    $region4: #{autoencoder_forward.1} parent=1 // loop_header_branch
      %30 = sbr.rel (%p28) target = $region8
    $region5: #{autoencoder_forward.1} parent=1 // loop_body
      %s32 = ssub.s32 %s27, 1
      %s33 = ssub.s32 %s27, 2
      %s34 = sadd.s32 %s27, 1
      %s35 = ssub.s32 %s27, %s34
      %p36 = scmp.eq.s32.totalorder %s35, 0
      %s38 = sadd.s32 %s37, 1
      %s39 = scalar_select %p36, %s37, %s38
      %p42 = pneg %p36
      %p43 = scmp.eq.s32.totalorder %s27, 3
      %p44 = por %p42, %p43
      %p45 = scmp.ne.s32.totalorder %s37, %s40
      %p46 = scmp.eq.s32.totalorder %s27, 0
      %p47 = por %p45, %p46
      %p48 = scmp.ne.s32.totalorder %s37, %s40
      %p49 = scmp.eq.s32.totalorder %s32, 3
      %p50 = por %p48, %p49
      %p51 = scmp.ne.s32.totalorder %s40, %s41
      %p52 = scmp.eq.s32.totalorder %s32, 0
      %p53 = por %p51, %p52
      %p54 = scmp.ne.s32.totalorder %s40, %s41
      %p55 = scmp.eq.s32.totalorder %s33, 3
      %p56 = por %p54, %p55
      %p58 = scmp.ne.s32.totalorder %s41, %s57
      %p59 = scmp.eq.s32.totalorder %s33, 0
      %p60 = por %p58, %p59
      %s62 = sadd.s32 %s61, 1
      %p65 = scmp.eq.s32.totalorder %s27, 3
      %p66 = scmp.ne.s32.totalorder %s61, %s63
      %p67 = scmp.eq.s32.totalorder %s27, 0
      %p68 = por %p66, %p67
      %p69 = scmp.ne.s32.totalorder %s61, %s63
      %p70 = scmp.eq.s32.totalorder %s32, 3
      %p71 = por %p69, %p70
      %p72 = scmp.ne.s32.totalorder %s63, %s64
      %p73 = scmp.eq.s32.totalorder %s32, 0
      %p74 = por %p72, %p73
      %p75 = scmp.ne.s32.totalorder %s63, %s64
      %p76 = scmp.eq.s32.totalorder %s33, 3
      %p77 = por %p75, %p76
      %p79 = scmp.ne.s32.totalorder %s64, %s78
      %p80 = scmp.eq.s32.totalorder %s33, 0
      %p81 = por %p79, %p80
      %s83 = sadd.s32 %s82, 1
      %p86 = scmp.eq.s32.totalorder %s27, 3
      %p87 = scmp.ne.s32.totalorder %s82, %s84
      %p88 = scmp.eq.s32.totalorder %s27, 0
      %p89 = por %p87, %p88
      %p90 = scmp.ne.s32.totalorder %s82, %s84
      %p91 = scmp.eq.s32.totalorder %s32, 3
      %p92 = por %p90, %p91
      %p93 = scmp.ne.s32.totalorder %s84, %s85
      %p94 = scmp.eq.s32.totalorder %s32, 0
      %p95 = por %p93, %p94
      %p96 = scmp.ne.s32.totalorder %s84, %s85
      %p97 = scmp.eq.s32.totalorder %s33, 3
      %p98 = por %p96, %p97
      %p100 = scmp.ne.s32.totalorder %s85, %s99
      %p101 = scmp.eq.s32.totalorder %s33, 0
      %p102 = por %p100, %p101
      %s104 = sadd.s32 %s103, 1
      %p107 = scmp.eq.s32.totalorder %s27, 3
      %p108 = scmp.ne.s32.totalorder %s103, %s105
      %p109 = scmp.eq.s32.totalorder %s27, 0
      %p110 = por %p108, %p109
      %p111 = scmp.ne.s32.totalorder %s103, %s105
      %p112 = scmp.eq.s32.totalorder %s32, 3
      %p113 = por %p111, %p112
      %p114 = scmp.ne.s32.totalorder %s105, %s106
      %p115 = scmp.eq.s32.totalorder %s32, 0
      %p116 = por %p114, %p115
      %p117 = scmp.ne.s32.totalorder %s105, %s106
      %p118 = scmp.eq.s32.totalorder %s33, 3
      %p119 = por %p117, %p118
      %p121 = scmp.ne.s32.totalorder %s106, %s120
      %p122 = scmp.eq.s32.totalorder %s33, 0
      %p123 = por %p121, %p122
      %s125 = sadd.s32 %s124, 1
      %p128 = scmp.eq.s32.totalorder %s27, 3
      %p129 = scmp.ne.s32.totalorder %s124, %s126
      %p130 = scmp.eq.s32.totalorder %s27, 0
      %p131 = por %p129, %p130
      %p132 = scmp.ne.s32.totalorder %s124, %s126
      %p133 = scmp.eq.s32.totalorder %s32, 3
      %p134 = por %p132, %p133
      %p135 = scmp.ne.s32.totalorder %s126, %s127
      %p136 = scmp.eq.s32.totalorder %s32, 0
      %p137 = por %p135, %p136
      %p138 = scmp.ne.s32.totalorder %s126, %s127
      %p139 = scmp.eq.s32.totalorder %s33, 3
      %p140 = por %p138, %p139
      %p142 = scmp.ne.s32.totalorder %s127, %s141
      %p143 = scmp.eq.s32.totalorder %s33, 0
      %p144 = por %p142, %p143
      %s146 = sadd.s32 %s145, 1
      %p149 = scmp.eq.s32.totalorder %s27, 3
      %p150 = scmp.ne.s32.totalorder %s145, %s147
      %p151 = scmp.eq.s32.totalorder %s27, 0
      %p152 = por %p150, %p151
      %p153 = scmp.ne.s32.totalorder %s145, %s147
      %p154 = scmp.eq.s32.totalorder %s32, 3
      %p155 = por %p153, %p154
      %p156 = scmp.ne.s32.totalorder %s147, %s148
      %p157 = scmp.eq.s32.totalorder %s32, 0
      %p158 = por %p156, %p157
      %p159 = scmp.ne.s32.totalorder %s147, %s148
      %p160 = scmp.eq.s32.totalorder %s33, 3
      %p161 = por %p159, %p160
      %p163 = scmp.ne.s32.totalorder %s148, %s162
      %p164 = scmp.eq.s32.totalorder %s33, 0
      %p165 = por %p163, %p164
      %s167 = sadd.s32 %s166, 1
      %p170 = scmp.eq.s32.totalorder %s27, 3
      %p171 = scmp.ne.s32.totalorder %s166, %s168
      %p172 = scmp.eq.s32.totalorder %s27, 0
      %p173 = por %p171, %p172
      %p174 = scmp.ne.s32.totalorder %s166, %s168
      %p175 = scmp.eq.s32.totalorder %s32, 3
      %p176 = por %p174, %p175
      %p177 = scmp.ne.s32.totalorder %s168, %s169
      %p178 = scmp.eq.s32.totalorder %s32, 0
      %p179 = por %p177, %p178
      %p180 = scmp.ne.s32.totalorder %s168, %s169
      %p181 = scmp.eq.s32.totalorder %s33, 3
      %p182 = por %p180, %p181
      %p184 = scmp.ne.s32.totalorder %s169, %s183
      %p185 = scmp.eq.s32.totalorder %s33, 0
      %p186 = por %p184, %p185
      %s188 = sadd.s32 %s187, 1
      %p191 = scmp.eq.s32.totalorder %s27, 3
      %p192 = scmp.ne.s32.totalorder %s187, %s189
      %p193 = scmp.eq.s32.totalorder %s27, 0
      %p194 = por %p192, %p193
      %p195 = scmp.ne.s32.totalorder %s187, %s189
      %p196 = scmp.eq.s32.totalorder %s32, 3
      %p197 = por %p195, %p196
      %p198 = scmp.ne.s32.totalorder %s189, %s190
      %p199 = scmp.eq.s32.totalorder %s32, 0
      %p200 = por %p198, %p199
      %p201 = scmp.ne.s32.totalorder %s189, %s190
      %p202 = scmp.eq.s32.totalorder %s33, 3
      %p203 = por %p201, %p202
      %p205 = scmp.ne.s32.totalorder %s190, %s204
      %p206 = scmp.eq.s32.totalorder %s33, 0
      %p207 = por %p205, %p206
      %s209 = sadd.s32 %s208, 1
      %p212 = scmp.eq.s32.totalorder %s27, 3
      %p213 = scmp.ne.s32.totalorder %s208, %s210
      %p214 = scmp.eq.s32.totalorder %s27, 0
      %p215 = por %p213, %p214
      %p216 = scmp.ne.s32.totalorder %s208, %s210
      %p217 = scmp.eq.s32.totalorder %s32, 3
      %p218 = por %p216, %p217
      %p219 = scmp.ne.s32.totalorder %s210, %s211
      %p220 = scmp.eq.s32.totalorder %s32, 0
      %p221 = por %p219, %p220
      %p222 = scmp.ne.s32.totalorder %s210, %s211
      %p223 = scmp.eq.s32.totalorder %s33, 3
      %p224 = por %p222, %p223
      %p226 = scmp.ne.s32.totalorder %s211, %s225
      %p227 = scmp.eq.s32.totalorder %s33, 0
      %p228 = por %p226, %p227
      %s230 = sadd.s32 %s229, 1
      %p233 = scmp.eq.s32.totalorder %s27, 3
      %p234 = scmp.ne.s32.totalorder %s229, %s231
      %p235 = scmp.eq.s32.totalorder %s27, 0
      %p236 = por %p234, %p235
      %p237 = scmp.ne.s32.totalorder %s229, %s231
      %p238 = scmp.eq.s32.totalorder %s32, 3
      %p239 = por %p237, %p238
      %p240 = scmp.ne.s32.totalorder %s231, %s232
      %p241 = scmp.eq.s32.totalorder %s32, 0
      %p242 = por %p240, %p241
      %p243 = scmp.ne.s32.totalorder %s231, %s232
      %p244 = scmp.eq.s32.totalorder %s33, 3
      %p245 = por %p243, %p244
      %p247 = scmp.ne.s32.totalorder %s232, %s246
      %p248 = scmp.eq.s32.totalorder %s33, 0
      %p249 = por %p247, %p248
      %s251 = sadd.s32 %s250, 1
      %p254 = scmp.eq.s32.totalorder %s27, 3
      %p255 = scmp.ne.s32.totalorder %s250, %s252
      %p256 = scmp.eq.s32.totalorder %s27, 0
      %p257 = por %p255, %p256
      %p258 = scmp.ne.s32.totalorder %s250, %s252
      %p259 = scmp.eq.s32.totalorder %s32, 3
      %p260 = por %p258, %p259
      %p261 = scmp.ne.s32.totalorder %s252, %s253
      %p262 = scmp.eq.s32.totalorder %s32, 0
      %p263 = por %p261, %p262
      %p264 = scmp.ne.s32.totalorder %s252, %s253
      %p265 = scmp.eq.s32.totalorder %s33, 3
      %p266 = por %p264, %p265
      %p268 = scmp.ne.s32.totalorder %s253, %s267
      %p269 = scmp.eq.s32.totalorder %s33, 0
      %p270 = por %p268, %p269
      %s271 = ssub.s32 %s27, %s34
      %p272 = scmp.eq.s32.totalorder %s271, 0
      %s274 = sadd.s32 %s273, 1
      %s275 = scalar_select %p272, %s273, %s274
      %p278 = pneg %p272
      %p279 = scmp.eq.s32.totalorder %s27, 3
      %p280 = por %p278, %p279
      %p281 = scmp.ne.s32.totalorder %s273, %s276
      %p282 = scmp.eq.s32.totalorder %s27, 0
      %p283 = por %p281, %p282
      %p284 = scmp.ne.s32.totalorder %s273, %s276
      %p285 = scmp.eq.s32.totalorder %s32, 3
      %p286 = por %p284, %p285
      %p287 = scmp.ne.s32.totalorder %s276, %s277
      %p288 = scmp.eq.s32.totalorder %s32, 0
      %p289 = por %p287, %p288
      %p290 = scmp.ne.s32.totalorder %s276, %s277
      %p291 = scmp.eq.s32.totalorder %s33, 3
      %p292 = por %p290, %p291
      %p294 = scmp.ne.s32.totalorder %s277, %s293
      %p295 = scmp.eq.s32.totalorder %s33, 0
      %p296 = por %p294, %p295
      %p297 = scmp.le.s32.totalorder 1, %s27
      %p298 = scmp.lt.s32.totalorder %s27, 5
      %p299 = pnand %p297, %p298
      %p300 = pneg %p299
      // Predicated region
      $region9: #{autoencoder_forward.1} parent=5 // pred_check
        _
      $region10: #{autoencoder_forward.1} parent=5 // pred_check_branch
        %302 = sbr.rel (%p299) target = $region12
      $region11: #{autoencoder_forward.1} parent=5 // pred_region
        %s303 = ssub.s32 %s27, 1
        // Predicated region
        $region13: #{autoencoder_forward.1} parent=11 // pred_check
          %p304 = pneg %p74
        $region14: #{autoencoder_forward.1} parent=11 // pred_check_branch
          %306 = sbr.rel (%p304) target = $region16
        $region15: #{autoencoder_forward.1} parent=11 // pred_region
          %308 = vsyncadd [#allocation6], 0
          %s309 = sshll.u32 %s1, 4
          %s310 = int_to_ptr.hbm [resolvable:$true] %s309
          %s311 = sshll.u32 [#allocation5], 4
          %s312 = int_to_ptr.vmem [resolvable:$true] %s311
          %317 = dma.hbm_to_vmem [thread:$0]  %s310, 8192, %s312, [#allocation6], 256, 256, 16
        $region16: #{autoencoder_forward.1} parent=11 // pred_fallthru
          _
        // Predicated region
        $region17: #{autoencoder_forward.1} parent=11 // pred_check
          %p318 = pneg %p95
        $region18: #{autoencoder_forward.1} parent=11 // pred_check_branch
          %320 = sbr.rel (%p318) target = $region20
        $region19: #{autoencoder_forward.1} parent=11 // pred_region
          _
        $region20: #{autoencoder_forward.1} parent=11 // pred_fallthru
          _
        // Predicated region
        $region21: #{autoencoder_forward.1} parent=11 // pred_check
          %p321 = pneg %p116
        $region22: #{autoencoder_forward.1} parent=11 // pred_check_branch
          %323 = sbr.rel (%p321) target = $region24
        $region23: #{autoencoder_forward.1} parent=11 // pred_region
          %325 = vsyncadd [#allocation6], 0
          %s326 = sshll.u32 %s3, 4
          %s327 = int_to_ptr.hbm [resolvable:$true] %s326
          %s328 = sshll.u32 [#allocation7], 4
          %s329 = int_to_ptr.vmem [resolvable:$true] %s328
          %334 = dma.hbm_to_vmem [thread:$0]  %s327, 8192, %s329, [#allocation6], 128, 128, 8
        $region24: #{autoencoder_forward.1} parent=11 // pred_fallthru
          _
        // Predicated region
        $region25: #{autoencoder_forward.1} parent=11 // pred_check
          %p335 = pneg %p137
        $region26: #{autoencoder_forward.1} parent=11 // pred_check_branch
          %337 = sbr.rel (%p335) target = $region28
        $region27: #{autoencoder_forward.1} parent=11 // pred_region
          %339 = vsyncadd [#allocation9], 0
          %s341 = sshll.u32 %s4, 4
          %s342 = int_to_ptr.hbm [resolvable:$true] %s341
          %s343 = sshll.u32 [#allocation8], 4
          %s344 = int_to_ptr.vmem [resolvable:$true] %s343
          %346 = dma.hbm_to_vmem [thread:$0]  %s342, 32, %s344, [#allocation9]
        $region28: #{autoencoder_forward.1} parent=11 // pred_fallthru
          _
        // Predicated region
        $region29: #{autoencoder_forward.1} parent=11 // pred_check
          %p347 = pneg %p158
        $region30: #{autoencoder_forward.1} parent=11 // pred_check_branch
          %349 = sbr.rel (%p347) target = $region32
        $region31: #{autoencoder_forward.1} parent=11 // pred_region
          %351 = vsyncadd [#allocation9], 0
          %s352 = sshll.u32 %s5, 4
          %s353 = int_to_ptr.hbm [resolvable:$true] %s352
          %s354 = sshll.u32 [#allocation10], 4
          %s355 = int_to_ptr.vmem [resolvable:$true] %s354
          %360 = dma.hbm_to_vmem [thread:$0]  %s353, 4096, %s355, [#allocation9], 128, 128, 8
        $region32: #{autoencoder_forward.1} parent=11 // pred_fallthru
          _
        // Predicated region
        $region33: #{autoencoder_forward.1} parent=11 // pred_check
          %p361 = pneg %p179
        $region34: #{autoencoder_forward.1} parent=11 // pred_check_branch
          %363 = sbr.rel (%p361) target = $region36
        $region35: #{autoencoder_forward.1} parent=11 // pred_region
          %365 = vsyncadd [#allocation12], 0
          %s367 = sshll.u32 %s6, 4
          %s368 = int_to_ptr.hbm [resolvable:$true] %s367
          %s369 = sshll.u32 [#allocation11], 4
          %s370 = int_to_ptr.vmem [resolvable:$true] %s369
          %372 = dma.hbm_to_vmem [thread:$0]  %s368, 32, %s370, [#allocation12]
        $region36: #{autoencoder_forward.1} parent=11 // pred_fallthru
          _
        // Predicated region
        $region37: #{autoencoder_forward.1} parent=11 // pred_check
          %p373 = pneg %p200
        $region38: #{autoencoder_forward.1} parent=11 // pred_check_branch
          %375 = sbr.rel (%p373) target = $region40
        $region39: #{autoencoder_forward.1} parent=11 // pred_region
          %377 = vsyncadd [#allocation12], 0
          %s378 = sshll.u32 %s7, 4
          %s379 = int_to_ptr.hbm [resolvable:$true] %s378
          %s380 = sshll.u32 [#allocation13], 4
          %s381 = int_to_ptr.vmem [resolvable:$true] %s380
          %386 = dma.hbm_to_vmem [thread:$0]  %s379, 8192, %s381, [#allocation12], 256, 256, 16
        $region40: #{autoencoder_forward.1} parent=11 // pred_fallthru
          _
        // Predicated region
        $region41: #{autoencoder_forward.1} parent=11 // pred_check
          %p387 = pneg %p221
        $region42: #{autoencoder_forward.1} parent=11 // pred_check_branch
          %389 = sbr.rel (%p387) target = $region44
        $region43: #{autoencoder_forward.1} parent=11 // pred_region
          _
        $region44: #{autoencoder_forward.1} parent=11 // pred_fallthru
          _
        // Predicated region
        $region45: #{autoencoder_forward.1} parent=11 // pred_check
          %p390 = pneg %p242
        $region46: #{autoencoder_forward.1} parent=11 // pred_check_branch
          %392 = sbr.rel (%p390) target = $region48
        $region47: #{autoencoder_forward.1} parent=11 // pred_region
          %394 = vsyncadd [#allocation15], 0
          %s395 = sshll.u32 %s9, 4
          %s396 = int_to_ptr.hbm [resolvable:$true] %s395
          %s397 = sshll.u32 [#allocation14], 4
          %s398 = int_to_ptr.vmem [resolvable:$true] %s397
          %403 = dma.hbm_to_vmem [thread:$0]  %s396, 8192, %s398, [#allocation15], 128, 128, 8
        $region48: #{autoencoder_forward.1} parent=11 // pred_fallthru
          _
        // Predicated region
        $region49: #{autoencoder_forward.1} parent=11 // pred_check
          %p404 = pneg %p263
        $region50: #{autoencoder_forward.1} parent=11 // pred_check_branch
          %406 = sbr.rel (%p404) target = $region52
        $region51: #{autoencoder_forward.1} parent=11 // pred_region
          %408 = vsyncadd [#allocation15], 0
          %s410 = sshll.u32 %s10, 4
          %s411 = int_to_ptr.hbm [resolvable:$true] %s410
          %s412 = sshll.u32 [#allocation16], 4
          %s413 = int_to_ptr.vmem [resolvable:$true] %s412
          %415 = dma.hbm_to_vmem [thread:$0]  %s411, 32, %s413, [#allocation15]
        $region52: #{autoencoder_forward.1} parent=11 // pred_fallthru
          _
      $region12: #{autoencoder_forward.1} parent=5 // pred_fallthru
        _
      %p416 = scmp.lt.s32.totalorder %s27, 4
      // Predicated region
      $region53: #{autoencoder_forward.1} parent=5 // pred_check
        %p417 = pneg %p416
      $region54: #{autoencoder_forward.1} parent=5 // pred_check_branch
        %419 = sbr.rel (%p417) target = $region56
      $region55: #{autoencoder_forward.1} parent=5 // pred_region
        // Predicated region
        $region57: #{autoencoder_forward.1} parent=55 // pred_check
          %p420 = pneg %p47
        $region58: #{autoencoder_forward.1} parent=55 // pred_check_branch
          %422 = sbr.rel (%p420) target = $region60
        $region59: #{autoencoder_forward.1} parent=55 // pred_region
          %s423 = sand.u32 %s37, 1
          %s424 = scalar_lea.sflag [#allocation3], %s423
          %s425 = sand.u32 %s37, 1
          %s426 = smul.addr %s425, 160
          %s427 = scalar_lea.vmem [#allocation2], %s426
          %s428 = smul.u32 10, %s27
          %s429 = ssub.s32 38, %s428
          %p430 = scmp.lt.s32.totalorder %s429, 10
          %s431 = scalar_select %p430, %s429, 10
          %s432 = smul.u32 8, %s431
          %s433 = smul.u32 %s432, 2
          %s434 = ssub.s32 160, %s433
          %s435 = sshll.u32 %s434, 4
          %436 = vsyncadd %s424, %s435
          %p437 = scmp.ne.s32.totalorder 0, %s433
          %s438 = smul.addr %s428, 2
          %s439 = smul.addr %s438, 8
          %s440 = scalar_lea.hbm %s0, %s439
          %s441 = smul.u32 16, %s431
          %s442 = sshll.u32 %s440, 4
          %s443 = int_to_ptr.hbm [resolvable:$true] %s442
          %s444 = sshll.u32 %s427, 4
          %s445 = int_to_ptr.vmem [resolvable:$true] %s444
          %s446 = sshll.u32 %s441, 4
          %450 = dma.hbm_to_vmem [thread:$0]  (%p437), %s443, %s446, %s445, %s424, 256, 256, 16
        $region60: #{autoencoder_forward.1} parent=55 // pred_fallthru
          _
      $region56: #{autoencoder_forward.1} parent=5 // pred_fallthru
        _
      %p451 = scmp.le.s32.totalorder 1, %s27
      %p452 = scmp.lt.s32.totalorder %s27, 5
      %p453 = pnand %p451, %p452
      %p454 = pneg %p453
      // Predicated region
      $region61: #{autoencoder_forward.1} parent=5 // pred_check
        _
      $region62: #{autoencoder_forward.1} parent=5 // pred_check_branch
        %456 = sbr.rel (%p453) target = $region64
      $region63: #{autoencoder_forward.1} parent=5 // pred_region
        %s457 = ssub.s32 %s27, 1
        %s458 = sand.u32 %s40, 1
        %s459 = scalar_lea.sflag [#allocation3], %s458
        %s460 = sand.u32 %s40, 1
        %s461 = smul.addr %s460, 160
        %s462 = scalar_lea.vmem [#allocation2], %s461
        // Predicated region
        $region65: #{autoencoder_forward.1} parent=63 // pred_check
          %p463 = pneg %p53
        $region66: #{autoencoder_forward.1} parent=63 // pred_check_branch
          %465 = sbr.rel (%p463) target = $region68
        $region67: #{autoencoder_forward.1} parent=63 // pred_region
          %467 = dma.done %s459, 2560
        $region68: #{autoencoder_forward.1} parent=63 // pred_fallthru
          _
        // Predicated region
        $region69: #{autoencoder_forward.1} parent=63 // pred_check
          %p468 = pneg %p74
        $region70: #{autoencoder_forward.1} parent=63 // pred_check_branch
          %470 = sbr.rel (%p468) target = $region72
        $region71: #{autoencoder_forward.1} parent=63 // pred_region
          %472 = dma.done [#allocation6], 8192
        $region72: #{autoencoder_forward.1} parent=63 // pred_fallthru
          _
        // Predicated region
        $region73: #{autoencoder_forward.1} parent=63 // pred_check
          %p473 = pneg %p116
        $region74: #{autoencoder_forward.1} parent=63 // pred_check_branch
          %475 = sbr.rel (%p473) target = $region76
        $region75: #{autoencoder_forward.1} parent=63 // pred_region
          %477 = dma.done [#allocation6], 8192
        $region76: #{autoencoder_forward.1} parent=63 // pred_fallthru
          _
        // Predicated region
        $region77: #{autoencoder_forward.1} parent=63 // pred_check
          %p478 = pneg %p137
        $region78: #{autoencoder_forward.1} parent=63 // pred_check_branch
          %480 = sbr.rel (%p478) target = $region80
        $region79: #{autoencoder_forward.1} parent=63 // pred_region
          %482 = dma.done [#allocation9], 32
        $region80: #{autoencoder_forward.1} parent=63 // pred_fallthru
          _
        // Predicated region
        $region81: #{autoencoder_forward.1} parent=63 // pred_check
          %p483 = pneg %p158
        $region82: #{autoencoder_forward.1} parent=63 // pred_check_branch
          %485 = sbr.rel (%p483) target = $region84
        $region83: #{autoencoder_forward.1} parent=63 // pred_region
          %487 = dma.done [#allocation9], 4096
        $region84: #{autoencoder_forward.1} parent=63 // pred_fallthru
          _
        // Predicated region
        $region85: #{autoencoder_forward.1} parent=63 // pred_check
          %p488 = pneg %p179
        $region86: #{autoencoder_forward.1} parent=63 // pred_check_branch
          %490 = sbr.rel (%p488) target = $region88
        $region87: #{autoencoder_forward.1} parent=63 // pred_region
          %492 = dma.done [#allocation12], 32
        $region88: #{autoencoder_forward.1} parent=63 // pred_fallthru
          _
        // Predicated region
        $region89: #{autoencoder_forward.1} parent=63 // pred_check
          %p493 = pneg %p200
        $region90: #{autoencoder_forward.1} parent=63 // pred_check_branch
          %495 = sbr.rel (%p493) target = $region92
        $region91: #{autoencoder_forward.1} parent=63 // pred_region
          %497 = dma.done [#allocation12], 8192
        $region92: #{autoencoder_forward.1} parent=63 // pred_fallthru
          _
        // Predicated region
        $region93: #{autoencoder_forward.1} parent=63 // pred_check
          %p498 = pneg %p242
        $region94: #{autoencoder_forward.1} parent=63 // pred_check_branch
          %500 = sbr.rel (%p498) target = $region96
        $region95: #{autoencoder_forward.1} parent=63 // pred_region
          %502 = dma.done [#allocation15], 8192
        $region96: #{autoencoder_forward.1} parent=63 // pred_fallthru
          _
        // Predicated region
        $region97: #{autoencoder_forward.1} parent=63 // pred_check
          %p503 = pneg %p263
        $region98: #{autoencoder_forward.1} parent=63 // pred_check_branch
          %505 = sbr.rel (%p503) target = $region100
        $region99: #{autoencoder_forward.1} parent=63 // pred_region
          %507 = dma.done [#allocation15], 32
        $region100: #{autoencoder_forward.1} parent=63 // pred_fallthru
          _
        %s508 = sand.u32 %s40, 1
        %s509 = scalar_lea.sflag [#allocation3], %s508
        %s510 = sand.u32 %s40, 1
        %s511 = smul.addr %s510, 160
        %s512 = scalar_lea.vmem [#allocation2], %s511
        %p513 = pneg %p53
        %p514 = pneg %p50
        %p515 = pneg %p74
        %p516 = pneg %p71
        %p517 = pneg %p95
        %p518 = pneg %p92
        %p519 = pneg %p116
        %p520 = pneg %p113
        %p521 = pneg %p137
        %p522 = pneg %p134
        %p523 = pneg %p158
        %p524 = pneg %p155
        %p525 = pneg %p179
        %p526 = pneg %p176
        %p527 = pneg %p200
        %p528 = pneg %p197
        %p529 = pneg %p221
        %p530 = pneg %p218
        %p531 = pneg %p242
        %p532 = pneg %p239
        %p533 = pneg %p263
        %p534 = pneg %p260
        %p535 = pneg %p289
        %p536 = pneg %p286
        %s537 = sand.u32 %s276, 1
        %s538 = scalar_lea.sflag [#allocation4], %s537
        %s539 = sand.u32 %s276, 1
        %s540 = smul.addr %s539, 160
        %s541 = scalar_lea.vmem [#allocation17], %s540
        %s542 = smul.u32 10, %s32
        %s543 = ssub.s32 38, %s542
        %p544 = scmp.lt.s32.totalorder %s543, 10
        %s545 = scalar_select %p544, %s543, 10
        %s546 = smul.u32 8, %s545
        %s547 = smul.u32 %s546, 2
        %s548 = smul.u32 10, %s32
        %s549 = ssub.s32 38, %s548
        %p550 = scmp.lt.s32.totalorder %s549, 10
        %s551 = scalar_select %p550, %s549, 10
        %s552 = smul.u32 8, %s551
        %s553 = smul.u32 %s552, 2
        %v554 = vld [vmem:[%s462] sm:$0xff]
        %v555 = vld [vmem:[%s462 + $0x8] sm:$0xff]
        %v556 = vld [vmem:[%s462 + $0x10] sm:$0xff]
        %v557 = vld [vmem:[%s462 + $0x18] sm:$0xff]
        %v558 = vld [vmem:[%s462 + $0x20] sm:$0xff]
        %v559 = vld [vmem:[%s462 + $0x28] sm:$0xff]
        %v560 = vld [vmem:[%s462 + $0x30] sm:$0xff]
        %v561 = vld [vmem:[%s462 + $0x38] sm:$0xff]
        %v562 = vld [vmem:[%s462 + $0x40] sm:$0xff]
        %v563 = vld [vmem:[%s462 + $0x48] sm:$0xff]
        %v564 = vld [vmem:[%s462 + $0x50] sm:$0xff]
        %v565 = vld [vmem:[%s462 + $0x58] sm:$0xff]
        %v566 = vld [vmem:[%s462 + $0x60] sm:$0xff]
        %v567 = vld [vmem:[%s462 + $0x68] sm:$0xff]
        %v568 = vld [vmem:[%s462 + $0x70] sm:$0xff]
        %v569 = vld [vmem:[%s462 + $0x78] sm:$0xff]
        %v570 = vld [vmem:[%s462 + $0x80] sm:$0xff]
        %v571 = vld [vmem:[%s462 + $0x88] sm:$0xff]
        %v572 = vld [vmem:[%s462 + $0x90] sm:$0xff]
        %v573 = vld [vmem:[%s462 + $0x98] sm:$0xff]
        %v574 = vpack.c.bf16 %v556, %v554
        %v575 = vpack.c.bf16 %v557, %v555
        %v576 = vpack.c.bf16 %v560, %v558
        %v577 = vpack.c.bf16 %v561, %v559
        %v578 = vpack.c.bf16 %v564, %v562
        %v579 = vpack.c.bf16 %v565, %v563
        %v580 = vpack.c.bf16 %v568, %v566
        %v581 = vpack.c.bf16 %v569, %v567
        %v582 = vpack.c.bf16 %v572, %v570
        %v583 = vpack.c.bf16 %v573, %v571
        %v584 = vld [vmem:[#allocation5] sm:$0xff]
        %v585 = vld [vmem:[#allocation5 + $0x8] sm:$0xff]
        %v586 = vld [vmem:[#allocation5 + $0x10] sm:$0xff]
        %v587 = vld [vmem:[#allocation5 + $0x18] sm:$0xff]
        %v588 = vld [vmem:[#allocation5 + $0x20] sm:$0xff]
        %v589 = vld [vmem:[#allocation5 + $0x28] sm:$0xff]
        %v590 = vld [vmem:[#allocation5 + $0x30] sm:$0xff]
        %v591 = vld [vmem:[#allocation5 + $0x38] sm:$0xff]
        %v592 = vld [vmem:[#allocation5 + $0x40] sm:$0xff]
        %v593 = vld [vmem:[#allocation5 + $0x48] sm:$0xff]
        %v594 = vld [vmem:[#allocation5 + $0x50] sm:$0xff]
        %v595 = vld [vmem:[#allocation5 + $0x58] sm:$0xff]
        %v596 = vld [vmem:[#allocation5 + $0x60] sm:$0xff]
        %v597 = vld [vmem:[#allocation5 + $0x68] sm:$0xff]
        %v598 = vld [vmem:[#allocation5 + $0x70] sm:$0xff]
        %v599 = vld [vmem:[#allocation5 + $0x78] sm:$0xff]
        %v600 = vld [vmem:[#allocation5 + $0x80] sm:$0xff]
        %v601 = vld [vmem:[#allocation5 + $0x88] sm:$0xff]
        %v602 = vld [vmem:[#allocation5 + $0x90] sm:$0xff]
        %v603 = vld [vmem:[#allocation5 + $0x98] sm:$0xff]
        %v604 = vld [vmem:[#allocation5 + $0xa0] sm:$0xff]
        %v605 = vld [vmem:[#allocation5 + $0xa8] sm:$0xff]
        %v606 = vld [vmem:[#allocation5 + $0xb0] sm:$0xff]
        %v607 = vld [vmem:[#allocation5 + $0xb8] sm:$0xff]
        %v608 = vld [vmem:[#allocation5 + $0xc0] sm:$0xff]
        %v609 = vld [vmem:[#allocation5 + $0xc8] sm:$0xff]
        %v610 = vld [vmem:[#allocation5 + $0xd0] sm:$0xff]
        %v611 = vld [vmem:[#allocation5 + $0xd8] sm:$0xff]
        %v612 = vld [vmem:[#allocation5 + $0xe0] sm:$0xff]
        %v613 = vld [vmem:[#allocation5 + $0xe8] sm:$0xff]
        %v614 = vld [vmem:[#allocation5 + $0xf0] sm:$0xff]
        %v615 = vld [vmem:[#allocation5 + $0xf8] sm:$0xff]
        %v616 = vld [vmem:[#allocation5 + $0x100] sm:$0xff]
        %v617 = vld [vmem:[#allocation5 + $0x108] sm:$0xff]
        %v618 = vld [vmem:[#allocation5 + $0x110] sm:$0xff]
        %v619 = vld [vmem:[#allocation5 + $0x118] sm:$0xff]
        %v620 = vld [vmem:[#allocation5 + $0x120] sm:$0xff]
        %v621 = vld [vmem:[#allocation5 + $0x128] sm:$0xff]
        %v622 = vld [vmem:[#allocation5 + $0x130] sm:$0xff]
        %v623 = vld [vmem:[#allocation5 + $0x138] sm:$0xff]
        %v624 = vld [vmem:[#allocation5 + $0x140] sm:$0xff]
        %v625 = vld [vmem:[#allocation5 + $0x148] sm:$0xff]
        %v626 = vld [vmem:[#allocation5 + $0x150] sm:$0xff]
        %v627 = vld [vmem:[#allocation5 + $0x158] sm:$0xff]
        %v628 = vld [vmem:[#allocation5 + $0x160] sm:$0xff]
        %v629 = vld [vmem:[#allocation5 + $0x168] sm:$0xff]
        %v630 = vld [vmem:[#allocation5 + $0x170] sm:$0xff]
        %v631 = vld [vmem:[#allocation5 + $0x178] sm:$0xff]
        %v632 = vld [vmem:[#allocation5 + $0x180] sm:$0xff]
        %v633 = vld [vmem:[#allocation5 + $0x188] sm:$0xff]
        %v634 = vld [vmem:[#allocation5 + $0x190] sm:$0xff]
        %v635 = vld [vmem:[#allocation5 + $0x198] sm:$0xff]
        %v636 = vld [vmem:[#allocation5 + $0x1a0] sm:$0xff]
        %v637 = vld [vmem:[#allocation5 + $0x1a8] sm:$0xff]
        %v638 = vld [vmem:[#allocation5 + $0x1b0] sm:$0xff]
        %v639 = vld [vmem:[#allocation5 + $0x1b8] sm:$0xff]
        %v640 = vld [vmem:[#allocation5 + $0x1c0] sm:$0xff]
        %v641 = vld [vmem:[#allocation5 + $0x1c8] sm:$0xff]
        %v642 = vld [vmem:[#allocation5 + $0x1d0] sm:$0xff]
        %v643 = vld [vmem:[#allocation5 + $0x1d8] sm:$0xff]
        %v644 = vld [vmem:[#allocation5 + $0x1e0] sm:$0xff]
        %v645 = vld [vmem:[#allocation5 + $0x1e8] sm:$0xff]
        %v646 = vld [vmem:[#allocation5 + $0x1f0] sm:$0xff]
        %v647 = vld [vmem:[#allocation5 + $0x1f8] sm:$0xff]
        %v648 = vld [vmem:[%s2] sm:$0xf]
        %v650 = vperm.slane %v648, 0
        %v651 = vperm.slane %v648, 1
        %v652 = vperm.slane %v648, 2
        %v653 = vperm.slane %v648, 3
        %v722 = vunpack.c.l.b16 %v584
        %v723 = vunpack.c.h.b16 %v584
        %v724 = vunpack.c.l.b16 %v585
        %v725 = vunpack.c.h.b16 %v585
        %v726 = vunpack.c.l.b16 %v586
        %v727 = vunpack.c.h.b16 %v586
        %v728 = vunpack.c.l.b16 %v587
        %v729 = vunpack.c.h.b16 %v587
        %v730 = vunpack.c.l.b16 %v588
        %v731 = vunpack.c.h.b16 %v588
        %v732 = vunpack.c.l.b16 %v589
        %v733 = vunpack.c.h.b16 %v589
        %v734 = vunpack.c.l.b16 %v590
        %v735 = vunpack.c.h.b16 %v590
        %v736 = vunpack.c.l.b16 %v591
        %v737 = vunpack.c.h.b16 %v591
        %v738 = vunpack.c.l.b16 %v592
        %v739 = vunpack.c.h.b16 %v592
        %v740 = vunpack.c.l.b16 %v593
        %v741 = vunpack.c.h.b16 %v593
        %v742 = vunpack.c.l.b16 %v594
        %v743 = vunpack.c.h.b16 %v594
        %v744 = vunpack.c.l.b16 %v595
        %v745 = vunpack.c.h.b16 %v595
        %v746 = vunpack.c.l.b16 %v596
        %v747 = vunpack.c.h.b16 %v596
        %v748 = vunpack.c.l.b16 %v597
        %v749 = vunpack.c.h.b16 %v597
        %v750 = vunpack.c.l.b16 %v598
        %v751 = vunpack.c.h.b16 %v598
        %v752 = vunpack.c.l.b16 %v599
        %v753 = vunpack.c.h.b16 %v599
        %v754 = vunpack.c.l.b16 %v600
        %v755 = vunpack.c.h.b16 %v600
        %v756 = vunpack.c.l.b16 %v601
        %v757 = vunpack.c.h.b16 %v601
        %v758 = vunpack.c.l.b16 %v602
        %v759 = vunpack.c.h.b16 %v602
        %v760 = vunpack.c.l.b16 %v603
        %v761 = vunpack.c.h.b16 %v603
        %v762 = vunpack.c.l.b16 %v604
        %v763 = vunpack.c.h.b16 %v604
        %v764 = vunpack.c.l.b16 %v605
        %v765 = vunpack.c.h.b16 %v605
        %v766 = vunpack.c.l.b16 %v606
        %v767 = vunpack.c.h.b16 %v606
        %v768 = vunpack.c.l.b16 %v607
        %v769 = vunpack.c.h.b16 %v607
        %v770 = vunpack.c.l.b16 %v608
        %v771 = vunpack.c.h.b16 %v608
        %v772 = vunpack.c.l.b16 %v609
        %v773 = vunpack.c.h.b16 %v609
        %v774 = vunpack.c.l.b16 %v610
        %v775 = vunpack.c.h.b16 %v610
        %v776 = vunpack.c.l.b16 %v611
        %v777 = vunpack.c.h.b16 %v611
        %v778 = vunpack.c.l.b16 %v612
        %v779 = vunpack.c.h.b16 %v612
        %v780 = vunpack.c.l.b16 %v613
        %v781 = vunpack.c.h.b16 %v613
        %v782 = vunpack.c.l.b16 %v614
        %v783 = vunpack.c.h.b16 %v614
        %v784 = vunpack.c.l.b16 %v615
        %v785 = vunpack.c.h.b16 %v615
        %v786 = vunpack.c.l.b16 %v616
        %v787 = vunpack.c.h.b16 %v616
        %v788 = vunpack.c.l.b16 %v617
        %v789 = vunpack.c.h.b16 %v617
        %v790 = vunpack.c.l.b16 %v618
        %v791 = vunpack.c.h.b16 %v618
        %v792 = vunpack.c.l.b16 %v619
        %v793 = vunpack.c.h.b16 %v619
        %v794 = vunpack.c.l.b16 %v620
        %v795 = vunpack.c.h.b16 %v620
        %v796 = vunpack.c.l.b16 %v621
        %v797 = vunpack.c.h.b16 %v621
        %v798 = vunpack.c.l.b16 %v622
        %v799 = vunpack.c.h.b16 %v622
        %v800 = vunpack.c.l.b16 %v623
        %v801 = vunpack.c.h.b16 %v623
        %v802 = vunpack.c.l.b16 %v624
        %v803 = vunpack.c.h.b16 %v624
        %v804 = vunpack.c.l.b16 %v625
        %v805 = vunpack.c.h.b16 %v625
        %v806 = vunpack.c.l.b16 %v626
        %v807 = vunpack.c.h.b16 %v626
        %v808 = vunpack.c.l.b16 %v627
        %v809 = vunpack.c.h.b16 %v627
        %v810 = vunpack.c.l.b16 %v628
        %v811 = vunpack.c.h.b16 %v628
        %v812 = vunpack.c.l.b16 %v629
        %v813 = vunpack.c.h.b16 %v629
        %v814 = vunpack.c.l.b16 %v630
        %v815 = vunpack.c.h.b16 %v630
        %v816 = vunpack.c.l.b16 %v631
        %v817 = vunpack.c.h.b16 %v631
        %v818 = vunpack.c.l.b16 %v632
        %v819 = vunpack.c.h.b16 %v632
        %v820 = vunpack.c.l.b16 %v633
        %v821 = vunpack.c.h.b16 %v633
        %v822 = vunpack.c.l.b16 %v634
        %v823 = vunpack.c.h.b16 %v634
        %v824 = vunpack.c.l.b16 %v635
        %v825 = vunpack.c.h.b16 %v635
        %v826 = vunpack.c.l.b16 %v636
        %v827 = vunpack.c.h.b16 %v636
        %v828 = vunpack.c.l.b16 %v637
        %v829 = vunpack.c.h.b16 %v637
        %v830 = vunpack.c.l.b16 %v638
        %v831 = vunpack.c.h.b16 %v638
        %v832 = vunpack.c.l.b16 %v639
        %v833 = vunpack.c.h.b16 %v639
        %v834 = vunpack.c.l.b16 %v640
        %v835 = vunpack.c.h.b16 %v640
        %v836 = vunpack.c.l.b16 %v641
        %v837 = vunpack.c.h.b16 %v641
        %v838 = vunpack.c.l.b16 %v642
        %v839 = vunpack.c.h.b16 %v642
        %v840 = vunpack.c.l.b16 %v643
        %v841 = vunpack.c.h.b16 %v643
        %v842 = vunpack.c.l.b16 %v644
        %v843 = vunpack.c.h.b16 %v644
        %v844 = vunpack.c.l.b16 %v645
        %v845 = vunpack.c.h.b16 %v645
        %v846 = vunpack.c.l.b16 %v646
        %v847 = vunpack.c.h.b16 %v646
        %v848 = vunpack.c.l.b16 %v647
        %v849 = vunpack.c.h.b16 %v647
        %v850 = vpack.c.b16 %v726, %v722
        %v851 = vpack.c.b16 %v727, %v723
        %v852 = vpack.c.b16 %v728, %v724
        %v853 = vpack.c.b16 %v729, %v725
        %v854 = vpack.c.b16 %v734, %v730
        %v855 = vpack.c.b16 %v735, %v731
        %v856 = vpack.c.b16 %v736, %v732
        %v857 = vpack.c.b16 %v737, %v733
        %v858 = vpack.c.b16 %v742, %v738
        %v859 = vpack.c.b16 %v743, %v739
        %v860 = vpack.c.b16 %v744, %v740
        %v861 = vpack.c.b16 %v745, %v741
        %v862 = vpack.c.b16 %v750, %v746
        %v863 = vpack.c.b16 %v751, %v747
        %v864 = vpack.c.b16 %v752, %v748
        %v865 = vpack.c.b16 %v753, %v749
        %v866 = vpack.c.b16 %v758, %v754
        %v867 = vpack.c.b16 %v759, %v755
        %v868 = vpack.c.b16 %v760, %v756
        %v869 = vpack.c.b16 %v761, %v757
        %v870 = vpack.c.b16 %v766, %v762
        %v871 = vpack.c.b16 %v767, %v763
        %v872 = vpack.c.b16 %v768, %v764
        %v873 = vpack.c.b16 %v769, %v765
        %v874 = vpack.c.b16 %v774, %v770
        %v875 = vpack.c.b16 %v775, %v771
        %v876 = vpack.c.b16 %v776, %v772
        %v877 = vpack.c.b16 %v777, %v773
        %v878 = vpack.c.b16 %v782, %v778
        %v879 = vpack.c.b16 %v783, %v779
        %v880 = vpack.c.b16 %v784, %v780
        %v881 = vpack.c.b16 %v785, %v781
        %v882 = vpack.c.b16 %v790, %v786
        %v883 = vpack.c.b16 %v791, %v787
        %v884 = vpack.c.b16 %v792, %v788
        %v885 = vpack.c.b16 %v793, %v789
        %v886 = vpack.c.b16 %v798, %v794
        %v887 = vpack.c.b16 %v799, %v795
        %v888 = vpack.c.b16 %v800, %v796
        %v889 = vpack.c.b16 %v801, %v797
        %v890 = vpack.c.b16 %v806, %v802
        %v891 = vpack.c.b16 %v807, %v803
        %v892 = vpack.c.b16 %v808, %v804
        %v893 = vpack.c.b16 %v809, %v805
        %v894 = vpack.c.b16 %v814, %v810
        %v895 = vpack.c.b16 %v815, %v811
        %v896 = vpack.c.b16 %v816, %v812
        %v897 = vpack.c.b16 %v817, %v813
        %v898 = vpack.c.b16 %v822, %v818
        %v899 = vpack.c.b16 %v823, %v819
        %v900 = vpack.c.b16 %v824, %v820
        %v901 = vpack.c.b16 %v825, %v821
        %v902 = vpack.c.b16 %v830, %v826
        %v903 = vpack.c.b16 %v831, %v827
        %v904 = vpack.c.b16 %v832, %v828
        %v905 = vpack.c.b16 %v833, %v829
        %v906 = vpack.c.b16 %v838, %v834
        %v907 = vpack.c.b16 %v839, %v835
        %v908 = vpack.c.b16 %v840, %v836
        %v909 = vpack.c.b16 %v841, %v837
        %v910 = vpack.c.b16 %v846, %v842
        %v911 = vpack.c.b16 %v847, %v843
        %v912 = vpack.c.b16 %v848, %v844
        %v913 = vpack.c.b16 %v849, %v845
        %978 = vmatpush.bf16.msra.mxu0 %v878
        %979 = vmatpush.bf16.msra.mxu0 %v874
        %980 = vmatpush.bf16.msra.mxu0 %v870
        %981 = vmatpush.bf16.msra.mxu0 %v866
        %982 = vmatpush.bf16.msra.mxu0 %v862
        %983 = vmatpush.bf16.msra.mxu0 %v858
        %984 = vmatpush.bf16.msra.mxu0 %v854
        %985 = vmatpush.bf16.msra.mxu0 %v850
        %986 = vmatmul.bf16.gmra.mxu0 %v574
        %v987 = vpop.f32.mrf.mxu0
        %v988 = vadd.f32 %v650, %v987
        %v989 = vpop.f32.mrf.mxu0
        %v990 = vadd.f32 %v650, %v989
        %991 = vmatmul.bf16.gmra.mxu0 %v576
        %v992 = vpop.f32.mrf.mxu0
        %v993 = vadd.f32 %v650, %v992
        %v994 = vpop.f32.mrf.mxu0
        %v995 = vadd.f32 %v650, %v994
        %996 = vmatmul.bf16.gmra.mxu0 %v578
        %v997 = vpop.f32.mrf.mxu0
        %v998 = vadd.f32 %v650, %v997
        %v999 = vpop.f32.mrf.mxu0
        %v1000 = vadd.f32 %v650, %v999
        %1001 = vmatmul.bf16.gmra.mxu0 %v580
        %v1002 = vpop.f32.mrf.mxu0
        %v1003 = vadd.f32 %v650, %v1002
        %v1004 = vpop.f32.mrf.mxu0
        %v1005 = vadd.f32 %v650, %v1004
        %1006 = vmatmul.bf16.gmra.mxu0 %v582
        %v1007 = vpop.f32.mrf.mxu0
        %v1008 = vadd.f32 %v650, %v1007
        %v1009 = vpop.f32.mrf.mxu0
        %v1010 = vadd.f32 %v650, %v1009
        %1011 = vdwg.mxu0
        %1012 = vmatpush.bf16.msra.mxu0 %v910
        %1013 = vmatpush.bf16.msra.mxu0 %v906
        %1014 = vmatpush.bf16.msra.mxu0 %v902
        %1015 = vmatpush.bf16.msra.mxu0 %v898
        %1016 = vmatpush.bf16.msra.mxu0 %v894
        %1017 = vmatpush.bf16.msra.mxu0 %v890
        %1018 = vmatpush.bf16.msra.mxu0 %v886
        %1019 = vmatpush.bf16.msra.mxu0 %v882
        %1020 = vmatmul.bf16.gmra.mxu0 %v575
        %v1021 = vpop.f32.mrf.mxu0
        %v1022 = vadd.f32 %v988, %v1021
        %v1023 = vpop.f32.mrf.mxu0
        %v1024 = vadd.f32 %v990, %v1023
        %1025 = vmatmul.bf16.gmra.mxu0 %v577
        %v1026 = vpop.f32.mrf.mxu0
        %v1027 = vadd.f32 %v993, %v1026
        %v1028 = vpop.f32.mrf.mxu0
        %v1029 = vadd.f32 %v995, %v1028
        %1030 = vmatmul.bf16.gmra.mxu0 %v579
        %v1031 = vpop.f32.mrf.mxu0
        %v1032 = vadd.f32 %v998, %v1031
        %v1033 = vpop.f32.mrf.mxu0
        %v1034 = vadd.f32 %v1000, %v1033
        %1035 = vmatmul.bf16.gmra.mxu0 %v581
        %v1036 = vpop.f32.mrf.mxu0
        %v1037 = vadd.f32 %v1003, %v1036
        %v1038 = vpop.f32.mrf.mxu0
        %v1039 = vadd.f32 %v1005, %v1038
        %1040 = vmatmul.bf16.gmra.mxu0 %v583
        %v1041 = vpop.f32.mrf.mxu0
        %v1042 = vadd.f32 %v1008, %v1041
        %v1043 = vpop.f32.mrf.mxu0
        %v1044 = vadd.f32 %v1010, %v1043
        %1045 = vdwg.mxu0
        %1046 = vmatpush.bf16.msra.mxu0 %v879
        %1047 = vmatpush.bf16.msra.mxu0 %v875
        %1048 = vmatpush.bf16.msra.mxu0 %v871
        %1049 = vmatpush.bf16.msra.mxu0 %v867
        %1050 = vmatpush.bf16.msra.mxu0 %v863
        %1051 = vmatpush.bf16.msra.mxu0 %v859
        %1052 = vmatpush.bf16.msra.mxu0 %v855
        %1053 = vmatpush.bf16.msra.mxu0 %v851
        %1054 = vmatmul.bf16.gmra.mxu0 %v574
        %v1055 = vpop.f32.mrf.mxu0
        %v1056 = vadd.f32 %v651, %v1055
        %v1057 = vpop.f32.mrf.mxu0
        %v1058 = vadd.f32 %v651, %v1057
        %1059 = vmatmul.bf16.gmra.mxu0 %v576
        %v1060 = vpop.f32.mrf.mxu0
        %v1061 = vadd.f32 %v651, %v1060
        %v1062 = vpop.f32.mrf.mxu0
        %v1063 = vadd.f32 %v651, %v1062
        %1064 = vmatmul.bf16.gmra.mxu0 %v578
        %v1065 = vpop.f32.mrf.mxu0
        %v1066 = vadd.f32 %v651, %v1065
        %v1067 = vpop.f32.mrf.mxu0
        %v1068 = vadd.f32 %v651, %v1067
        %1069 = vmatmul.bf16.gmra.mxu0 %v580
        %v1070 = vpop.f32.mrf.mxu0
        %v1071 = vadd.f32 %v651, %v1070
        %v1072 = vpop.f32.mrf.mxu0
        %v1073 = vadd.f32 %v651, %v1072
        %1074 = vmatmul.bf16.gmra.mxu0 %v582
        %v1075 = vpop.f32.mrf.mxu0
        %v1076 = vadd.f32 %v651, %v1075
        %v1077 = vpop.f32.mrf.mxu0
        %v1078 = vadd.f32 %v651, %v1077
        %1079 = vdwg.mxu0
        %1080 = vmatpush.bf16.msra.mxu0 %v911
        %1081 = vmatpush.bf16.msra.mxu0 %v907
        %1082 = vmatpush.bf16.msra.mxu0 %v903
        %1083 = vmatpush.bf16.msra.mxu0 %v899
        %1084 = vmatpush.bf16.msra.mxu0 %v895
        %1085 = vmatpush.bf16.msra.mxu0 %v891
        %1086 = vmatpush.bf16.msra.mxu0 %v887
        %1087 = vmatpush.bf16.msra.mxu0 %v883
        %1088 = vmatmul.bf16.gmra.mxu0 %v575
        %v1089 = vpop.f32.mrf.mxu0
        %v1090 = vadd.f32 %v1056, %v1089
        %v1091 = vpop.f32.mrf.mxu0
        %v1092 = vadd.f32 %v1058, %v1091
        %1093 = vmatmul.bf16.gmra.mxu0 %v577
        %v1094 = vpop.f32.mrf.mxu0
        %v1095 = vadd.f32 %v1061, %v1094
        %v1096 = vpop.f32.mrf.mxu0
        %v1097 = vadd.f32 %v1063, %v1096
        %1098 = vmatmul.bf16.gmra.mxu0 %v579
        %v1099 = vpop.f32.mrf.mxu0
        %v1100 = vadd.f32 %v1066, %v1099
        %v1101 = vpop.f32.mrf.mxu0
        %v1102 = vadd.f32 %v1068, %v1101
        %1103 = vmatmul.bf16.gmra.mxu0 %v581
        %v1104 = vpop.f32.mrf.mxu0
        %v1105 = vadd.f32 %v1071, %v1104
        %v1106 = vpop.f32.mrf.mxu0
        %v1107 = vadd.f32 %v1073, %v1106
        %1108 = vmatmul.bf16.gmra.mxu0 %v583
        %v1109 = vpop.f32.mrf.mxu0
        %v1110 = vadd.f32 %v1076, %v1109
        %v1111 = vpop.f32.mrf.mxu0
        %v1112 = vadd.f32 %v1078, %v1111
        %1113 = vdwg.mxu0
        %1114 = vmatpush.bf16.msra.mxu0 %v880
        %1115 = vmatpush.bf16.msra.mxu0 %v876
        %1116 = vmatpush.bf16.msra.mxu0 %v872
        %1117 = vmatpush.bf16.msra.mxu0 %v868
        %1118 = vmatpush.bf16.msra.mxu0 %v864
        %1119 = vmatpush.bf16.msra.mxu0 %v860
        %1120 = vmatpush.bf16.msra.mxu0 %v856
        %1121 = vmatpush.bf16.msra.mxu0 %v852
        %1122 = vmatmul.bf16.gmra.mxu0 %v574
        %v1123 = vpop.f32.mrf.mxu0
        %v1124 = vadd.f32 %v652, %v1123
        %v1125 = vpop.f32.mrf.mxu0
        %v1126 = vadd.f32 %v652, %v1125
        %1127 = vmatmul.bf16.gmra.mxu0 %v576
        %v1128 = vpop.f32.mrf.mxu0
        %v1129 = vadd.f32 %v652, %v1128
        %v1130 = vpop.f32.mrf.mxu0
        %v1131 = vadd.f32 %v652, %v1130
        %1132 = vmatmul.bf16.gmra.mxu0 %v578
        %v1133 = vpop.f32.mrf.mxu0
        %v1134 = vadd.f32 %v652, %v1133
        %v1135 = vpop.f32.mrf.mxu0
        %v1136 = vadd.f32 %v652, %v1135
        %1137 = vmatmul.bf16.gmra.mxu0 %v580
        %v1138 = vpop.f32.mrf.mxu0
        %v1139 = vadd.f32 %v652, %v1138
        %v1140 = vpop.f32.mrf.mxu0
        %v1141 = vadd.f32 %v652, %v1140
        %1142 = vmatmul.bf16.gmra.mxu0 %v582
        %v1143 = vpop.f32.mrf.mxu0
        %v1144 = vadd.f32 %v652, %v1143
        %v1145 = vpop.f32.mrf.mxu0
        %v1146 = vadd.f32 %v652, %v1145
        %1147 = vdwg.mxu0
        %1148 = vmatpush.bf16.msra.mxu0 %v912
        %1149 = vmatpush.bf16.msra.mxu0 %v908
        %1150 = vmatpush.bf16.msra.mxu0 %v904
        %1151 = vmatpush.bf16.msra.mxu0 %v900
        %1152 = vmatpush.bf16.msra.mxu0 %v896
        %1153 = vmatpush.bf16.msra.mxu0 %v892
        %1154 = vmatpush.bf16.msra.mxu0 %v888
        %1155 = vmatpush.bf16.msra.mxu0 %v884
        %1156 = vmatmul.bf16.gmra.mxu0 %v575
        %v1157 = vpop.f32.mrf.mxu0
        %v1158 = vadd.f32 %v1124, %v1157
        %v1159 = vpop.f32.mrf.mxu0
        %v1160 = vadd.f32 %v1126, %v1159
        %1161 = vmatmul.bf16.gmra.mxu0 %v577
        %v1162 = vpop.f32.mrf.mxu0
        %v1163 = vadd.f32 %v1129, %v1162
        %v1164 = vpop.f32.mrf.mxu0
        %v1165 = vadd.f32 %v1131, %v1164
        %1166 = vmatmul.bf16.gmra.mxu0 %v579
        %v1167 = vpop.f32.mrf.mxu0
        %v1168 = vadd.f32 %v1134, %v1167
        %v1169 = vpop.f32.mrf.mxu0
        %v1170 = vadd.f32 %v1136, %v1169
        %1171 = vmatmul.bf16.gmra.mxu0 %v581
        %v1172 = vpop.f32.mrf.mxu0
        %v1173 = vadd.f32 %v1139, %v1172
        %v1174 = vpop.f32.mrf.mxu0
        %v1175 = vadd.f32 %v1141, %v1174
        %1176 = vmatmul.bf16.gmra.mxu0 %v583
        %v1177 = vpop.f32.mrf.mxu0
        %v1178 = vadd.f32 %v1144, %v1177
        %v1179 = vpop.f32.mrf.mxu0
        %v1180 = vadd.f32 %v1146, %v1179
        %1181 = vdwg.mxu0
        %1182 = vmatpush.bf16.msra.mxu0 %v881
        %1183 = vmatpush.bf16.msra.mxu0 %v877
        %1184 = vmatpush.bf16.msra.mxu0 %v873
        %1185 = vmatpush.bf16.msra.mxu0 %v869
        %1186 = vmatpush.bf16.msra.mxu0 %v865
        %1187 = vmatpush.bf16.msra.mxu0 %v861
        %1188 = vmatpush.bf16.msra.mxu0 %v857
        %1189 = vmatpush.bf16.msra.mxu0 %v853
        %1190 = vmatmul.bf16.gmra.mxu0 %v574
        %v1191 = vpop.f32.mrf.mxu0
        %v1192 = vadd.f32 %v653, %v1191
        %v1193 = vpop.f32.mrf.mxu0
        %v1194 = vadd.f32 %v653, %v1193
        %1195 = vmatmul.bf16.gmra.mxu0 %v576
        %v1196 = vpop.f32.mrf.mxu0
        %v1197 = vadd.f32 %v653, %v1196
        %v1198 = vpop.f32.mrf.mxu0
        %v1199 = vadd.f32 %v653, %v1198
        %1200 = vmatmul.bf16.gmra.mxu0 %v578
        %v1201 = vpop.f32.mrf.mxu0
        %v1202 = vadd.f32 %v653, %v1201
        %v1203 = vpop.f32.mrf.mxu0
        %v1204 = vadd.f32 %v653, %v1203
        %1205 = vmatmul.bf16.gmra.mxu0 %v580
        %v1206 = vpop.f32.mrf.mxu0
        %v1207 = vadd.f32 %v653, %v1206
        %v1208 = vpop.f32.mrf.mxu0
        %v1209 = vadd.f32 %v653, %v1208
        %1210 = vmatmul.bf16.gmra.mxu0 %v582
        %v1211 = vpop.f32.mrf.mxu0
        %v1212 = vadd.f32 %v653, %v1211
        %v1213 = vpop.f32.mrf.mxu0
        %v1214 = vadd.f32 %v653, %v1213
        %1215 = vdwg.mxu0
        %1216 = vmatpush.bf16.msra.mxu0 %v913
        %1217 = vmatpush.bf16.msra.mxu0 %v909
        %1218 = vmatpush.bf16.msra.mxu0 %v905
        %1219 = vmatpush.bf16.msra.mxu0 %v901
        %1220 = vmatpush.bf16.msra.mxu0 %v897
        %1221 = vmatpush.bf16.msra.mxu0 %v893
        %1222 = vmatpush.bf16.msra.mxu0 %v889
        %1223 = vmatpush.bf16.msra.mxu0 %v885
        %1224 = vmatmul.bf16.gmra.mxu0 %v575
        %v1225 = vpop.f32.mrf.mxu0
        %v1226 = vadd.f32 %v1192, %v1225
        %v1227 = vpop.f32.mrf.mxu0
        %v1228 = vadd.f32 %v1194, %v1227
        %1229 = vmatmul.bf16.gmra.mxu0 %v577
        %v1230 = vpop.f32.mrf.mxu0
        %v1231 = vadd.f32 %v1197, %v1230
        %v1232 = vpop.f32.mrf.mxu0
        %v1233 = vadd.f32 %v1199, %v1232
        %1234 = vmatmul.bf16.gmra.mxu0 %v579
        %v1235 = vpop.f32.mrf.mxu0
        %v1236 = vadd.f32 %v1202, %v1235
        %v1237 = vpop.f32.mrf.mxu0
        %v1238 = vadd.f32 %v1204, %v1237
        %1239 = vmatmul.bf16.gmra.mxu0 %v581
        %v1240 = vpop.f32.mrf.mxu0
        %v1241 = vadd.f32 %v1207, %v1240
        %v1242 = vpop.f32.mrf.mxu0
        %v1243 = vadd.f32 %v1209, %v1242
        %1244 = vmatmul.bf16.gmra.mxu0 %v583
        %v1245 = vpop.f32.mrf.mxu0
        %v1246 = vadd.f32 %v1212, %v1245
        %v1247 = vpop.f32.mrf.mxu0
        %v1248 = vadd.f32 %v1214, %v1247
        %1249 = vdwg.mxu0
        %v1250 = vmax.f32 %v1022, 0.0
        %v1251 = vmax.f32 %v1090, 0.0
        %v1252 = vmax.f32 %v1158, 0.0
        %v1253 = vmax.f32 %v1226, 0.0
        %v1254 = vmax.f32 %v1024, 0.0
        %v1255 = vmax.f32 %v1092, 0.0
        %v1256 = vmax.f32 %v1160, 0.0
        %v1257 = vmax.f32 %v1228, 0.0
        %v1258 = vmax.f32 %v1027, 0.0
        %v1259 = vmax.f32 %v1095, 0.0
        %v1260 = vmax.f32 %v1163, 0.0
        %v1261 = vmax.f32 %v1231, 0.0
        %v1262 = vmax.f32 %v1029, 0.0
        %v1263 = vmax.f32 %v1097, 0.0
        %v1264 = vmax.f32 %v1165, 0.0
        %v1265 = vmax.f32 %v1233, 0.0
        %v1266 = vmax.f32 %v1032, 0.0
        %v1267 = vmax.f32 %v1100, 0.0
        %v1268 = vmax.f32 %v1168, 0.0
        %v1269 = vmax.f32 %v1236, 0.0
        %v1270 = vmax.f32 %v1034, 0.0
        %v1271 = vmax.f32 %v1102, 0.0
        %v1272 = vmax.f32 %v1170, 0.0
        %v1273 = vmax.f32 %v1238, 0.0
        %v1274 = vmax.f32 %v1037, 0.0
        %v1275 = vmax.f32 %v1105, 0.0
        %v1276 = vmax.f32 %v1173, 0.0
        %v1277 = vmax.f32 %v1241, 0.0
        %v1278 = vmax.f32 %v1039, 0.0
        %v1279 = vmax.f32 %v1107, 0.0
        %v1280 = vmax.f32 %v1175, 0.0
        %v1281 = vmax.f32 %v1243, 0.0
        %v1282 = vmax.f32 %v1042, 0.0
        %v1283 = vmax.f32 %v1110, 0.0
        %v1284 = vmax.f32 %v1178, 0.0
        %v1285 = vmax.f32 %v1246, 0.0
        %v1286 = vmax.f32 %v1044, 0.0
        %v1287 = vmax.f32 %v1112, 0.0
        %v1288 = vmax.f32 %v1180, 0.0
        %v1289 = vmax.f32 %v1248, 0.0
        %v1290 = vpack.c.bf16 %v1254, %v1250
        %v1291 = vpack.c.bf16 %v1255, %v1251
        %v1292 = vpack.c.bf16 %v1256, %v1252
        %v1293 = vpack.c.bf16 %v1257, %v1253
        %v1294 = vpack.c.bf16 %v1262, %v1258
        %v1295 = vpack.c.bf16 %v1263, %v1259
        %v1296 = vpack.c.bf16 %v1264, %v1260
        %v1297 = vpack.c.bf16 %v1265, %v1261
        %v1298 = vpack.c.bf16 %v1270, %v1266
        %v1299 = vpack.c.bf16 %v1271, %v1267
        %v1300 = vpack.c.bf16 %v1272, %v1268
        %v1301 = vpack.c.bf16 %v1273, %v1269
        %v1302 = vpack.c.bf16 %v1278, %v1274
        %v1303 = vpack.c.bf16 %v1279, %v1275
        %v1304 = vpack.c.bf16 %v1280, %v1276
        %v1305 = vpack.c.bf16 %v1281, %v1277
        %v1306 = vpack.c.bf16 %v1286, %v1282
        %v1307 = vpack.c.bf16 %v1287, %v1283
        %v1308 = vpack.c.bf16 %v1288, %v1284
        %v1309 = vpack.c.bf16 %v1289, %v1285
        %v1310 = vld [vmem:[#allocation7] sm:$0xff]
        %v1311 = vld [vmem:[#allocation7 + $0x8] sm:$0xff]
        %v1312 = vld [vmem:[#allocation7 + $0x10] sm:$0xff]
        %v1313 = vld [vmem:[#allocation7 + $0x18] sm:$0xff]
        %v1314 = vld [vmem:[#allocation7 + $0x20] sm:$0xff]
        %v1315 = vld [vmem:[#allocation7 + $0x28] sm:$0xff]
        %v1316 = vld [vmem:[#allocation7 + $0x30] sm:$0xff]
        %v1317 = vld [vmem:[#allocation7 + $0x38] sm:$0xff]
        %v1318 = vld [vmem:[#allocation7 + $0x40] sm:$0xff]
        %v1319 = vld [vmem:[#allocation7 + $0x48] sm:$0xff]
        %v1320 = vld [vmem:[#allocation7 + $0x50] sm:$0xff]
        %v1321 = vld [vmem:[#allocation7 + $0x58] sm:$0xff]
        %v1322 = vld [vmem:[#allocation7 + $0x60] sm:$0xff]
        %v1323 = vld [vmem:[#allocation7 + $0x68] sm:$0xff]
        %v1324 = vld [vmem:[#allocation7 + $0x70] sm:$0xff]
        %v1325 = vld [vmem:[#allocation7 + $0x78] sm:$0xff]
        %v1326 = vld [vmem:[#allocation7 + $0x80] sm:$0xff]
        %v1327 = vld [vmem:[#allocation7 + $0x88] sm:$0xff]
        %v1328 = vld [vmem:[#allocation7 + $0x90] sm:$0xff]
        %v1329 = vld [vmem:[#allocation7 + $0x98] sm:$0xff]
        %v1330 = vld [vmem:[#allocation7 + $0xa0] sm:$0xff]
        %v1331 = vld [vmem:[#allocation7 + $0xa8] sm:$0xff]
        %v1332 = vld [vmem:[#allocation7 + $0xb0] sm:$0xff]
        %v1333 = vld [vmem:[#allocation7 + $0xb8] sm:$0xff]
        %v1334 = vld [vmem:[#allocation7 + $0xc0] sm:$0xff]
        %v1335 = vld [vmem:[#allocation7 + $0xc8] sm:$0xff]
        %v1336 = vld [vmem:[#allocation7 + $0xd0] sm:$0xff]
        %v1337 = vld [vmem:[#allocation7 + $0xd8] sm:$0xff]
        %v1338 = vld [vmem:[#allocation7 + $0xe0] sm:$0xff]
        %v1339 = vld [vmem:[#allocation7 + $0xe8] sm:$0xff]
        %v1340 = vld [vmem:[#allocation7 + $0xf0] sm:$0xff]
        %v1341 = vld [vmem:[#allocation7 + $0xf8] sm:$0xff]
        %v1342 = vld [vmem:[#allocation7 + $0x100] sm:$0xff]
        %v1343 = vld [vmem:[#allocation7 + $0x108] sm:$0xff]
        %v1344 = vld [vmem:[#allocation7 + $0x110] sm:$0xff]
        %v1345 = vld [vmem:[#allocation7 + $0x118] sm:$0xff]
        %v1346 = vld [vmem:[#allocation7 + $0x120] sm:$0xff]
        %v1347 = vld [vmem:[#allocation7 + $0x128] sm:$0xff]
        %v1348 = vld [vmem:[#allocation7 + $0x130] sm:$0xff]
        %v1349 = vld [vmem:[#allocation7 + $0x138] sm:$0xff]
        %v1350 = vld [vmem:[#allocation7 + $0x140] sm:$0xff]
        %v1351 = vld [vmem:[#allocation7 + $0x148] sm:$0xff]
        %v1352 = vld [vmem:[#allocation7 + $0x150] sm:$0xff]
        %v1353 = vld [vmem:[#allocation7 + $0x158] sm:$0xff]
        %v1354 = vld [vmem:[#allocation7 + $0x160] sm:$0xff]
        %v1355 = vld [vmem:[#allocation7 + $0x168] sm:$0xff]
        %v1356 = vld [vmem:[#allocation7 + $0x170] sm:$0xff]
        %v1357 = vld [vmem:[#allocation7 + $0x178] sm:$0xff]
        %v1358 = vld [vmem:[#allocation7 + $0x180] sm:$0xff]
        %v1359 = vld [vmem:[#allocation7 + $0x188] sm:$0xff]
        %v1360 = vld [vmem:[#allocation7 + $0x190] sm:$0xff]
        %v1361 = vld [vmem:[#allocation7 + $0x198] sm:$0xff]
        %v1362 = vld [vmem:[#allocation7 + $0x1a0] sm:$0xff]
        %v1363 = vld [vmem:[#allocation7 + $0x1a8] sm:$0xff]
        %v1364 = vld [vmem:[#allocation7 + $0x1b0] sm:$0xff]
        %v1365 = vld [vmem:[#allocation7 + $0x1b8] sm:$0xff]
        %v1366 = vld [vmem:[#allocation7 + $0x1c0] sm:$0xff]
        %v1367 = vld [vmem:[#allocation7 + $0x1c8] sm:$0xff]
        %v1368 = vld [vmem:[#allocation7 + $0x1d0] sm:$0xff]
        %v1369 = vld [vmem:[#allocation7 + $0x1d8] sm:$0xff]
        %v1370 = vld [vmem:[#allocation7 + $0x1e0] sm:$0xff]
        %v1371 = vld [vmem:[#allocation7 + $0x1e8] sm:$0xff]
        %v1372 = vld [vmem:[#allocation7 + $0x1f0] sm:$0xff]
        %v1373 = vld [vmem:[#allocation7 + $0x1f8] sm:$0xff]
        %v1374 = vld [vmem:[#allocation8] sm:$0x3]
        %v1376 = vperm.slane %v1374, 0
        %v1377 = vperm.slane %v1374, 1
        %v1444 = vunpack.c.l.b16 %v1310
        %v1445 = vunpack.c.h.b16 %v1310
        %v1446 = vunpack.c.l.b16 %v1311
        %v1447 = vunpack.c.h.b16 %v1311
        %v1448 = vunpack.c.l.b16 %v1312
        %v1449 = vunpack.c.h.b16 %v1312
        %v1450 = vunpack.c.l.b16 %v1313
        %v1451 = vunpack.c.h.b16 %v1313
        %v1452 = vunpack.c.l.b16 %v1314
        %v1453 = vunpack.c.h.b16 %v1314
        %v1454 = vunpack.c.l.b16 %v1315
        %v1455 = vunpack.c.h.b16 %v1315
        %v1456 = vunpack.c.l.b16 %v1316
        %v1457 = vunpack.c.h.b16 %v1316
        %v1458 = vunpack.c.l.b16 %v1317
        %v1459 = vunpack.c.h.b16 %v1317
        %v1460 = vunpack.c.l.b16 %v1318
        %v1461 = vunpack.c.h.b16 %v1318
        %v1462 = vunpack.c.l.b16 %v1319
        %v1463 = vunpack.c.h.b16 %v1319
        %v1464 = vunpack.c.l.b16 %v1320
        %v1465 = vunpack.c.h.b16 %v1320
        %v1466 = vunpack.c.l.b16 %v1321
        %v1467 = vunpack.c.h.b16 %v1321
        %v1468 = vunpack.c.l.b16 %v1322
        %v1469 = vunpack.c.h.b16 %v1322
        %v1470 = vunpack.c.l.b16 %v1323
        %v1471 = vunpack.c.h.b16 %v1323
        %v1472 = vunpack.c.l.b16 %v1324
        %v1473 = vunpack.c.h.b16 %v1324
        %v1474 = vunpack.c.l.b16 %v1325
        %v1475 = vunpack.c.h.b16 %v1325
        %v1476 = vunpack.c.l.b16 %v1326
        %v1477 = vunpack.c.h.b16 %v1326
        %v1478 = vunpack.c.l.b16 %v1327
        %v1479 = vunpack.c.h.b16 %v1327
        %v1480 = vunpack.c.l.b16 %v1328
        %v1481 = vunpack.c.h.b16 %v1328
        %v1482 = vunpack.c.l.b16 %v1329
        %v1483 = vunpack.c.h.b16 %v1329
        %v1484 = vunpack.c.l.b16 %v1330
        %v1485 = vunpack.c.h.b16 %v1330
        %v1486 = vunpack.c.l.b16 %v1331
        %v1487 = vunpack.c.h.b16 %v1331
        %v1488 = vunpack.c.l.b16 %v1332
        %v1489 = vunpack.c.h.b16 %v1332
        %v1490 = vunpack.c.l.b16 %v1333
        %v1491 = vunpack.c.h.b16 %v1333
        %v1492 = vunpack.c.l.b16 %v1334
        %v1493 = vunpack.c.h.b16 %v1334
        %v1494 = vunpack.c.l.b16 %v1335
        %v1495 = vunpack.c.h.b16 %v1335
        %v1496 = vunpack.c.l.b16 %v1336
        %v1497 = vunpack.c.h.b16 %v1336
        %v1498 = vunpack.c.l.b16 %v1337
        %v1499 = vunpack.c.h.b16 %v1337
        %v1500 = vunpack.c.l.b16 %v1338
        %v1501 = vunpack.c.h.b16 %v1338
        %v1502 = vunpack.c.l.b16 %v1339
        %v1503 = vunpack.c.h.b16 %v1339
        %v1504 = vunpack.c.l.b16 %v1340
        %v1505 = vunpack.c.h.b16 %v1340
        %v1506 = vunpack.c.l.b16 %v1341
        %v1507 = vunpack.c.h.b16 %v1341
        %v1508 = vunpack.c.l.b16 %v1342
        %v1509 = vunpack.c.h.b16 %v1342
        %v1510 = vunpack.c.l.b16 %v1343
        %v1511 = vunpack.c.h.b16 %v1343
        %v1512 = vunpack.c.l.b16 %v1344
        %v1513 = vunpack.c.h.b16 %v1344
        %v1514 = vunpack.c.l.b16 %v1345
        %v1515 = vunpack.c.h.b16 %v1345
        %v1516 = vunpack.c.l.b16 %v1346
        %v1517 = vunpack.c.h.b16 %v1346
        %v1518 = vunpack.c.l.b16 %v1347
        %v1519 = vunpack.c.h.b16 %v1347
        %v1520 = vunpack.c.l.b16 %v1348
        %v1521 = vunpack.c.h.b16 %v1348
        %v1522 = vunpack.c.l.b16 %v1349
        %v1523 = vunpack.c.h.b16 %v1349
        %v1524 = vunpack.c.l.b16 %v1350
        %v1525 = vunpack.c.h.b16 %v1350
        %v1526 = vunpack.c.l.b16 %v1351
        %v1527 = vunpack.c.h.b16 %v1351
        %v1528 = vunpack.c.l.b16 %v1352
        %v1529 = vunpack.c.h.b16 %v1352
        %v1530 = vunpack.c.l.b16 %v1353
        %v1531 = vunpack.c.h.b16 %v1353
        %v1532 = vunpack.c.l.b16 %v1354
        %v1533 = vunpack.c.h.b16 %v1354
        %v1534 = vunpack.c.l.b16 %v1355
        %v1535 = vunpack.c.h.b16 %v1355
        %v1536 = vunpack.c.l.b16 %v1356
        %v1537 = vunpack.c.h.b16 %v1356
        %v1538 = vunpack.c.l.b16 %v1357
        %v1539 = vunpack.c.h.b16 %v1357
        %v1540 = vunpack.c.l.b16 %v1358
        %v1541 = vunpack.c.h.b16 %v1358
        %v1542 = vunpack.c.l.b16 %v1359
        %v1543 = vunpack.c.h.b16 %v1359
        %v1544 = vunpack.c.l.b16 %v1360
        %v1545 = vunpack.c.h.b16 %v1360
        %v1546 = vunpack.c.l.b16 %v1361
        %v1547 = vunpack.c.h.b16 %v1361
        %v1548 = vunpack.c.l.b16 %v1362
        %v1549 = vunpack.c.h.b16 %v1362
        %v1550 = vunpack.c.l.b16 %v1363
        %v1551 = vunpack.c.h.b16 %v1363
        %v1552 = vunpack.c.l.b16 %v1364
        %v1553 = vunpack.c.h.b16 %v1364
        %v1554 = vunpack.c.l.b16 %v1365
        %v1555 = vunpack.c.h.b16 %v1365
        %v1556 = vunpack.c.l.b16 %v1366
        %v1557 = vunpack.c.h.b16 %v1366
        %v1558 = vunpack.c.l.b16 %v1367
        %v1559 = vunpack.c.h.b16 %v1367
        %v1560 = vunpack.c.l.b16 %v1368
        %v1561 = vunpack.c.h.b16 %v1368
        %v1562 = vunpack.c.l.b16 %v1369
        %v1563 = vunpack.c.h.b16 %v1369
        %v1564 = vunpack.c.l.b16 %v1370
        %v1565 = vunpack.c.h.b16 %v1370
        %v1566 = vunpack.c.l.b16 %v1371
        %v1567 = vunpack.c.h.b16 %v1371
        %v1568 = vunpack.c.l.b16 %v1372
        %v1569 = vunpack.c.h.b16 %v1372
        %v1570 = vunpack.c.l.b16 %v1373
        %v1571 = vunpack.c.h.b16 %v1373
        %v1572 = vpack.c.b16 %v1446, %v1444
        %v1573 = vpack.c.b16 %v1447, %v1445
        %v1574 = vpack.c.b16 %v1450, %v1448
        %v1575 = vpack.c.b16 %v1451, %v1449
        %v1576 = vpack.c.b16 %v1454, %v1452
        %v1577 = vpack.c.b16 %v1455, %v1453
        %v1578 = vpack.c.b16 %v1458, %v1456
        %v1579 = vpack.c.b16 %v1459, %v1457
        %v1580 = vpack.c.b16 %v1462, %v1460
        %v1581 = vpack.c.b16 %v1463, %v1461
        %v1582 = vpack.c.b16 %v1466, %v1464
        %v1583 = vpack.c.b16 %v1467, %v1465
        %v1584 = vpack.c.b16 %v1470, %v1468
        %v1585 = vpack.c.b16 %v1471, %v1469
        %v1586 = vpack.c.b16 %v1474, %v1472
        %v1587 = vpack.c.b16 %v1475, %v1473
        %v1588 = vpack.c.b16 %v1478, %v1476
        %v1589 = vpack.c.b16 %v1479, %v1477
        %v1590 = vpack.c.b16 %v1482, %v1480
        %v1591 = vpack.c.b16 %v1483, %v1481
        %v1592 = vpack.c.b16 %v1486, %v1484
        %v1593 = vpack.c.b16 %v1487, %v1485
        %v1594 = vpack.c.b16 %v1490, %v1488
        %v1595 = vpack.c.b16 %v1491, %v1489
        %v1596 = vpack.c.b16 %v1494, %v1492
        %v1597 = vpack.c.b16 %v1495, %v1493
        %v1598 = vpack.c.b16 %v1498, %v1496
        %v1599 = vpack.c.b16 %v1499, %v1497
        %v1600 = vpack.c.b16 %v1502, %v1500
        %v1601 = vpack.c.b16 %v1503, %v1501
        %v1602 = vpack.c.b16 %v1506, %v1504
        %v1603 = vpack.c.b16 %v1507, %v1505
        %v1604 = vpack.c.b16 %v1510, %v1508
        %v1605 = vpack.c.b16 %v1511, %v1509
        %v1606 = vpack.c.b16 %v1514, %v1512
        %v1607 = vpack.c.b16 %v1515, %v1513
        %v1608 = vpack.c.b16 %v1518, %v1516
        %v1609 = vpack.c.b16 %v1519, %v1517
        %v1610 = vpack.c.b16 %v1522, %v1520
        %v1611 = vpack.c.b16 %v1523, %v1521
        %v1612 = vpack.c.b16 %v1526, %v1524
        %v1613 = vpack.c.b16 %v1527, %v1525
        %v1614 = vpack.c.b16 %v1530, %v1528
        %v1615 = vpack.c.b16 %v1531, %v1529
        %v1616 = vpack.c.b16 %v1534, %v1532
        %v1617 = vpack.c.b16 %v1535, %v1533
        %v1618 = vpack.c.b16 %v1538, %v1536
        %v1619 = vpack.c.b16 %v1539, %v1537
        %v1620 = vpack.c.b16 %v1542, %v1540
        %v1621 = vpack.c.b16 %v1543, %v1541
        %v1622 = vpack.c.b16 %v1546, %v1544
        %v1623 = vpack.c.b16 %v1547, %v1545
        %v1624 = vpack.c.b16 %v1550, %v1548
        %v1625 = vpack.c.b16 %v1551, %v1549
        %v1626 = vpack.c.b16 %v1554, %v1552
        %v1627 = vpack.c.b16 %v1555, %v1553
        %v1628 = vpack.c.b16 %v1558, %v1556
        %v1629 = vpack.c.b16 %v1559, %v1557
        %v1630 = vpack.c.b16 %v1562, %v1560
        %v1631 = vpack.c.b16 %v1563, %v1561
        %v1632 = vpack.c.b16 %v1566, %v1564
        %v1633 = vpack.c.b16 %v1567, %v1565
        %v1634 = vpack.c.b16 %v1570, %v1568
        %v1635 = vpack.c.b16 %v1571, %v1569
        %1700 = vmatpush.bf16.msra.mxu0 %v1586
        %1701 = vmatpush.bf16.msra.mxu0 %v1584
        %1702 = vmatpush.bf16.msra.mxu0 %v1582
        %1703 = vmatpush.bf16.msra.mxu0 %v1580
        %1704 = vmatpush.bf16.msra.mxu0 %v1578
        %1705 = vmatpush.bf16.msra.mxu0 %v1576
        %1706 = vmatpush.bf16.msra.mxu0 %v1574
        %1707 = vmatpush.bf16.msra.mxu0 %v1572
        %1708 = vmatmul.bf16.gmra.mxu0 %v1290
        %v1709 = vpop.f32.mrf.mxu0
        %v1710 = vadd.f32 %v1376, %v1709
        %v1711 = vpop.f32.mrf.mxu0
        %v1712 = vadd.f32 %v1376, %v1711
        %1713 = vmatmul.bf16.gmra.mxu0 %v1294
        %v1714 = vpop.f32.mrf.mxu0
        %v1715 = vadd.f32 %v1376, %v1714
        %v1716 = vpop.f32.mrf.mxu0
        %v1717 = vadd.f32 %v1376, %v1716
        %1718 = vmatmul.bf16.gmra.mxu0 %v1298
        %v1719 = vpop.f32.mrf.mxu0
        %v1720 = vadd.f32 %v1376, %v1719
        %v1721 = vpop.f32.mrf.mxu0
        %v1722 = vadd.f32 %v1376, %v1721
        %1723 = vmatmul.bf16.gmra.mxu0 %v1302
        %v1724 = vpop.f32.mrf.mxu0
        %v1725 = vadd.f32 %v1376, %v1724
        %v1726 = vpop.f32.mrf.mxu0
        %v1727 = vadd.f32 %v1376, %v1726
        %1728 = vmatmul.bf16.gmra.mxu0 %v1306
        %v1729 = vpop.f32.mrf.mxu0
        %v1730 = vadd.f32 %v1376, %v1729
        %v1731 = vpop.f32.mrf.mxu0
        %v1732 = vadd.f32 %v1376, %v1731
        %1733 = vdwg.mxu0
        %1734 = vmatpush.bf16.msra.mxu0 %v1602
        %1735 = vmatpush.bf16.msra.mxu0 %v1600
        %1736 = vmatpush.bf16.msra.mxu0 %v1598
        %1737 = vmatpush.bf16.msra.mxu0 %v1596
        %1738 = vmatpush.bf16.msra.mxu0 %v1594
        %1739 = vmatpush.bf16.msra.mxu0 %v1592
        %1740 = vmatpush.bf16.msra.mxu0 %v1590
        %1741 = vmatpush.bf16.msra.mxu0 %v1588
        %1742 = vmatmul.bf16.gmra.mxu0 %v1291
        %v1743 = vpop.f32.mrf.mxu0
        %v1744 = vadd.f32 %v1710, %v1743
        %v1745 = vpop.f32.mrf.mxu0
        %v1746 = vadd.f32 %v1712, %v1745
        %1747 = vmatmul.bf16.gmra.mxu0 %v1295
        %v1748 = vpop.f32.mrf.mxu0
        %v1749 = vadd.f32 %v1715, %v1748
        %v1750 = vpop.f32.mrf.mxu0
        %v1751 = vadd.f32 %v1717, %v1750
        %1752 = vmatmul.bf16.gmra.mxu0 %v1299
        %v1753 = vpop.f32.mrf.mxu0
        %v1754 = vadd.f32 %v1720, %v1753
        %v1755 = vpop.f32.mrf.mxu0
        %v1756 = vadd.f32 %v1722, %v1755
        %1757 = vmatmul.bf16.gmra.mxu0 %v1303
        %v1758 = vpop.f32.mrf.mxu0
        %v1759 = vadd.f32 %v1725, %v1758
        %v1760 = vpop.f32.mrf.mxu0
        %v1761 = vadd.f32 %v1727, %v1760
        %1762 = vmatmul.bf16.gmra.mxu0 %v1307
        %v1763 = vpop.f32.mrf.mxu0
        %v1764 = vadd.f32 %v1730, %v1763
        %v1765 = vpop.f32.mrf.mxu0
        %v1766 = vadd.f32 %v1732, %v1765
        %1767 = vdwg.mxu0
        %1768 = vmatpush.bf16.msra.mxu0 %v1618
        %1769 = vmatpush.bf16.msra.mxu0 %v1616
        %1770 = vmatpush.bf16.msra.mxu0 %v1614
        %1771 = vmatpush.bf16.msra.mxu0 %v1612
        %1772 = vmatpush.bf16.msra.mxu0 %v1610
        %1773 = vmatpush.bf16.msra.mxu0 %v1608
        %1774 = vmatpush.bf16.msra.mxu0 %v1606
        %1775 = vmatpush.bf16.msra.mxu0 %v1604
        %1776 = vmatmul.bf16.gmra.mxu0 %v1292
        %v1777 = vpop.f32.mrf.mxu0
        %v1778 = vadd.f32 %v1744, %v1777
        %v1779 = vpop.f32.mrf.mxu0
        %v1780 = vadd.f32 %v1746, %v1779
        %1781 = vmatmul.bf16.gmra.mxu0 %v1296
        %v1782 = vpop.f32.mrf.mxu0
        %v1783 = vadd.f32 %v1749, %v1782
        %v1784 = vpop.f32.mrf.mxu0
        %v1785 = vadd.f32 %v1751, %v1784
        %1786 = vmatmul.bf16.gmra.mxu0 %v1300
        %v1787 = vpop.f32.mrf.mxu0
        %v1788 = vadd.f32 %v1754, %v1787
        %v1789 = vpop.f32.mrf.mxu0
        %v1790 = vadd.f32 %v1756, %v1789
        %1791 = vmatmul.bf16.gmra.mxu0 %v1304
        %v1792 = vpop.f32.mrf.mxu0
        %v1793 = vadd.f32 %v1759, %v1792
        %v1794 = vpop.f32.mrf.mxu0
        %v1795 = vadd.f32 %v1761, %v1794
        %1796 = vmatmul.bf16.gmra.mxu0 %v1308
        %v1797 = vpop.f32.mrf.mxu0
        %v1798 = vadd.f32 %v1764, %v1797
        %v1799 = vpop.f32.mrf.mxu0
        %v1800 = vadd.f32 %v1766, %v1799
        %1801 = vdwg.mxu0
        %1802 = vmatpush.bf16.msra.mxu0 %v1634
        %1803 = vmatpush.bf16.msra.mxu0 %v1632
        %1804 = vmatpush.bf16.msra.mxu0 %v1630
        %1805 = vmatpush.bf16.msra.mxu0 %v1628
        %1806 = vmatpush.bf16.msra.mxu0 %v1626
        %1807 = vmatpush.bf16.msra.mxu0 %v1624
        %1808 = vmatpush.bf16.msra.mxu0 %v1622
        %1809 = vmatpush.bf16.msra.mxu0 %v1620
        %1810 = vmatmul.bf16.gmra.mxu0 %v1293
        %v1811 = vpop.f32.mrf.mxu0
        %v1812 = vadd.f32 %v1778, %v1811
        %v1813 = vpop.f32.mrf.mxu0
        %v1814 = vadd.f32 %v1780, %v1813
        %1815 = vmatmul.bf16.gmra.mxu0 %v1297
        %v1816 = vpop.f32.mrf.mxu0
        %v1817 = vadd.f32 %v1783, %v1816
        %v1818 = vpop.f32.mrf.mxu0
        %v1819 = vadd.f32 %v1785, %v1818
        %1820 = vmatmul.bf16.gmra.mxu0 %v1301
        %v1821 = vpop.f32.mrf.mxu0
        %v1822 = vadd.f32 %v1788, %v1821
        %v1823 = vpop.f32.mrf.mxu0
        %v1824 = vadd.f32 %v1790, %v1823
        %1825 = vmatmul.bf16.gmra.mxu0 %v1305
        %v1826 = vpop.f32.mrf.mxu0
        %v1827 = vadd.f32 %v1793, %v1826
        %v1828 = vpop.f32.mrf.mxu0
        %v1829 = vadd.f32 %v1795, %v1828
        %1830 = vmatmul.bf16.gmra.mxu0 %v1309
        %v1831 = vpop.f32.mrf.mxu0
        %v1832 = vadd.f32 %v1798, %v1831
        %v1833 = vpop.f32.mrf.mxu0
        %v1834 = vadd.f32 %v1800, %v1833
        %1835 = vdwg.mxu0
        %1836 = vmatpush.bf16.msra.mxu0 %v1587
        %1837 = vmatpush.bf16.msra.mxu0 %v1585
        %1838 = vmatpush.bf16.msra.mxu0 %v1583
        %1839 = vmatpush.bf16.msra.mxu0 %v1581
        %1840 = vmatpush.bf16.msra.mxu0 %v1579
        %1841 = vmatpush.bf16.msra.mxu0 %v1577
        %1842 = vmatpush.bf16.msra.mxu0 %v1575
        %1843 = vmatpush.bf16.msra.mxu0 %v1573
        %1844 = vmatmul.bf16.gmra.mxu0 %v1290
        %v1845 = vpop.f32.mrf.mxu0
        %v1846 = vadd.f32 %v1377, %v1845
        %v1847 = vpop.f32.mrf.mxu0
        %v1848 = vadd.f32 %v1377, %v1847
        %1849 = vmatmul.bf16.gmra.mxu0 %v1294
        %v1850 = vpop.f32.mrf.mxu0
        %v1851 = vadd.f32 %v1377, %v1850
        %v1852 = vpop.f32.mrf.mxu0
        %v1853 = vadd.f32 %v1377, %v1852
        %1854 = vmatmul.bf16.gmra.mxu0 %v1298
        %v1855 = vpop.f32.mrf.mxu0
        %v1856 = vadd.f32 %v1377, %v1855
        %v1857 = vpop.f32.mrf.mxu0
        %v1858 = vadd.f32 %v1377, %v1857
        %1859 = vmatmul.bf16.gmra.mxu0 %v1302
        %v1860 = vpop.f32.mrf.mxu0
        %v1861 = vadd.f32 %v1377, %v1860
        %v1862 = vpop.f32.mrf.mxu0
        %v1863 = vadd.f32 %v1377, %v1862
        %1864 = vmatmul.bf16.gmra.mxu0 %v1306
        %v1865 = vpop.f32.mrf.mxu0
        %v1866 = vadd.f32 %v1377, %v1865
        %v1867 = vpop.f32.mrf.mxu0
        %v1868 = vadd.f32 %v1377, %v1867
        %1869 = vdwg.mxu0
        %1870 = vmatpush.bf16.msra.mxu0 %v1603
        %1871 = vmatpush.bf16.msra.mxu0 %v1601
        %1872 = vmatpush.bf16.msra.mxu0 %v1599
        %1873 = vmatpush.bf16.msra.mxu0 %v1597
        %1874 = vmatpush.bf16.msra.mxu0 %v1595
        %1875 = vmatpush.bf16.msra.mxu0 %v1593
        %1876 = vmatpush.bf16.msra.mxu0 %v1591
        %1877 = vmatpush.bf16.msra.mxu0 %v1589
        %1878 = vmatmul.bf16.gmra.mxu0 %v1291
        %v1879 = vpop.f32.mrf.mxu0
        %v1880 = vadd.f32 %v1846, %v1879
        %v1881 = vpop.f32.mrf.mxu0
        %v1882 = vadd.f32 %v1848, %v1881
        %1883 = vmatmul.bf16.gmra.mxu0 %v1295
        %v1884 = vpop.f32.mrf.mxu0
        %v1885 = vadd.f32 %v1851, %v1884
        %v1886 = vpop.f32.mrf.mxu0
        %v1887 = vadd.f32 %v1853, %v1886
        %1888 = vmatmul.bf16.gmra.mxu0 %v1299
        %v1889 = vpop.f32.mrf.mxu0
        %v1890 = vadd.f32 %v1856, %v1889
        %v1891 = vpop.f32.mrf.mxu0
        %v1892 = vadd.f32 %v1858, %v1891
        %1893 = vmatmul.bf16.gmra.mxu0 %v1303
        %v1894 = vpop.f32.mrf.mxu0
        %v1895 = vadd.f32 %v1861, %v1894
        %v1896 = vpop.f32.mrf.mxu0
        %v1897 = vadd.f32 %v1863, %v1896
        %1898 = vmatmul.bf16.gmra.mxu0 %v1307
        %v1899 = vpop.f32.mrf.mxu0
        %v1900 = vadd.f32 %v1866, %v1899
        %v1901 = vpop.f32.mrf.mxu0
        %v1902 = vadd.f32 %v1868, %v1901
        %1903 = vdwg.mxu0
        %1904 = vmatpush.bf16.msra.mxu0 %v1619
        %1905 = vmatpush.bf16.msra.mxu0 %v1617
        %1906 = vmatpush.bf16.msra.mxu0 %v1615
        %1907 = vmatpush.bf16.msra.mxu0 %v1613
        %1908 = vmatpush.bf16.msra.mxu0 %v1611
        %1909 = vmatpush.bf16.msra.mxu0 %v1609
        %1910 = vmatpush.bf16.msra.mxu0 %v1607
        %1911 = vmatpush.bf16.msra.mxu0 %v1605
        %1912 = vmatmul.bf16.gmra.mxu0 %v1292
        %v1913 = vpop.f32.mrf.mxu0
        %v1914 = vadd.f32 %v1880, %v1913
        %v1915 = vpop.f32.mrf.mxu0
        %v1916 = vadd.f32 %v1882, %v1915
        %1917 = vmatmul.bf16.gmra.mxu0 %v1296
        %v1918 = vpop.f32.mrf.mxu0
        %v1919 = vadd.f32 %v1885, %v1918
        %v1920 = vpop.f32.mrf.mxu0
        %v1921 = vadd.f32 %v1887, %v1920
        %1922 = vmatmul.bf16.gmra.mxu0 %v1300
        %v1923 = vpop.f32.mrf.mxu0
        %v1924 = vadd.f32 %v1890, %v1923
        %v1925 = vpop.f32.mrf.mxu0
        %v1926 = vadd.f32 %v1892, %v1925
        %1927 = vmatmul.bf16.gmra.mxu0 %v1304
        %v1928 = vpop.f32.mrf.mxu0
        %v1929 = vadd.f32 %v1895, %v1928
        %v1930 = vpop.f32.mrf.mxu0
        %v1931 = vadd.f32 %v1897, %v1930
        %1932 = vmatmul.bf16.gmra.mxu0 %v1308
        %v1933 = vpop.f32.mrf.mxu0
        %v1934 = vadd.f32 %v1900, %v1933
        %v1935 = vpop.f32.mrf.mxu0
        %v1936 = vadd.f32 %v1902, %v1935
        %1937 = vdwg.mxu0
        %1938 = vmatpush.bf16.msra.mxu0 %v1635
        %1939 = vmatpush.bf16.msra.mxu0 %v1633
        %1940 = vmatpush.bf16.msra.mxu0 %v1631
        %1941 = vmatpush.bf16.msra.mxu0 %v1629
        %1942 = vmatpush.bf16.msra.mxu0 %v1627
        %1943 = vmatpush.bf16.msra.mxu0 %v1625
        %1944 = vmatpush.bf16.msra.mxu0 %v1623
        %1945 = vmatpush.bf16.msra.mxu0 %v1621
        %1946 = vmatmul.bf16.gmra.mxu0 %v1293
        %v1947 = vpop.f32.mrf.mxu0
        %v1948 = vadd.f32 %v1914, %v1947
        %v1949 = vpop.f32.mrf.mxu0
        %v1950 = vadd.f32 %v1916, %v1949
        %1951 = vmatmul.bf16.gmra.mxu0 %v1297
        %v1952 = vpop.f32.mrf.mxu0
        %v1953 = vadd.f32 %v1919, %v1952
        %v1954 = vpop.f32.mrf.mxu0
        %v1955 = vadd.f32 %v1921, %v1954
        %1956 = vmatmul.bf16.gmra.mxu0 %v1301
        %v1957 = vpop.f32.mrf.mxu0
        %v1958 = vadd.f32 %v1924, %v1957
        %v1959 = vpop.f32.mrf.mxu0
        %v1960 = vadd.f32 %v1926, %v1959
        %1961 = vmatmul.bf16.gmra.mxu0 %v1305
        %v1962 = vpop.f32.mrf.mxu0
        %v1963 = vadd.f32 %v1929, %v1962
        %v1964 = vpop.f32.mrf.mxu0
        %v1965 = vadd.f32 %v1931, %v1964
        %1966 = vmatmul.bf16.gmra.mxu0 %v1309
        %v1967 = vpop.f32.mrf.mxu0
        %v1968 = vadd.f32 %v1934, %v1967
        %v1969 = vpop.f32.mrf.mxu0
        %v1970 = vadd.f32 %v1936, %v1969
        %1971 = vdwg.mxu0
        %v1972 = vmax.f32 %v1812, 0.0
        %v1973 = vmax.f32 %v1948, 0.0
        %v1974 = vmax.f32 %v1814, 0.0
        %v1975 = vmax.f32 %v1950, 0.0
        %v1976 = vmax.f32 %v1817, 0.0
        %v1977 = vmax.f32 %v1953, 0.0
        %v1978 = vmax.f32 %v1819, 0.0
        %v1979 = vmax.f32 %v1955, 0.0
        %v1980 = vmax.f32 %v1822, 0.0
        %v1981 = vmax.f32 %v1958, 0.0
        %v1982 = vmax.f32 %v1824, 0.0
        %v1983 = vmax.f32 %v1960, 0.0
        %v1984 = vmax.f32 %v1827, 0.0
        %v1985 = vmax.f32 %v1963, 0.0
        %v1986 = vmax.f32 %v1829, 0.0
        %v1987 = vmax.f32 %v1965, 0.0
        %v1988 = vmax.f32 %v1832, 0.0
        %v1989 = vmax.f32 %v1968, 0.0
        %v1990 = vmax.f32 %v1834, 0.0
        %v1991 = vmax.f32 %v1970, 0.0
        %v1992 = vpack.c.bf16 %v1974, %v1972
        %v1993 = vpack.c.bf16 %v1975, %v1973
        %v1994 = vpack.c.bf16 %v1978, %v1976
        %v1995 = vpack.c.bf16 %v1979, %v1977
        %v1996 = vpack.c.bf16 %v1982, %v1980
        %v1997 = vpack.c.bf16 %v1983, %v1981
        %v1998 = vpack.c.bf16 %v1986, %v1984
        %v1999 = vpack.c.bf16 %v1987, %v1985
        %v2000 = vpack.c.bf16 %v1990, %v1988
        %v2001 = vpack.c.bf16 %v1991, %v1989
        %v2002 = vld [vmem:[#allocation10] sm:$0xff]
        %v2003 = vld [vmem:[#allocation10 + $0x8] sm:$0xff]
        %v2004 = vld [vmem:[#allocation10 + $0x10] sm:$0xff]
        %v2005 = vld [vmem:[#allocation10 + $0x18] sm:$0xff]
        %v2006 = vld [vmem:[#allocation10 + $0x20] sm:$0xff]
        %v2007 = vld [vmem:[#allocation10 + $0x28] sm:$0xff]
        %v2008 = vld [vmem:[#allocation10 + $0x30] sm:$0xff]
        %v2009 = vld [vmem:[#allocation10 + $0x38] sm:$0xff]
        %v2010 = vld [vmem:[#allocation10 + $0x40] sm:$0xff]
        %v2011 = vld [vmem:[#allocation10 + $0x48] sm:$0xff]
        %v2012 = vld [vmem:[#allocation10 + $0x50] sm:$0xff]
        %v2013 = vld [vmem:[#allocation10 + $0x58] sm:$0xff]
        %v2014 = vld [vmem:[#allocation10 + $0x60] sm:$0xff]
        %v2015 = vld [vmem:[#allocation10 + $0x68] sm:$0xff]
        %v2016 = vld [vmem:[#allocation10 + $0x70] sm:$0xff]
        %v2017 = vld [vmem:[#allocation10 + $0x78] sm:$0xff]
        %v2018 = vld [vmem:[#allocation10 + $0x80] sm:$0xff]
        %v2019 = vld [vmem:[#allocation10 + $0x88] sm:$0xff]
        %v2020 = vld [vmem:[#allocation10 + $0x90] sm:$0xff]
        %v2021 = vld [vmem:[#allocation10 + $0x98] sm:$0xff]
        %v2022 = vld [vmem:[#allocation10 + $0xa0] sm:$0xff]
        %v2023 = vld [vmem:[#allocation10 + $0xa8] sm:$0xff]
        %v2024 = vld [vmem:[#allocation10 + $0xb0] sm:$0xff]
        %v2025 = vld [vmem:[#allocation10 + $0xb8] sm:$0xff]
        %v2026 = vld [vmem:[#allocation10 + $0xc0] sm:$0xff]
        %v2027 = vld [vmem:[#allocation10 + $0xc8] sm:$0xff]
        %v2028 = vld [vmem:[#allocation10 + $0xd0] sm:$0xff]
        %v2029 = vld [vmem:[#allocation10 + $0xd8] sm:$0xff]
        %v2030 = vld [vmem:[#allocation10 + $0xe0] sm:$0xff]
        %v2031 = vld [vmem:[#allocation10 + $0xe8] sm:$0xff]
        %v2032 = vld [vmem:[#allocation10 + $0xf0] sm:$0xff]
        %v2033 = vld [vmem:[#allocation10 + $0xf8] sm:$0xff]
        %v2034 = vld [vmem:[#allocation11] sm:$0x3]
        %v2036 = vperm.slane %v2034, 0
        %v2037 = vperm.slane %v2034, 1
        %v2072 = vunpack.c.l.b16 %v2002
        %v2073 = vunpack.c.h.b16 %v2002
        %v2074 = vunpack.c.l.b16 %v2003
        %v2075 = vunpack.c.h.b16 %v2003
        %v2076 = vunpack.c.l.b16 %v2004
        %v2077 = vunpack.c.h.b16 %v2004
        %v2078 = vunpack.c.l.b16 %v2005
        %v2079 = vunpack.c.h.b16 %v2005
        %v2080 = vunpack.c.l.b16 %v2006
        %v2081 = vunpack.c.h.b16 %v2006
        %v2082 = vunpack.c.l.b16 %v2007
        %v2083 = vunpack.c.h.b16 %v2007
        %v2084 = vunpack.c.l.b16 %v2008
        %v2085 = vunpack.c.h.b16 %v2008
        %v2086 = vunpack.c.l.b16 %v2009
        %v2087 = vunpack.c.h.b16 %v2009
        %v2088 = vunpack.c.l.b16 %v2010
        %v2089 = vunpack.c.h.b16 %v2010
        %v2090 = vunpack.c.l.b16 %v2011
        %v2091 = vunpack.c.h.b16 %v2011
        %v2092 = vunpack.c.l.b16 %v2012
        %v2093 = vunpack.c.h.b16 %v2012
        %v2094 = vunpack.c.l.b16 %v2013
        %v2095 = vunpack.c.h.b16 %v2013
        %v2096 = vunpack.c.l.b16 %v2014
        %v2097 = vunpack.c.h.b16 %v2014
        %v2098 = vunpack.c.l.b16 %v2015
        %v2099 = vunpack.c.h.b16 %v2015
        %v2100 = vunpack.c.l.b16 %v2016
        %v2101 = vunpack.c.h.b16 %v2016
        %v2102 = vunpack.c.l.b16 %v2017
        %v2103 = vunpack.c.h.b16 %v2017
        %v2104 = vunpack.c.l.b16 %v2018
        %v2105 = vunpack.c.h.b16 %v2018
        %v2106 = vunpack.c.l.b16 %v2019
        %v2107 = vunpack.c.h.b16 %v2019
        %v2108 = vunpack.c.l.b16 %v2020
        %v2109 = vunpack.c.h.b16 %v2020
        %v2110 = vunpack.c.l.b16 %v2021
        %v2111 = vunpack.c.h.b16 %v2021
        %v2112 = vunpack.c.l.b16 %v2022
        %v2113 = vunpack.c.h.b16 %v2022
        %v2114 = vunpack.c.l.b16 %v2023
        %v2115 = vunpack.c.h.b16 %v2023
        %v2116 = vunpack.c.l.b16 %v2024
        %v2117 = vunpack.c.h.b16 %v2024
        %v2118 = vunpack.c.l.b16 %v2025
        %v2119 = vunpack.c.h.b16 %v2025
        %v2120 = vunpack.c.l.b16 %v2026
        %v2121 = vunpack.c.h.b16 %v2026
        %v2122 = vunpack.c.l.b16 %v2027
        %v2123 = vunpack.c.h.b16 %v2027
        %v2124 = vunpack.c.l.b16 %v2028
        %v2125 = vunpack.c.h.b16 %v2028
        %v2126 = vunpack.c.l.b16 %v2029
        %v2127 = vunpack.c.h.b16 %v2029
        %v2128 = vunpack.c.l.b16 %v2030
        %v2129 = vunpack.c.h.b16 %v2030
        %v2130 = vunpack.c.l.b16 %v2031
        %v2131 = vunpack.c.h.b16 %v2031
        %v2132 = vunpack.c.l.b16 %v2032
        %v2133 = vunpack.c.h.b16 %v2032
        %v2134 = vunpack.c.l.b16 %v2033
        %v2135 = vunpack.c.h.b16 %v2033
        %v2136 = vpack.c.b16 %v2074, %v2072
        %v2137 = vpack.c.b16 %v2075, %v2073
        %v2138 = vpack.c.b16 %v2078, %v2076
        %v2139 = vpack.c.b16 %v2079, %v2077
        %v2140 = vpack.c.b16 %v2082, %v2080
        %v2141 = vpack.c.b16 %v2083, %v2081
        %v2142 = vpack.c.b16 %v2086, %v2084
        %v2143 = vpack.c.b16 %v2087, %v2085
        %v2144 = vpack.c.b16 %v2090, %v2088
        %v2145 = vpack.c.b16 %v2091, %v2089
        %v2146 = vpack.c.b16 %v2094, %v2092
        %v2147 = vpack.c.b16 %v2095, %v2093
        %v2148 = vpack.c.b16 %v2098, %v2096
        %v2149 = vpack.c.b16 %v2099, %v2097
        %v2150 = vpack.c.b16 %v2102, %v2100
        %v2151 = vpack.c.b16 %v2103, %v2101
        %v2152 = vpack.c.b16 %v2106, %v2104
        %v2153 = vpack.c.b16 %v2107, %v2105
        %v2154 = vpack.c.b16 %v2110, %v2108
        %v2155 = vpack.c.b16 %v2111, %v2109
        %v2156 = vpack.c.b16 %v2114, %v2112
        %v2157 = vpack.c.b16 %v2115, %v2113
        %v2158 = vpack.c.b16 %v2118, %v2116
        %v2159 = vpack.c.b16 %v2119, %v2117
        %v2160 = vpack.c.b16 %v2122, %v2120
        %v2161 = vpack.c.b16 %v2123, %v2121
        %v2162 = vpack.c.b16 %v2126, %v2124
        %v2163 = vpack.c.b16 %v2127, %v2125
        %v2164 = vpack.c.b16 %v2130, %v2128
        %v2165 = vpack.c.b16 %v2131, %v2129
        %v2166 = vpack.c.b16 %v2134, %v2132
        %v2167 = vpack.c.b16 %v2135, %v2133
        %2200 = vmatpush.bf16.msra.mxu0 %v2150
        %2201 = vmatpush.bf16.msra.mxu0 %v2148
        %2202 = vmatpush.bf16.msra.mxu0 %v2146
        %2203 = vmatpush.bf16.msra.mxu0 %v2144
        %2204 = vmatpush.bf16.msra.mxu0 %v2142
        %2205 = vmatpush.bf16.msra.mxu0 %v2140
        %2206 = vmatpush.bf16.msra.mxu0 %v2138
        %2207 = vmatpush.bf16.msra.mxu0 %v2136
        %2208 = vmatmul.bf16.gmra.mxu0 %v1992
        %v2209 = vpop.f32.mrf.mxu0
        %v2210 = vadd.f32 %v2036, %v2209
        %v2211 = vpop.f32.mrf.mxu0
        %v2212 = vadd.f32 %v2036, %v2211
        %2213 = vmatmul.bf16.gmra.mxu0 %v1994
        %v2214 = vpop.f32.mrf.mxu0
        %v2215 = vadd.f32 %v2036, %v2214
        %v2216 = vpop.f32.mrf.mxu0
        %v2217 = vadd.f32 %v2036, %v2216
        %2218 = vmatmul.bf16.gmra.mxu0 %v1996
        %v2219 = vpop.f32.mrf.mxu0
        %v2220 = vadd.f32 %v2036, %v2219
        %v2221 = vpop.f32.mrf.mxu0
        %v2222 = vadd.f32 %v2036, %v2221
        %2223 = vmatmul.bf16.gmra.mxu0 %v1998
        %v2224 = vpop.f32.mrf.mxu0
        %v2225 = vadd.f32 %v2036, %v2224
        %v2226 = vpop.f32.mrf.mxu0
        %v2227 = vadd.f32 %v2036, %v2226
        %2228 = vmatmul.bf16.gmra.mxu0 %v2000
        %v2229 = vpop.f32.mrf.mxu0
        %v2230 = vadd.f32 %v2036, %v2229
        %v2231 = vpop.f32.mrf.mxu0
        %v2232 = vadd.f32 %v2036, %v2231
        %2233 = vdwg.mxu0
        %2234 = vmatpush.bf16.msra.mxu0 %v2166
        %2235 = vmatpush.bf16.msra.mxu0 %v2164
        %2236 = vmatpush.bf16.msra.mxu0 %v2162
        %2237 = vmatpush.bf16.msra.mxu0 %v2160
        %2238 = vmatpush.bf16.msra.mxu0 %v2158
        %2239 = vmatpush.bf16.msra.mxu0 %v2156
        %2240 = vmatpush.bf16.msra.mxu0 %v2154
        %2241 = vmatpush.bf16.msra.mxu0 %v2152
        %2242 = vmatmul.bf16.gmra.mxu0 %v1993
        %v2243 = vpop.f32.mrf.mxu0
        %v2244 = vadd.f32 %v2210, %v2243
        %v2245 = vpop.f32.mrf.mxu0
        %v2246 = vadd.f32 %v2212, %v2245
        %2247 = vmatmul.bf16.gmra.mxu0 %v1995
        %v2248 = vpop.f32.mrf.mxu0
        %v2249 = vadd.f32 %v2215, %v2248
        %v2250 = vpop.f32.mrf.mxu0
        %v2251 = vadd.f32 %v2217, %v2250
        %2252 = vmatmul.bf16.gmra.mxu0 %v1997
        %v2253 = vpop.f32.mrf.mxu0
        %v2254 = vadd.f32 %v2220, %v2253
        %v2255 = vpop.f32.mrf.mxu0
        %v2256 = vadd.f32 %v2222, %v2255
        %2257 = vmatmul.bf16.gmra.mxu0 %v1999
        %v2258 = vpop.f32.mrf.mxu0
        %v2259 = vadd.f32 %v2225, %v2258
        %v2260 = vpop.f32.mrf.mxu0
        %v2261 = vadd.f32 %v2227, %v2260
        %2262 = vmatmul.bf16.gmra.mxu0 %v2001
        %v2263 = vpop.f32.mrf.mxu0
        %v2264 = vadd.f32 %v2230, %v2263
        %v2265 = vpop.f32.mrf.mxu0
        %v2266 = vadd.f32 %v2232, %v2265
        %2267 = vdwg.mxu0
        %2268 = vmatpush.bf16.msra.mxu0 %v2151
        %2269 = vmatpush.bf16.msra.mxu0 %v2149
        %2270 = vmatpush.bf16.msra.mxu0 %v2147
        %2271 = vmatpush.bf16.msra.mxu0 %v2145
        %2272 = vmatpush.bf16.msra.mxu0 %v2143
        %2273 = vmatpush.bf16.msra.mxu0 %v2141
        %2274 = vmatpush.bf16.msra.mxu0 %v2139
        %2275 = vmatpush.bf16.msra.mxu0 %v2137
        %2276 = vmatmul.bf16.gmra.mxu0 %v1992
        %v2277 = vpop.f32.mrf.mxu0
        %v2278 = vadd.f32 %v2037, %v2277
        %v2279 = vpop.f32.mrf.mxu0
        %v2280 = vadd.f32 %v2037, %v2279
        %2281 = vmatmul.bf16.gmra.mxu0 %v1994
        %v2282 = vpop.f32.mrf.mxu0
        %v2283 = vadd.f32 %v2037, %v2282
        %v2284 = vpop.f32.mrf.mxu0
        %v2285 = vadd.f32 %v2037, %v2284
        %2286 = vmatmul.bf16.gmra.mxu0 %v1996
        %v2287 = vpop.f32.mrf.mxu0
        %v2288 = vadd.f32 %v2037, %v2287
        %v2289 = vpop.f32.mrf.mxu0
        %v2290 = vadd.f32 %v2037, %v2289
        %2291 = vmatmul.bf16.gmra.mxu0 %v1998
        %v2292 = vpop.f32.mrf.mxu0
        %v2293 = vadd.f32 %v2037, %v2292
        %v2294 = vpop.f32.mrf.mxu0
        %v2295 = vadd.f32 %v2037, %v2294
        %2296 = vmatmul.bf16.gmra.mxu0 %v2000
        %v2297 = vpop.f32.mrf.mxu0
        %v2298 = vadd.f32 %v2037, %v2297
        %v2299 = vpop.f32.mrf.mxu0
        %v2300 = vadd.f32 %v2037, %v2299
        %2301 = vdwg.mxu0
        %2302 = vmatpush.bf16.msra.mxu0 %v2167
        %2303 = vmatpush.bf16.msra.mxu0 %v2165
        %2304 = vmatpush.bf16.msra.mxu0 %v2163
        %2305 = vmatpush.bf16.msra.mxu0 %v2161
        %2306 = vmatpush.bf16.msra.mxu0 %v2159
        %2307 = vmatpush.bf16.msra.mxu0 %v2157
        %2308 = vmatpush.bf16.msra.mxu0 %v2155
        %2309 = vmatpush.bf16.msra.mxu0 %v2153
        %2310 = vmatmul.bf16.gmra.mxu0 %v1993
        %v2311 = vpop.f32.mrf.mxu0
        %v2312 = vadd.f32 %v2278, %v2311
        %v2313 = vpop.f32.mrf.mxu0
        %v2314 = vadd.f32 %v2280, %v2313
        %2315 = vmatmul.bf16.gmra.mxu0 %v1995
        %v2316 = vpop.f32.mrf.mxu0
        %v2317 = vadd.f32 %v2283, %v2316
        %v2318 = vpop.f32.mrf.mxu0
        %v2319 = vadd.f32 %v2285, %v2318
        %2320 = vmatmul.bf16.gmra.mxu0 %v1997
        %v2321 = vpop.f32.mrf.mxu0
        %v2322 = vadd.f32 %v2288, %v2321
        %v2323 = vpop.f32.mrf.mxu0
        %v2324 = vadd.f32 %v2290, %v2323
        %2325 = vmatmul.bf16.gmra.mxu0 %v1999
        %v2326 = vpop.f32.mrf.mxu0
        %v2327 = vadd.f32 %v2293, %v2326
        %v2328 = vpop.f32.mrf.mxu0
        %v2329 = vadd.f32 %v2295, %v2328
        %2330 = vmatmul.bf16.gmra.mxu0 %v2001
        %v2331 = vpop.f32.mrf.mxu0
        %v2332 = vadd.f32 %v2298, %v2331
        %v2333 = vpop.f32.mrf.mxu0
        %v2334 = vadd.f32 %v2300, %v2333
        %2335 = vdwg.mxu0
        %v2336 = vmax.f32 %v2244, 0.0
        %v2337 = vmax.f32 %v2312, 0.0
        %v2338 = vmax.f32 %v2246, 0.0
        %v2339 = vmax.f32 %v2314, 0.0
        %v2340 = vmax.f32 %v2249, 0.0
        %v2341 = vmax.f32 %v2317, 0.0
        %v2342 = vmax.f32 %v2251, 0.0
        %v2343 = vmax.f32 %v2319, 0.0
        %v2344 = vmax.f32 %v2254, 0.0
        %v2345 = vmax.f32 %v2322, 0.0
        %v2346 = vmax.f32 %v2256, 0.0
        %v2347 = vmax.f32 %v2324, 0.0
        %v2348 = vmax.f32 %v2259, 0.0
        %v2349 = vmax.f32 %v2327, 0.0
        %v2350 = vmax.f32 %v2261, 0.0
        %v2351 = vmax.f32 %v2329, 0.0
        %v2352 = vmax.f32 %v2264, 0.0
        %v2353 = vmax.f32 %v2332, 0.0
        %v2354 = vmax.f32 %v2266, 0.0
        %v2355 = vmax.f32 %v2334, 0.0
        %v2356 = vpack.c.bf16 %v2338, %v2336
        %v2357 = vpack.c.bf16 %v2339, %v2337
        %v2358 = vpack.c.bf16 %v2342, %v2340
        %v2359 = vpack.c.bf16 %v2343, %v2341
        %v2360 = vpack.c.bf16 %v2346, %v2344
        %v2361 = vpack.c.bf16 %v2347, %v2345
        %v2362 = vpack.c.bf16 %v2350, %v2348
        %v2363 = vpack.c.bf16 %v2351, %v2349
        %v2364 = vpack.c.bf16 %v2354, %v2352
        %v2365 = vpack.c.bf16 %v2355, %v2353
        %v2366 = vld [vmem:[#allocation13] sm:$0xff]
        %v2367 = vld [vmem:[#allocation13 + $0x8] sm:$0xff]
        %v2368 = vld [vmem:[#allocation13 + $0x10] sm:$0xff]
        %v2369 = vld [vmem:[#allocation13 + $0x18] sm:$0xff]
        %v2370 = vld [vmem:[#allocation13 + $0x20] sm:$0xff]
        %v2371 = vld [vmem:[#allocation13 + $0x28] sm:$0xff]
        %v2372 = vld [vmem:[#allocation13 + $0x30] sm:$0xff]
        %v2373 = vld [vmem:[#allocation13 + $0x38] sm:$0xff]
        %v2374 = vld [vmem:[#allocation13 + $0x40] sm:$0xff]
        %v2375 = vld [vmem:[#allocation13 + $0x48] sm:$0xff]
        %v2376 = vld [vmem:[#allocation13 + $0x50] sm:$0xff]
        %v2377 = vld [vmem:[#allocation13 + $0x58] sm:$0xff]
        %v2378 = vld [vmem:[#allocation13 + $0x60] sm:$0xff]
        %v2379 = vld [vmem:[#allocation13 + $0x68] sm:$0xff]
        %v2380 = vld [vmem:[#allocation13 + $0x70] sm:$0xff]
        %v2381 = vld [vmem:[#allocation13 + $0x78] sm:$0xff]
        %v2382 = vld [vmem:[#allocation13 + $0x80] sm:$0xff]
        %v2383 = vld [vmem:[#allocation13 + $0x88] sm:$0xff]
        %v2384 = vld [vmem:[#allocation13 + $0x90] sm:$0xff]
        %v2385 = vld [vmem:[#allocation13 + $0x98] sm:$0xff]
        %v2386 = vld [vmem:[#allocation13 + $0xa0] sm:$0xff]
        %v2387 = vld [vmem:[#allocation13 + $0xa8] sm:$0xff]
        %v2388 = vld [vmem:[#allocation13 + $0xb0] sm:$0xff]
        %v2389 = vld [vmem:[#allocation13 + $0xb8] sm:$0xff]
        %v2390 = vld [vmem:[#allocation13 + $0xc0] sm:$0xff]
        %v2391 = vld [vmem:[#allocation13 + $0xc8] sm:$0xff]
        %v2392 = vld [vmem:[#allocation13 + $0xd0] sm:$0xff]
        %v2393 = vld [vmem:[#allocation13 + $0xd8] sm:$0xff]
        %v2394 = vld [vmem:[#allocation13 + $0xe0] sm:$0xff]
        %v2395 = vld [vmem:[#allocation13 + $0xe8] sm:$0xff]
        %v2396 = vld [vmem:[#allocation13 + $0xf0] sm:$0xff]
        %v2397 = vld [vmem:[#allocation13 + $0xf8] sm:$0xff]
        %v2398 = vld [vmem:[#allocation13 + $0x100] sm:$0xff]
        %v2399 = vld [vmem:[#allocation13 + $0x108] sm:$0xff]
        %v2400 = vld [vmem:[#allocation13 + $0x110] sm:$0xff]
        %v2401 = vld [vmem:[#allocation13 + $0x118] sm:$0xff]
        %v2402 = vld [vmem:[#allocation13 + $0x120] sm:$0xff]
        %v2403 = vld [vmem:[#allocation13 + $0x128] sm:$0xff]
        %v2404 = vld [vmem:[#allocation13 + $0x130] sm:$0xff]
        %v2405 = vld [vmem:[#allocation13 + $0x138] sm:$0xff]
        %v2406 = vld [vmem:[#allocation13 + $0x140] sm:$0xff]
        %v2407 = vld [vmem:[#allocation13 + $0x148] sm:$0xff]
        %v2408 = vld [vmem:[#allocation13 + $0x150] sm:$0xff]
        %v2409 = vld [vmem:[#allocation13 + $0x158] sm:$0xff]
        %v2410 = vld [vmem:[#allocation13 + $0x160] sm:$0xff]
        %v2411 = vld [vmem:[#allocation13 + $0x168] sm:$0xff]
        %v2412 = vld [vmem:[#allocation13 + $0x170] sm:$0xff]
        %v2413 = vld [vmem:[#allocation13 + $0x178] sm:$0xff]
        %v2414 = vld [vmem:[#allocation13 + $0x180] sm:$0xff]
        %v2415 = vld [vmem:[#allocation13 + $0x188] sm:$0xff]
        %v2416 = vld [vmem:[#allocation13 + $0x190] sm:$0xff]
        %v2417 = vld [vmem:[#allocation13 + $0x198] sm:$0xff]
        %v2418 = vld [vmem:[#allocation13 + $0x1a0] sm:$0xff]
        %v2419 = vld [vmem:[#allocation13 + $0x1a8] sm:$0xff]
        %v2420 = vld [vmem:[#allocation13 + $0x1b0] sm:$0xff]
        %v2421 = vld [vmem:[#allocation13 + $0x1b8] sm:$0xff]
        %v2422 = vld [vmem:[#allocation13 + $0x1c0] sm:$0xff]
        %v2423 = vld [vmem:[#allocation13 + $0x1c8] sm:$0xff]
        %v2424 = vld [vmem:[#allocation13 + $0x1d0] sm:$0xff]
        %v2425 = vld [vmem:[#allocation13 + $0x1d8] sm:$0xff]
        %v2426 = vld [vmem:[#allocation13 + $0x1e0] sm:$0xff]
        %v2427 = vld [vmem:[#allocation13 + $0x1e8] sm:$0xff]
        %v2428 = vld [vmem:[#allocation13 + $0x1f0] sm:$0xff]
        %v2429 = vld [vmem:[#allocation13 + $0x1f8] sm:$0xff]
        %v2430 = vld [vmem:[%s8] sm:$0xf]
        %v2432 = vperm.slane %v2430, 0
        %v2433 = vperm.slane %v2430, 1
        %v2434 = vperm.slane %v2430, 2
        %v2435 = vperm.slane %v2430, 3
        %v2504 = vunpack.c.l.b16 %v2366
        %v2505 = vunpack.c.h.b16 %v2366
        %v2506 = vunpack.c.l.b16 %v2367
        %v2507 = vunpack.c.h.b16 %v2367
        %v2508 = vunpack.c.l.b16 %v2368
        %v2509 = vunpack.c.h.b16 %v2368
        %v2510 = vunpack.c.l.b16 %v2369
        %v2511 = vunpack.c.h.b16 %v2369
        %v2512 = vunpack.c.l.b16 %v2370
        %v2513 = vunpack.c.h.b16 %v2370
        %v2514 = vunpack.c.l.b16 %v2371
        %v2515 = vunpack.c.h.b16 %v2371
        %v2516 = vunpack.c.l.b16 %v2372
        %v2517 = vunpack.c.h.b16 %v2372
        %v2518 = vunpack.c.l.b16 %v2373
        %v2519 = vunpack.c.h.b16 %v2373
        %v2520 = vunpack.c.l.b16 %v2374
        %v2521 = vunpack.c.h.b16 %v2374
        %v2522 = vunpack.c.l.b16 %v2375
        %v2523 = vunpack.c.h.b16 %v2375
        %v2524 = vunpack.c.l.b16 %v2376
        %v2525 = vunpack.c.h.b16 %v2376
        %v2526 = vunpack.c.l.b16 %v2377
        %v2527 = vunpack.c.h.b16 %v2377
        %v2528 = vunpack.c.l.b16 %v2378
        %v2529 = vunpack.c.h.b16 %v2378
        %v2530 = vunpack.c.l.b16 %v2379
        %v2531 = vunpack.c.h.b16 %v2379
        %v2532 = vunpack.c.l.b16 %v2380
        %v2533 = vunpack.c.h.b16 %v2380
        %v2534 = vunpack.c.l.b16 %v2381
        %v2535 = vunpack.c.h.b16 %v2381
        %v2536 = vunpack.c.l.b16 %v2382
        %v2537 = vunpack.c.h.b16 %v2382
        %v2538 = vunpack.c.l.b16 %v2383
        %v2539 = vunpack.c.h.b16 %v2383
        %v2540 = vunpack.c.l.b16 %v2384
        %v2541 = vunpack.c.h.b16 %v2384
        %v2542 = vunpack.c.l.b16 %v2385
        %v2543 = vunpack.c.h.b16 %v2385
        %v2544 = vunpack.c.l.b16 %v2386
        %v2545 = vunpack.c.h.b16 %v2386
        %v2546 = vunpack.c.l.b16 %v2387
        %v2547 = vunpack.c.h.b16 %v2387
        %v2548 = vunpack.c.l.b16 %v2388
        %v2549 = vunpack.c.h.b16 %v2388
        %v2550 = vunpack.c.l.b16 %v2389
        %v2551 = vunpack.c.h.b16 %v2389
        %v2552 = vunpack.c.l.b16 %v2390
        %v2553 = vunpack.c.h.b16 %v2390
        %v2554 = vunpack.c.l.b16 %v2391
        %v2555 = vunpack.c.h.b16 %v2391
        %v2556 = vunpack.c.l.b16 %v2392
        %v2557 = vunpack.c.h.b16 %v2392
        %v2558 = vunpack.c.l.b16 %v2393
        %v2559 = vunpack.c.h.b16 %v2393
        %v2560 = vunpack.c.l.b16 %v2394
        %v2561 = vunpack.c.h.b16 %v2394
        %v2562 = vunpack.c.l.b16 %v2395
        %v2563 = vunpack.c.h.b16 %v2395
        %v2564 = vunpack.c.l.b16 %v2396
        %v2565 = vunpack.c.h.b16 %v2396
        %v2566 = vunpack.c.l.b16 %v2397
        %v2567 = vunpack.c.h.b16 %v2397
        %v2568 = vunpack.c.l.b16 %v2398
        %v2569 = vunpack.c.h.b16 %v2398
        %v2570 = vunpack.c.l.b16 %v2399
        %v2571 = vunpack.c.h.b16 %v2399
        %v2572 = vunpack.c.l.b16 %v2400
        %v2573 = vunpack.c.h.b16 %v2400
        %v2574 = vunpack.c.l.b16 %v2401
        %v2575 = vunpack.c.h.b16 %v2401
        %v2576 = vunpack.c.l.b16 %v2402
        %v2577 = vunpack.c.h.b16 %v2402
        %v2578 = vunpack.c.l.b16 %v2403
        %v2579 = vunpack.c.h.b16 %v2403
        %v2580 = vunpack.c.l.b16 %v2404
        %v2581 = vunpack.c.h.b16 %v2404
        %v2582 = vunpack.c.l.b16 %v2405
        %v2583 = vunpack.c.h.b16 %v2405
        %v2584 = vunpack.c.l.b16 %v2406
        %v2585 = vunpack.c.h.b16 %v2406
        %v2586 = vunpack.c.l.b16 %v2407
        %v2587 = vunpack.c.h.b16 %v2407
        %v2588 = vunpack.c.l.b16 %v2408
        %v2589 = vunpack.c.h.b16 %v2408
        %v2590 = vunpack.c.l.b16 %v2409
        %v2591 = vunpack.c.h.b16 %v2409
        %v2592 = vunpack.c.l.b16 %v2410
        %v2593 = vunpack.c.h.b16 %v2410
        %v2594 = vunpack.c.l.b16 %v2411
        %v2595 = vunpack.c.h.b16 %v2411
        %v2596 = vunpack.c.l.b16 %v2412
        %v2597 = vunpack.c.h.b16 %v2412
        %v2598 = vunpack.c.l.b16 %v2413
        %v2599 = vunpack.c.h.b16 %v2413
        %v2600 = vunpack.c.l.b16 %v2414
        %v2601 = vunpack.c.h.b16 %v2414
        %v2602 = vunpack.c.l.b16 %v2415
        %v2603 = vunpack.c.h.b16 %v2415
        %v2604 = vunpack.c.l.b16 %v2416
        %v2605 = vunpack.c.h.b16 %v2416
        %v2606 = vunpack.c.l.b16 %v2417
        %v2607 = vunpack.c.h.b16 %v2417
        %v2608 = vunpack.c.l.b16 %v2418
        %v2609 = vunpack.c.h.b16 %v2418
        %v2610 = vunpack.c.l.b16 %v2419
        %v2611 = vunpack.c.h.b16 %v2419
        %v2612 = vunpack.c.l.b16 %v2420
        %v2613 = vunpack.c.h.b16 %v2420
        %v2614 = vunpack.c.l.b16 %v2421
        %v2615 = vunpack.c.h.b16 %v2421
        %v2616 = vunpack.c.l.b16 %v2422
        %v2617 = vunpack.c.h.b16 %v2422
        %v2618 = vunpack.c.l.b16 %v2423
        %v2619 = vunpack.c.h.b16 %v2423
        %v2620 = vunpack.c.l.b16 %v2424
        %v2621 = vunpack.c.h.b16 %v2424
        %v2622 = vunpack.c.l.b16 %v2425
        %v2623 = vunpack.c.h.b16 %v2425
        %v2624 = vunpack.c.l.b16 %v2426
        %v2625 = vunpack.c.h.b16 %v2426
        %v2626 = vunpack.c.l.b16 %v2427
        %v2627 = vunpack.c.h.b16 %v2427
        %v2628 = vunpack.c.l.b16 %v2428
        %v2629 = vunpack.c.h.b16 %v2428
        %v2630 = vunpack.c.l.b16 %v2429
        %v2631 = vunpack.c.h.b16 %v2429
        %v2632 = vpack.c.b16 %v2508, %v2504
        %v2633 = vpack.c.b16 %v2509, %v2505
        %v2634 = vpack.c.b16 %v2510, %v2506
        %v2635 = vpack.c.b16 %v2511, %v2507
        %v2636 = vpack.c.b16 %v2516, %v2512
        %v2637 = vpack.c.b16 %v2517, %v2513
        %v2638 = vpack.c.b16 %v2518, %v2514
        %v2639 = vpack.c.b16 %v2519, %v2515
        %v2640 = vpack.c.b16 %v2524, %v2520
        %v2641 = vpack.c.b16 %v2525, %v2521
        %v2642 = vpack.c.b16 %v2526, %v2522
        %v2643 = vpack.c.b16 %v2527, %v2523
        %v2644 = vpack.c.b16 %v2532, %v2528
        %v2645 = vpack.c.b16 %v2533, %v2529
        %v2646 = vpack.c.b16 %v2534, %v2530
        %v2647 = vpack.c.b16 %v2535, %v2531
        %v2648 = vpack.c.b16 %v2540, %v2536
        %v2649 = vpack.c.b16 %v2541, %v2537
        %v2650 = vpack.c.b16 %v2542, %v2538
        %v2651 = vpack.c.b16 %v2543, %v2539
        %v2652 = vpack.c.b16 %v2548, %v2544
        %v2653 = vpack.c.b16 %v2549, %v2545
        %v2654 = vpack.c.b16 %v2550, %v2546
        %v2655 = vpack.c.b16 %v2551, %v2547
        %v2656 = vpack.c.b16 %v2556, %v2552
        %v2657 = vpack.c.b16 %v2557, %v2553
        %v2658 = vpack.c.b16 %v2558, %v2554
        %v2659 = vpack.c.b16 %v2559, %v2555
        %v2660 = vpack.c.b16 %v2564, %v2560
        %v2661 = vpack.c.b16 %v2565, %v2561
        %v2662 = vpack.c.b16 %v2566, %v2562
        %v2663 = vpack.c.b16 %v2567, %v2563
        %v2664 = vpack.c.b16 %v2572, %v2568
        %v2665 = vpack.c.b16 %v2573, %v2569
        %v2666 = vpack.c.b16 %v2574, %v2570
        %v2667 = vpack.c.b16 %v2575, %v2571
        %v2668 = vpack.c.b16 %v2580, %v2576
        %v2669 = vpack.c.b16 %v2581, %v2577
        %v2670 = vpack.c.b16 %v2582, %v2578
        %v2671 = vpack.c.b16 %v2583, %v2579
        %v2672 = vpack.c.b16 %v2588, %v2584
        %v2673 = vpack.c.b16 %v2589, %v2585
        %v2674 = vpack.c.b16 %v2590, %v2586
        %v2675 = vpack.c.b16 %v2591, %v2587
        %v2676 = vpack.c.b16 %v2596, %v2592
        %v2677 = vpack.c.b16 %v2597, %v2593
        %v2678 = vpack.c.b16 %v2598, %v2594
        %v2679 = vpack.c.b16 %v2599, %v2595
        %v2680 = vpack.c.b16 %v2604, %v2600
        %v2681 = vpack.c.b16 %v2605, %v2601
        %v2682 = vpack.c.b16 %v2606, %v2602
        %v2683 = vpack.c.b16 %v2607, %v2603
        %v2684 = vpack.c.b16 %v2612, %v2608
        %v2685 = vpack.c.b16 %v2613, %v2609
        %v2686 = vpack.c.b16 %v2614, %v2610
        %v2687 = vpack.c.b16 %v2615, %v2611
        %v2688 = vpack.c.b16 %v2620, %v2616
        %v2689 = vpack.c.b16 %v2621, %v2617
        %v2690 = vpack.c.b16 %v2622, %v2618
        %v2691 = vpack.c.b16 %v2623, %v2619
        %v2692 = vpack.c.b16 %v2628, %v2624
        %v2693 = vpack.c.b16 %v2629, %v2625
        %v2694 = vpack.c.b16 %v2630, %v2626
        %v2695 = vpack.c.b16 %v2631, %v2627
        %2760 = vmatpush.bf16.msra.mxu0 %v2660
        %2761 = vmatpush.bf16.msra.mxu0 %v2656
        %2762 = vmatpush.bf16.msra.mxu0 %v2652
        %2763 = vmatpush.bf16.msra.mxu0 %v2648
        %2764 = vmatpush.bf16.msra.mxu0 %v2644
        %2765 = vmatpush.bf16.msra.mxu0 %v2640
        %2766 = vmatpush.bf16.msra.mxu0 %v2636
        %2767 = vmatpush.bf16.msra.mxu0 %v2632
        %2768 = vmatmul.bf16.gmra.mxu0 %v2356
        %v2769 = vpop.f32.mrf.mxu0
        %v2770 = vadd.f32 %v2432, %v2769
        %v2771 = vpop.f32.mrf.mxu0
        %v2772 = vadd.f32 %v2432, %v2771
        %2773 = vmatmul.bf16.gmra.mxu0 %v2358
        %v2774 = vpop.f32.mrf.mxu0
        %v2775 = vadd.f32 %v2432, %v2774
        %v2776 = vpop.f32.mrf.mxu0
        %v2777 = vadd.f32 %v2432, %v2776
        %2778 = vmatmul.bf16.gmra.mxu0 %v2360
        %v2779 = vpop.f32.mrf.mxu0
        %v2780 = vadd.f32 %v2432, %v2779
        %v2781 = vpop.f32.mrf.mxu0
        %v2782 = vadd.f32 %v2432, %v2781
        %2783 = vmatmul.bf16.gmra.mxu0 %v2362
        %v2784 = vpop.f32.mrf.mxu0
        %v2785 = vadd.f32 %v2432, %v2784
        %v2786 = vpop.f32.mrf.mxu0
        %v2787 = vadd.f32 %v2432, %v2786
        %2788 = vmatmul.bf16.gmra.mxu0 %v2364
        %v2789 = vpop.f32.mrf.mxu0
        %v2790 = vadd.f32 %v2432, %v2789
        %v2791 = vpop.f32.mrf.mxu0
        %v2792 = vadd.f32 %v2432, %v2791
        %2793 = vdwg.mxu0
        %2794 = vmatpush.bf16.msra.mxu0 %v2692
        %2795 = vmatpush.bf16.msra.mxu0 %v2688
        %2796 = vmatpush.bf16.msra.mxu0 %v2684
        %2797 = vmatpush.bf16.msra.mxu0 %v2680
        %2798 = vmatpush.bf16.msra.mxu0 %v2676
        %2799 = vmatpush.bf16.msra.mxu0 %v2672
        %2800 = vmatpush.bf16.msra.mxu0 %v2668
        %2801 = vmatpush.bf16.msra.mxu0 %v2664
        %2802 = vmatmul.bf16.gmra.mxu0 %v2357
        %v2803 = vpop.f32.mrf.mxu0
        %v2804 = vadd.f32 %v2770, %v2803
        %v2805 = vpop.f32.mrf.mxu0
        %v2806 = vadd.f32 %v2772, %v2805
        %2807 = vmatmul.bf16.gmra.mxu0 %v2359
        %v2808 = vpop.f32.mrf.mxu0
        %v2809 = vadd.f32 %v2775, %v2808
        %v2810 = vpop.f32.mrf.mxu0
        %v2811 = vadd.f32 %v2777, %v2810
        %2812 = vmatmul.bf16.gmra.mxu0 %v2361
        %v2813 = vpop.f32.mrf.mxu0
        %v2814 = vadd.f32 %v2780, %v2813
        %v2815 = vpop.f32.mrf.mxu0
        %v2816 = vadd.f32 %v2782, %v2815
        %2817 = vmatmul.bf16.gmra.mxu0 %v2363
        %v2818 = vpop.f32.mrf.mxu0
        %v2819 = vadd.f32 %v2785, %v2818
        %v2820 = vpop.f32.mrf.mxu0
        %v2821 = vadd.f32 %v2787, %v2820
        %2822 = vmatmul.bf16.gmra.mxu0 %v2365
        %v2823 = vpop.f32.mrf.mxu0
        %v2824 = vadd.f32 %v2790, %v2823
        %v2825 = vpop.f32.mrf.mxu0
        %v2826 = vadd.f32 %v2792, %v2825
        %2827 = vdwg.mxu0
        %2828 = vmatpush.bf16.msra.mxu0 %v2661
        %2829 = vmatpush.bf16.msra.mxu0 %v2657
        %2830 = vmatpush.bf16.msra.mxu0 %v2653
        %2831 = vmatpush.bf16.msra.mxu0 %v2649
        %2832 = vmatpush.bf16.msra.mxu0 %v2645
        %2833 = vmatpush.bf16.msra.mxu0 %v2641
        %2834 = vmatpush.bf16.msra.mxu0 %v2637
        %2835 = vmatpush.bf16.msra.mxu0 %v2633
        %2836 = vmatmul.bf16.gmra.mxu0 %v2356
        %v2837 = vpop.f32.mrf.mxu0
        %v2838 = vadd.f32 %v2433, %v2837
        %v2839 = vpop.f32.mrf.mxu0
        %v2840 = vadd.f32 %v2433, %v2839
        %2841 = vmatmul.bf16.gmra.mxu0 %v2358
        %v2842 = vpop.f32.mrf.mxu0
        %v2843 = vadd.f32 %v2433, %v2842
        %v2844 = vpop.f32.mrf.mxu0
        %v2845 = vadd.f32 %v2433, %v2844
        %2846 = vmatmul.bf16.gmra.mxu0 %v2360
        %v2847 = vpop.f32.mrf.mxu0
        %v2848 = vadd.f32 %v2433, %v2847
        %v2849 = vpop.f32.mrf.mxu0
        %v2850 = vadd.f32 %v2433, %v2849
        %2851 = vmatmul.bf16.gmra.mxu0 %v2362
        %v2852 = vpop.f32.mrf.mxu0
        %v2853 = vadd.f32 %v2433, %v2852
        %v2854 = vpop.f32.mrf.mxu0
        %v2855 = vadd.f32 %v2433, %v2854
        %2856 = vmatmul.bf16.gmra.mxu0 %v2364
        %v2857 = vpop.f32.mrf.mxu0
        %v2858 = vadd.f32 %v2433, %v2857
        %v2859 = vpop.f32.mrf.mxu0
        %v2860 = vadd.f32 %v2433, %v2859
        %2861 = vdwg.mxu0
        %2862 = vmatpush.bf16.msra.mxu0 %v2693
        %2863 = vmatpush.bf16.msra.mxu0 %v2689
        %2864 = vmatpush.bf16.msra.mxu0 %v2685
        %2865 = vmatpush.bf16.msra.mxu0 %v2681
        %2866 = vmatpush.bf16.msra.mxu0 %v2677
        %2867 = vmatpush.bf16.msra.mxu0 %v2673
        %2868 = vmatpush.bf16.msra.mxu0 %v2669
        %2869 = vmatpush.bf16.msra.mxu0 %v2665
        %2870 = vmatmul.bf16.gmra.mxu0 %v2357
        %v2871 = vpop.f32.mrf.mxu0
        %v2872 = vadd.f32 %v2838, %v2871
        %v2873 = vpop.f32.mrf.mxu0
        %v2874 = vadd.f32 %v2840, %v2873
        %2875 = vmatmul.bf16.gmra.mxu0 %v2359
        %v2876 = vpop.f32.mrf.mxu0
        %v2877 = vadd.f32 %v2843, %v2876
        %v2878 = vpop.f32.mrf.mxu0
        %v2879 = vadd.f32 %v2845, %v2878
        %2880 = vmatmul.bf16.gmra.mxu0 %v2361
        %v2881 = vpop.f32.mrf.mxu0
        %v2882 = vadd.f32 %v2848, %v2881
        %v2883 = vpop.f32.mrf.mxu0
        %v2884 = vadd.f32 %v2850, %v2883
        %2885 = vmatmul.bf16.gmra.mxu0 %v2363
        %v2886 = vpop.f32.mrf.mxu0
        %v2887 = vadd.f32 %v2853, %v2886
        %v2888 = vpop.f32.mrf.mxu0
        %v2889 = vadd.f32 %v2855, %v2888
        %2890 = vmatmul.bf16.gmra.mxu0 %v2365
        %v2891 = vpop.f32.mrf.mxu0
        %v2892 = vadd.f32 %v2858, %v2891
        %v2893 = vpop.f32.mrf.mxu0
        %v2894 = vadd.f32 %v2860, %v2893
        %2895 = vdwg.mxu0
        %2896 = vmatpush.bf16.msra.mxu0 %v2662
        %2897 = vmatpush.bf16.msra.mxu0 %v2658
        %2898 = vmatpush.bf16.msra.mxu0 %v2654
        %2899 = vmatpush.bf16.msra.mxu0 %v2650
        %2900 = vmatpush.bf16.msra.mxu0 %v2646
        %2901 = vmatpush.bf16.msra.mxu0 %v2642
        %2902 = vmatpush.bf16.msra.mxu0 %v2638
        %2903 = vmatpush.bf16.msra.mxu0 %v2634
        %2904 = vmatmul.bf16.gmra.mxu0 %v2356
        %v2905 = vpop.f32.mrf.mxu0
        %v2906 = vadd.f32 %v2434, %v2905
        %v2907 = vpop.f32.mrf.mxu0
        %v2908 = vadd.f32 %v2434, %v2907
        %2909 = vmatmul.bf16.gmra.mxu0 %v2358
        %v2910 = vpop.f32.mrf.mxu0
        %v2911 = vadd.f32 %v2434, %v2910
        %v2912 = vpop.f32.mrf.mxu0
        %v2913 = vadd.f32 %v2434, %v2912
        %2914 = vmatmul.bf16.gmra.mxu0 %v2360
        %v2915 = vpop.f32.mrf.mxu0
        %v2916 = vadd.f32 %v2434, %v2915
        %v2917 = vpop.f32.mrf.mxu0
        %v2918 = vadd.f32 %v2434, %v2917
        %2919 = vmatmul.bf16.gmra.mxu0 %v2362
        %v2920 = vpop.f32.mrf.mxu0
        %v2921 = vadd.f32 %v2434, %v2920
        %v2922 = vpop.f32.mrf.mxu0
        %v2923 = vadd.f32 %v2434, %v2922
        %2924 = vmatmul.bf16.gmra.mxu0 %v2364
        %v2925 = vpop.f32.mrf.mxu0
        %v2926 = vadd.f32 %v2434, %v2925
        %v2927 = vpop.f32.mrf.mxu0
        %v2928 = vadd.f32 %v2434, %v2927
        %2929 = vdwg.mxu0
        %2930 = vmatpush.bf16.msra.mxu0 %v2694
        %2931 = vmatpush.bf16.msra.mxu0 %v2690
        %2932 = vmatpush.bf16.msra.mxu0 %v2686
        %2933 = vmatpush.bf16.msra.mxu0 %v2682
        %2934 = vmatpush.bf16.msra.mxu0 %v2678
        %2935 = vmatpush.bf16.msra.mxu0 %v2674
        %2936 = vmatpush.bf16.msra.mxu0 %v2670
        %2937 = vmatpush.bf16.msra.mxu0 %v2666
        %2938 = vmatmul.bf16.gmra.mxu0 %v2357
        %v2939 = vpop.f32.mrf.mxu0
        %v2940 = vadd.f32 %v2906, %v2939
        %v2941 = vpop.f32.mrf.mxu0
        %v2942 = vadd.f32 %v2908, %v2941
        %2943 = vmatmul.bf16.gmra.mxu0 %v2359
        %v2944 = vpop.f32.mrf.mxu0
        %v2945 = vadd.f32 %v2911, %v2944
        %v2946 = vpop.f32.mrf.mxu0
        %v2947 = vadd.f32 %v2913, %v2946
        %2948 = vmatmul.bf16.gmra.mxu0 %v2361
        %v2949 = vpop.f32.mrf.mxu0
        %v2950 = vadd.f32 %v2916, %v2949
        %v2951 = vpop.f32.mrf.mxu0
        %v2952 = vadd.f32 %v2918, %v2951
        %2953 = vmatmul.bf16.gmra.mxu0 %v2363
        %v2954 = vpop.f32.mrf.mxu0
        %v2955 = vadd.f32 %v2921, %v2954
        %v2956 = vpop.f32.mrf.mxu0
        %v2957 = vadd.f32 %v2923, %v2956
        %2958 = vmatmul.bf16.gmra.mxu0 %v2365
        %v2959 = vpop.f32.mrf.mxu0
        %v2960 = vadd.f32 %v2926, %v2959
        %v2961 = vpop.f32.mrf.mxu0
        %v2962 = vadd.f32 %v2928, %v2961
        %2963 = vdwg.mxu0
        %2964 = vmatpush.bf16.msra.mxu0 %v2663
        %2965 = vmatpush.bf16.msra.mxu0 %v2659
        %2966 = vmatpush.bf16.msra.mxu0 %v2655
        %2967 = vmatpush.bf16.msra.mxu0 %v2651
        %2968 = vmatpush.bf16.msra.mxu0 %v2647
        %2969 = vmatpush.bf16.msra.mxu0 %v2643
        %2970 = vmatpush.bf16.msra.mxu0 %v2639
        %2971 = vmatpush.bf16.msra.mxu0 %v2635
        %2972 = vmatmul.bf16.gmra.mxu0 %v2356
        %v2973 = vpop.f32.mrf.mxu0
        %v2974 = vadd.f32 %v2435, %v2973
        %v2975 = vpop.f32.mrf.mxu0
        %v2976 = vadd.f32 %v2435, %v2975
        %2977 = vmatmul.bf16.gmra.mxu0 %v2358
        %v2978 = vpop.f32.mrf.mxu0
        %v2979 = vadd.f32 %v2435, %v2978
        %v2980 = vpop.f32.mrf.mxu0
        %v2981 = vadd.f32 %v2435, %v2980
        %2982 = vmatmul.bf16.gmra.mxu0 %v2360
        %v2983 = vpop.f32.mrf.mxu0
        %v2984 = vadd.f32 %v2435, %v2983
        %v2985 = vpop.f32.mrf.mxu0
        %v2986 = vadd.f32 %v2435, %v2985
        %2987 = vmatmul.bf16.gmra.mxu0 %v2362
        %v2988 = vpop.f32.mrf.mxu0
        %v2989 = vadd.f32 %v2435, %v2988
        %v2990 = vpop.f32.mrf.mxu0
        %v2991 = vadd.f32 %v2435, %v2990
        %2992 = vmatmul.bf16.gmra.mxu0 %v2364
        %v2993 = vpop.f32.mrf.mxu0
        %v2994 = vadd.f32 %v2435, %v2993
        %v2995 = vpop.f32.mrf.mxu0
        %v2996 = vadd.f32 %v2435, %v2995
        %2997 = vdwg.mxu0
        %2998 = vmatpush.bf16.msra.mxu0 %v2695
        %2999 = vmatpush.bf16.msra.mxu0 %v2691
        %3000 = vmatpush.bf16.msra.mxu0 %v2687
        %3001 = vmatpush.bf16.msra.mxu0 %v2683
        %3002 = vmatpush.bf16.msra.mxu0 %v2679
        %3003 = vmatpush.bf16.msra.mxu0 %v2675
        %3004 = vmatpush.bf16.msra.mxu0 %v2671
        %3005 = vmatpush.bf16.msra.mxu0 %v2667
        %3006 = vmatmul.bf16.gmra.mxu0 %v2357
        %v3007 = vpop.f32.mrf.mxu0
        %v3008 = vadd.f32 %v2974, %v3007
        %v3009 = vpop.f32.mrf.mxu0
        %v3010 = vadd.f32 %v2976, %v3009
        %3011 = vmatmul.bf16.gmra.mxu0 %v2359
        %v3012 = vpop.f32.mrf.mxu0
        %v3013 = vadd.f32 %v2979, %v3012
        %v3014 = vpop.f32.mrf.mxu0
        %v3015 = vadd.f32 %v2981, %v3014
        %3016 = vmatmul.bf16.gmra.mxu0 %v2361
        %v3017 = vpop.f32.mrf.mxu0
        %v3018 = vadd.f32 %v2984, %v3017
        %v3019 = vpop.f32.mrf.mxu0
        %v3020 = vadd.f32 %v2986, %v3019
        %3021 = vmatmul.bf16.gmra.mxu0 %v2363
        %v3022 = vpop.f32.mrf.mxu0
        %v3023 = vadd.f32 %v2989, %v3022
        %v3024 = vpop.f32.mrf.mxu0
        %v3025 = vadd.f32 %v2991, %v3024
        %3026 = vmatmul.bf16.gmra.mxu0 %v2365
        %v3027 = vpop.f32.mrf.mxu0
        %v3028 = vadd.f32 %v2994, %v3027
        %v3029 = vpop.f32.mrf.mxu0
        %v3030 = vadd.f32 %v2996, %v3029
        %3031 = vdwg.mxu0
        %v3032 = vmax.f32 %v2804, 0.0
        %v3033 = vmax.f32 %v2872, 0.0
        %v3034 = vmax.f32 %v2940, 0.0
        %v3035 = vmax.f32 %v3008, 0.0
        %v3036 = vmax.f32 %v2806, 0.0
        %v3037 = vmax.f32 %v2874, 0.0
        %v3038 = vmax.f32 %v2942, 0.0
        %v3039 = vmax.f32 %v3010, 0.0
        %v3040 = vmax.f32 %v2809, 0.0
        %v3041 = vmax.f32 %v2877, 0.0
        %v3042 = vmax.f32 %v2945, 0.0
        %v3043 = vmax.f32 %v3013, 0.0
        %v3044 = vmax.f32 %v2811, 0.0
        %v3045 = vmax.f32 %v2879, 0.0
        %v3046 = vmax.f32 %v2947, 0.0
        %v3047 = vmax.f32 %v3015, 0.0
        %v3048 = vmax.f32 %v2814, 0.0
        %v3049 = vmax.f32 %v2882, 0.0
        %v3050 = vmax.f32 %v2950, 0.0
        %v3051 = vmax.f32 %v3018, 0.0
        %v3052 = vmax.f32 %v2816, 0.0
        %v3053 = vmax.f32 %v2884, 0.0
        %v3054 = vmax.f32 %v2952, 0.0
        %v3055 = vmax.f32 %v3020, 0.0
        %v3056 = vmax.f32 %v2819, 0.0
        %v3057 = vmax.f32 %v2887, 0.0
        %v3058 = vmax.f32 %v2955, 0.0
        %v3059 = vmax.f32 %v3023, 0.0
        %v3060 = vmax.f32 %v2821, 0.0
        %v3061 = vmax.f32 %v2889, 0.0
        %v3062 = vmax.f32 %v2957, 0.0
        %v3063 = vmax.f32 %v3025, 0.0
        %v3064 = vmax.f32 %v2824, 0.0
        %v3065 = vmax.f32 %v2892, 0.0
        %v3066 = vmax.f32 %v2960, 0.0
        %v3067 = vmax.f32 %v3028, 0.0
        %v3068 = vmax.f32 %v2826, 0.0
        %v3069 = vmax.f32 %v2894, 0.0
        %v3070 = vmax.f32 %v2962, 0.0
        %v3071 = vmax.f32 %v3030, 0.0
        %v3072 = vpack.c.bf16 %v3036, %v3032
        %v3073 = vpack.c.bf16 %v3037, %v3033
        %v3074 = vpack.c.bf16 %v3038, %v3034
        %v3075 = vpack.c.bf16 %v3039, %v3035
        %v3076 = vpack.c.bf16 %v3044, %v3040
        %v3077 = vpack.c.bf16 %v3045, %v3041
        %v3078 = vpack.c.bf16 %v3046, %v3042
        %v3079 = vpack.c.bf16 %v3047, %v3043
        %v3080 = vpack.c.bf16 %v3052, %v3048
        %v3081 = vpack.c.bf16 %v3053, %v3049
        %v3082 = vpack.c.bf16 %v3054, %v3050
        %v3083 = vpack.c.bf16 %v3055, %v3051
        %v3084 = vpack.c.bf16 %v3060, %v3056
        %v3085 = vpack.c.bf16 %v3061, %v3057
        %v3086 = vpack.c.bf16 %v3062, %v3058
        %v3087 = vpack.c.bf16 %v3063, %v3059
        %v3088 = vpack.c.bf16 %v3068, %v3064
        %v3089 = vpack.c.bf16 %v3069, %v3065
        %v3090 = vpack.c.bf16 %v3070, %v3066
        %v3091 = vpack.c.bf16 %v3071, %v3067
        %v3092 = vld [vmem:[#allocation14] sm:$0xff]
        %v3093 = vld [vmem:[#allocation14 + $0x8] sm:$0xff]
        %v3094 = vld [vmem:[#allocation14 + $0x10] sm:$0xff]
        %v3095 = vld [vmem:[#allocation14 + $0x18] sm:$0xff]
        %v3096 = vld [vmem:[#allocation14 + $0x20] sm:$0xff]
        %v3097 = vld [vmem:[#allocation14 + $0x28] sm:$0xff]
        %v3098 = vld [vmem:[#allocation14 + $0x30] sm:$0xff]
        %v3099 = vld [vmem:[#allocation14 + $0x38] sm:$0xff]
        %v3100 = vld [vmem:[#allocation14 + $0x40] sm:$0xff]
        %v3101 = vld [vmem:[#allocation14 + $0x48] sm:$0xff]
        %v3102 = vld [vmem:[#allocation14 + $0x50] sm:$0xff]
        %v3103 = vld [vmem:[#allocation14 + $0x58] sm:$0xff]
        %v3104 = vld [vmem:[#allocation14 + $0x60] sm:$0xff]
        %v3105 = vld [vmem:[#allocation14 + $0x68] sm:$0xff]
        %v3106 = vld [vmem:[#allocation14 + $0x70] sm:$0xff]
        %v3107 = vld [vmem:[#allocation14 + $0x78] sm:$0xff]
        %v3108 = vld [vmem:[#allocation14 + $0x80] sm:$0xff]
        %v3109 = vld [vmem:[#allocation14 + $0x88] sm:$0xff]
        %v3110 = vld [vmem:[#allocation14 + $0x90] sm:$0xff]
        %v3111 = vld [vmem:[#allocation14 + $0x98] sm:$0xff]
        %v3112 = vld [vmem:[#allocation14 + $0xa0] sm:$0xff]
        %v3113 = vld [vmem:[#allocation14 + $0xa8] sm:$0xff]
        %v3114 = vld [vmem:[#allocation14 + $0xb0] sm:$0xff]
        %v3115 = vld [vmem:[#allocation14 + $0xb8] sm:$0xff]
        %v3116 = vld [vmem:[#allocation14 + $0xc0] sm:$0xff]
        %v3117 = vld [vmem:[#allocation14 + $0xc8] sm:$0xff]
        %v3118 = vld [vmem:[#allocation14 + $0xd0] sm:$0xff]
        %v3119 = vld [vmem:[#allocation14 + $0xd8] sm:$0xff]
        %v3120 = vld [vmem:[#allocation14 + $0xe0] sm:$0xff]
        %v3121 = vld [vmem:[#allocation14 + $0xe8] sm:$0xff]
        %v3122 = vld [vmem:[#allocation14 + $0xf0] sm:$0xff]
        %v3123 = vld [vmem:[#allocation14 + $0xf8] sm:$0xff]
        %v3124 = vld [vmem:[#allocation14 + $0x100] sm:$0xff]
        %v3125 = vld [vmem:[#allocation14 + $0x108] sm:$0xff]
        %v3126 = vld [vmem:[#allocation14 + $0x110] sm:$0xff]
        %v3127 = vld [vmem:[#allocation14 + $0x118] sm:$0xff]
        %v3128 = vld [vmem:[#allocation14 + $0x120] sm:$0xff]
        %v3129 = vld [vmem:[#allocation14 + $0x128] sm:$0xff]
        %v3130 = vld [vmem:[#allocation14 + $0x130] sm:$0xff]
        %v3131 = vld [vmem:[#allocation14 + $0x138] sm:$0xff]
        %v3132 = vld [vmem:[#allocation14 + $0x140] sm:$0xff]
        %v3133 = vld [vmem:[#allocation14 + $0x148] sm:$0xff]
        %v3134 = vld [vmem:[#allocation14 + $0x150] sm:$0xff]
        %v3135 = vld [vmem:[#allocation14 + $0x158] sm:$0xff]
        %v3136 = vld [vmem:[#allocation14 + $0x160] sm:$0xff]
        %v3137 = vld [vmem:[#allocation14 + $0x168] sm:$0xff]
        %v3138 = vld [vmem:[#allocation14 + $0x170] sm:$0xff]
        %v3139 = vld [vmem:[#allocation14 + $0x178] sm:$0xff]
        %v3140 = vld [vmem:[#allocation14 + $0x180] sm:$0xff]
        %v3141 = vld [vmem:[#allocation14 + $0x188] sm:$0xff]
        %v3142 = vld [vmem:[#allocation14 + $0x190] sm:$0xff]
        %v3143 = vld [vmem:[#allocation14 + $0x198] sm:$0xff]
        %v3144 = vld [vmem:[#allocation14 + $0x1a0] sm:$0xff]
        %v3145 = vld [vmem:[#allocation14 + $0x1a8] sm:$0xff]
        %v3146 = vld [vmem:[#allocation14 + $0x1b0] sm:$0xff]
        %v3147 = vld [vmem:[#allocation14 + $0x1b8] sm:$0xff]
        %v3148 = vld [vmem:[#allocation14 + $0x1c0] sm:$0xff]
        %v3149 = vld [vmem:[#allocation14 + $0x1c8] sm:$0xff]
        %v3150 = vld [vmem:[#allocation14 + $0x1d0] sm:$0xff]
        %v3151 = vld [vmem:[#allocation14 + $0x1d8] sm:$0xff]
        %v3152 = vld [vmem:[#allocation14 + $0x1e0] sm:$0xff]
        %v3153 = vld [vmem:[#allocation14 + $0x1e8] sm:$0xff]
        %v3154 = vld [vmem:[#allocation14 + $0x1f0] sm:$0xff]
        %v3155 = vld [vmem:[#allocation14 + $0x1f8] sm:$0xff]
        %v3156 = vld [vmem:[#allocation16] sm:$0x3]
        %v3158 = vperm.slane %v3156, 0
        %v3159 = vperm.slane %v3156, 1
        %v3226 = vunpack.c.l.b16 %v3092
        %v3227 = vunpack.c.h.b16 %v3092
        %v3228 = vunpack.c.l.b16 %v3093
        %v3229 = vunpack.c.h.b16 %v3093
        %v3230 = vunpack.c.l.b16 %v3094
        %v3231 = vunpack.c.h.b16 %v3094
        %v3232 = vunpack.c.l.b16 %v3095
        %v3233 = vunpack.c.h.b16 %v3095
        %v3234 = vunpack.c.l.b16 %v3096
        %v3235 = vunpack.c.h.b16 %v3096
        %v3236 = vunpack.c.l.b16 %v3097
        %v3237 = vunpack.c.h.b16 %v3097
        %v3238 = vunpack.c.l.b16 %v3098
        %v3239 = vunpack.c.h.b16 %v3098
        %v3240 = vunpack.c.l.b16 %v3099
        %v3241 = vunpack.c.h.b16 %v3099
        %v3242 = vunpack.c.l.b16 %v3100
        %v3243 = vunpack.c.h.b16 %v3100
        %v3244 = vunpack.c.l.b16 %v3101
        %v3245 = vunpack.c.h.b16 %v3101
        %v3246 = vunpack.c.l.b16 %v3102
        %v3247 = vunpack.c.h.b16 %v3102
        %v3248 = vunpack.c.l.b16 %v3103
        %v3249 = vunpack.c.h.b16 %v3103
        %v3250 = vunpack.c.l.b16 %v3104
        %v3251 = vunpack.c.h.b16 %v3104
        %v3252 = vunpack.c.l.b16 %v3105
        %v3253 = vunpack.c.h.b16 %v3105
        %v3254 = vunpack.c.l.b16 %v3106
        %v3255 = vunpack.c.h.b16 %v3106
        %v3256 = vunpack.c.l.b16 %v3107
        %v3257 = vunpack.c.h.b16 %v3107
        %v3258 = vunpack.c.l.b16 %v3108
        %v3259 = vunpack.c.h.b16 %v3108
        %v3260 = vunpack.c.l.b16 %v3109
        %v3261 = vunpack.c.h.b16 %v3109
        %v3262 = vunpack.c.l.b16 %v3110
        %v3263 = vunpack.c.h.b16 %v3110
        %v3264 = vunpack.c.l.b16 %v3111
        %v3265 = vunpack.c.h.b16 %v3111
        %v3266 = vunpack.c.l.b16 %v3112
        %v3267 = vunpack.c.h.b16 %v3112
        %v3268 = vunpack.c.l.b16 %v3113
        %v3269 = vunpack.c.h.b16 %v3113
        %v3270 = vunpack.c.l.b16 %v3114
        %v3271 = vunpack.c.h.b16 %v3114
        %v3272 = vunpack.c.l.b16 %v3115
        %v3273 = vunpack.c.h.b16 %v3115
        %v3274 = vunpack.c.l.b16 %v3116
        %v3275 = vunpack.c.h.b16 %v3116
        %v3276 = vunpack.c.l.b16 %v3117
        %v3277 = vunpack.c.h.b16 %v3117
        %v3278 = vunpack.c.l.b16 %v3118
        %v3279 = vunpack.c.h.b16 %v3118
        %v3280 = vunpack.c.l.b16 %v3119
        %v3281 = vunpack.c.h.b16 %v3119
        %v3282 = vunpack.c.l.b16 %v3120
        %v3283 = vunpack.c.h.b16 %v3120
        %v3284 = vunpack.c.l.b16 %v3121
        %v3285 = vunpack.c.h.b16 %v3121
        %v3286 = vunpack.c.l.b16 %v3122
        %v3287 = vunpack.c.h.b16 %v3122
        %v3288 = vunpack.c.l.b16 %v3123
        %v3289 = vunpack.c.h.b16 %v3123
        %v3290 = vunpack.c.l.b16 %v3124
        %v3291 = vunpack.c.h.b16 %v3124
        %v3292 = vunpack.c.l.b16 %v3125
        %v3293 = vunpack.c.h.b16 %v3125
        %v3294 = vunpack.c.l.b16 %v3126
        %v3295 = vunpack.c.h.b16 %v3126
        %v3296 = vunpack.c.l.b16 %v3127
        %v3297 = vunpack.c.h.b16 %v3127
        %v3298 = vunpack.c.l.b16 %v3128
        %v3299 = vunpack.c.h.b16 %v3128
        %v3300 = vunpack.c.l.b16 %v3129
        %v3301 = vunpack.c.h.b16 %v3129
        %v3302 = vunpack.c.l.b16 %v3130
        %v3303 = vunpack.c.h.b16 %v3130
        %v3304 = vunpack.c.l.b16 %v3131
        %v3305 = vunpack.c.h.b16 %v3131
        %v3306 = vunpack.c.l.b16 %v3132
        %v3307 = vunpack.c.h.b16 %v3132
        %v3308 = vunpack.c.l.b16 %v3133
        %v3309 = vunpack.c.h.b16 %v3133
        %v3310 = vunpack.c.l.b16 %v3134
        %v3311 = vunpack.c.h.b16 %v3134
        %v3312 = vunpack.c.l.b16 %v3135
        %v3313 = vunpack.c.h.b16 %v3135
        %v3314 = vunpack.c.l.b16 %v3136
        %v3315 = vunpack.c.h.b16 %v3136
        %v3316 = vunpack.c.l.b16 %v3137
        %v3317 = vunpack.c.h.b16 %v3137
        %v3318 = vunpack.c.l.b16 %v3138
        %v3319 = vunpack.c.h.b16 %v3138
        %v3320 = vunpack.c.l.b16 %v3139
        %v3321 = vunpack.c.h.b16 %v3139
        %v3322 = vunpack.c.l.b16 %v3140
        %v3323 = vunpack.c.h.b16 %v3140
        %v3324 = vunpack.c.l.b16 %v3141
        %v3325 = vunpack.c.h.b16 %v3141
        %v3326 = vunpack.c.l.b16 %v3142
        %v3327 = vunpack.c.h.b16 %v3142
        %v3328 = vunpack.c.l.b16 %v3143
        %v3329 = vunpack.c.h.b16 %v3143
        %v3330 = vunpack.c.l.b16 %v3144
        %v3331 = vunpack.c.h.b16 %v3144
        %v3332 = vunpack.c.l.b16 %v3145
        %v3333 = vunpack.c.h.b16 %v3145
        %v3334 = vunpack.c.l.b16 %v3146
        %v3335 = vunpack.c.h.b16 %v3146
        %v3336 = vunpack.c.l.b16 %v3147
        %v3337 = vunpack.c.h.b16 %v3147
        %v3338 = vunpack.c.l.b16 %v3148
        %v3339 = vunpack.c.h.b16 %v3148
        %v3340 = vunpack.c.l.b16 %v3149
        %v3341 = vunpack.c.h.b16 %v3149
        %v3342 = vunpack.c.l.b16 %v3150
        %v3343 = vunpack.c.h.b16 %v3150
        %v3344 = vunpack.c.l.b16 %v3151
        %v3345 = vunpack.c.h.b16 %v3151
        %v3346 = vunpack.c.l.b16 %v3152
        %v3347 = vunpack.c.h.b16 %v3152
        %v3348 = vunpack.c.l.b16 %v3153
        %v3349 = vunpack.c.h.b16 %v3153
        %v3350 = vunpack.c.l.b16 %v3154
        %v3351 = vunpack.c.h.b16 %v3154
        %v3352 = vunpack.c.l.b16 %v3155
        %v3353 = vunpack.c.h.b16 %v3155
        %v3354 = vpack.c.b16 %v3228, %v3226
        %v3355 = vpack.c.b16 %v3229, %v3227
        %v3356 = vpack.c.b16 %v3232, %v3230
        %v3357 = vpack.c.b16 %v3233, %v3231
        %v3358 = vpack.c.b16 %v3236, %v3234
        %v3359 = vpack.c.b16 %v3237, %v3235
        %v3360 = vpack.c.b16 %v3240, %v3238
        %v3361 = vpack.c.b16 %v3241, %v3239
        %v3362 = vpack.c.b16 %v3244, %v3242
        %v3363 = vpack.c.b16 %v3245, %v3243
        %v3364 = vpack.c.b16 %v3248, %v3246
        %v3365 = vpack.c.b16 %v3249, %v3247
        %v3366 = vpack.c.b16 %v3252, %v3250
        %v3367 = vpack.c.b16 %v3253, %v3251
        %v3368 = vpack.c.b16 %v3256, %v3254
        %v3369 = vpack.c.b16 %v3257, %v3255
        %v3370 = vpack.c.b16 %v3260, %v3258
        %v3371 = vpack.c.b16 %v3261, %v3259
        %v3372 = vpack.c.b16 %v3264, %v3262
        %v3373 = vpack.c.b16 %v3265, %v3263
        %v3374 = vpack.c.b16 %v3268, %v3266
        %v3375 = vpack.c.b16 %v3269, %v3267
        %v3376 = vpack.c.b16 %v3272, %v3270
        %v3377 = vpack.c.b16 %v3273, %v3271
        %v3378 = vpack.c.b16 %v3276, %v3274
        %v3379 = vpack.c.b16 %v3277, %v3275
        %v3380 = vpack.c.b16 %v3280, %v3278
        %v3381 = vpack.c.b16 %v3281, %v3279
        %v3382 = vpack.c.b16 %v3284, %v3282
        %v3383 = vpack.c.b16 %v3285, %v3283
        %v3384 = vpack.c.b16 %v3288, %v3286
        %v3385 = vpack.c.b16 %v3289, %v3287
        %v3386 = vpack.c.b16 %v3292, %v3290
        %v3387 = vpack.c.b16 %v3293, %v3291
        %v3388 = vpack.c.b16 %v3296, %v3294
        %v3389 = vpack.c.b16 %v3297, %v3295
        %v3390 = vpack.c.b16 %v3300, %v3298
        %v3391 = vpack.c.b16 %v3301, %v3299
        %v3392 = vpack.c.b16 %v3304, %v3302
        %v3393 = vpack.c.b16 %v3305, %v3303
        %v3394 = vpack.c.b16 %v3308, %v3306
        %v3395 = vpack.c.b16 %v3309, %v3307
        %v3396 = vpack.c.b16 %v3312, %v3310
        %v3397 = vpack.c.b16 %v3313, %v3311
        %v3398 = vpack.c.b16 %v3316, %v3314
        %v3399 = vpack.c.b16 %v3317, %v3315
        %v3400 = vpack.c.b16 %v3320, %v3318
        %v3401 = vpack.c.b16 %v3321, %v3319
        %v3402 = vpack.c.b16 %v3324, %v3322
        %v3403 = vpack.c.b16 %v3325, %v3323
        %v3404 = vpack.c.b16 %v3328, %v3326
        %v3405 = vpack.c.b16 %v3329, %v3327
        %v3406 = vpack.c.b16 %v3332, %v3330
        %v3407 = vpack.c.b16 %v3333, %v3331
        %v3408 = vpack.c.b16 %v3336, %v3334
        %v3409 = vpack.c.b16 %v3337, %v3335
        %v3410 = vpack.c.b16 %v3340, %v3338
        %v3411 = vpack.c.b16 %v3341, %v3339
        %v3412 = vpack.c.b16 %v3344, %v3342
        %v3413 = vpack.c.b16 %v3345, %v3343
        %v3414 = vpack.c.b16 %v3348, %v3346
        %v3415 = vpack.c.b16 %v3349, %v3347
        %v3416 = vpack.c.b16 %v3352, %v3350
        %v3417 = vpack.c.b16 %v3353, %v3351
        %3482 = vmatpush.bf16.msra.mxu0 %v3368
        %3483 = vmatpush.bf16.msra.mxu0 %v3366
        %3484 = vmatpush.bf16.msra.mxu0 %v3364
        %3485 = vmatpush.bf16.msra.mxu0 %v3362
        %3486 = vmatpush.bf16.msra.mxu0 %v3360
        %3487 = vmatpush.bf16.msra.mxu0 %v3358
        %3488 = vmatpush.bf16.msra.mxu0 %v3356
        %3489 = vmatpush.bf16.msra.mxu0 %v3354
        %3490 = vmatmul.bf16.gmra.mxu0 %v3072
        %v3491 = vpop.f32.mrf.mxu0
        %v3492 = vadd.f32 %v3158, %v3491
        %v3493 = vpop.f32.mrf.mxu0
        %v3494 = vadd.f32 %v3158, %v3493
        %3495 = vmatmul.bf16.gmra.mxu0 %v3076
        %v3496 = vpop.f32.mrf.mxu0
        %v3497 = vadd.f32 %v3158, %v3496
        %v3498 = vpop.f32.mrf.mxu0
        %v3499 = vadd.f32 %v3158, %v3498
        %3500 = vmatmul.bf16.gmra.mxu0 %v3080
        %v3501 = vpop.f32.mrf.mxu0
        %v3502 = vadd.f32 %v3158, %v3501
        %v3503 = vpop.f32.mrf.mxu0
        %v3504 = vadd.f32 %v3158, %v3503
        %3505 = vmatmul.bf16.gmra.mxu0 %v3084
        %v3506 = vpop.f32.mrf.mxu0
        %v3507 = vadd.f32 %v3158, %v3506
        %v3508 = vpop.f32.mrf.mxu0
        %v3509 = vadd.f32 %v3158, %v3508
        %3510 = vmatmul.bf16.gmra.mxu0 %v3088
        %v3511 = vpop.f32.mrf.mxu0
        %v3512 = vadd.f32 %v3158, %v3511
        %v3513 = vpop.f32.mrf.mxu0
        %v3514 = vadd.f32 %v3158, %v3513
        %3515 = vdwg.mxu0
        %3516 = vmatpush.bf16.msra.mxu0 %v3384
        %3517 = vmatpush.bf16.msra.mxu0 %v3382
        %3518 = vmatpush.bf16.msra.mxu0 %v3380
        %3519 = vmatpush.bf16.msra.mxu0 %v3378
        %3520 = vmatpush.bf16.msra.mxu0 %v3376
        %3521 = vmatpush.bf16.msra.mxu0 %v3374
        %3522 = vmatpush.bf16.msra.mxu0 %v3372
        %3523 = vmatpush.bf16.msra.mxu0 %v3370
        %3524 = vmatmul.bf16.gmra.mxu0 %v3073
        %v3525 = vpop.f32.mrf.mxu0
        %v3526 = vadd.f32 %v3492, %v3525
        %v3527 = vpop.f32.mrf.mxu0
        %v3528 = vadd.f32 %v3494, %v3527
        %3529 = vmatmul.bf16.gmra.mxu0 %v3077
        %v3530 = vpop.f32.mrf.mxu0
        %v3531 = vadd.f32 %v3497, %v3530
        %v3532 = vpop.f32.mrf.mxu0
        %v3533 = vadd.f32 %v3499, %v3532
        %3534 = vmatmul.bf16.gmra.mxu0 %v3081
        %v3535 = vpop.f32.mrf.mxu0
        %v3536 = vadd.f32 %v3502, %v3535
        %v3537 = vpop.f32.mrf.mxu0
        %v3538 = vadd.f32 %v3504, %v3537
        %3539 = vmatmul.bf16.gmra.mxu0 %v3085
        %v3540 = vpop.f32.mrf.mxu0
        %v3541 = vadd.f32 %v3507, %v3540
        %v3542 = vpop.f32.mrf.mxu0
        %v3543 = vadd.f32 %v3509, %v3542
        %3544 = vmatmul.bf16.gmra.mxu0 %v3089
        %v3545 = vpop.f32.mrf.mxu0
        %v3546 = vadd.f32 %v3512, %v3545
        %v3547 = vpop.f32.mrf.mxu0
        %v3548 = vadd.f32 %v3514, %v3547
        %3549 = vdwg.mxu0
        %3550 = vmatpush.bf16.msra.mxu0 %v3400
        %3551 = vmatpush.bf16.msra.mxu0 %v3398
        %3552 = vmatpush.bf16.msra.mxu0 %v3396
        %3553 = vmatpush.bf16.msra.mxu0 %v3394
        %3554 = vmatpush.bf16.msra.mxu0 %v3392
        %3555 = vmatpush.bf16.msra.mxu0 %v3390
        %3556 = vmatpush.bf16.msra.mxu0 %v3388
        %3557 = vmatpush.bf16.msra.mxu0 %v3386
        %3558 = vmatmul.bf16.gmra.mxu0 %v3074
        %v3559 = vpop.f32.mrf.mxu0
        %v3560 = vadd.f32 %v3526, %v3559
        %v3561 = vpop.f32.mrf.mxu0
        %v3562 = vadd.f32 %v3528, %v3561
        %3563 = vmatmul.bf16.gmra.mxu0 %v3078
        %v3564 = vpop.f32.mrf.mxu0
        %v3565 = vadd.f32 %v3531, %v3564
        %v3566 = vpop.f32.mrf.mxu0
        %v3567 = vadd.f32 %v3533, %v3566
        %3568 = vmatmul.bf16.gmra.mxu0 %v3082
        %v3569 = vpop.f32.mrf.mxu0
        %v3570 = vadd.f32 %v3536, %v3569
        %v3571 = vpop.f32.mrf.mxu0
        %v3572 = vadd.f32 %v3538, %v3571
        %3573 = vmatmul.bf16.gmra.mxu0 %v3086
        %v3574 = vpop.f32.mrf.mxu0
        %v3575 = vadd.f32 %v3541, %v3574
        %v3576 = vpop.f32.mrf.mxu0
        %v3577 = vadd.f32 %v3543, %v3576
        %3578 = vmatmul.bf16.gmra.mxu0 %v3090
        %v3579 = vpop.f32.mrf.mxu0
        %v3580 = vadd.f32 %v3546, %v3579
        %v3581 = vpop.f32.mrf.mxu0
        %v3582 = vadd.f32 %v3548, %v3581
        %3583 = vdwg.mxu0
        %3584 = vmatpush.bf16.msra.mxu0 %v3416
        %3585 = vmatpush.bf16.msra.mxu0 %v3414
        %3586 = vmatpush.bf16.msra.mxu0 %v3412
        %3587 = vmatpush.bf16.msra.mxu0 %v3410
        %3588 = vmatpush.bf16.msra.mxu0 %v3408
        %3589 = vmatpush.bf16.msra.mxu0 %v3406
        %3590 = vmatpush.bf16.msra.mxu0 %v3404
        %3591 = vmatpush.bf16.msra.mxu0 %v3402
        %3592 = vmatmul.bf16.gmra.mxu0 %v3075
        %v3593 = vpop.f32.mrf.mxu0
        %v3594 = vadd.f32 %v3560, %v3593
        %v3595 = vpop.f32.mrf.mxu0
        %v3596 = vadd.f32 %v3562, %v3595
        %3597 = vmatmul.bf16.gmra.mxu0 %v3079
        %v3598 = vpop.f32.mrf.mxu0
        %v3599 = vadd.f32 %v3565, %v3598
        %v3600 = vpop.f32.mrf.mxu0
        %v3601 = vadd.f32 %v3567, %v3600
        %3602 = vmatmul.bf16.gmra.mxu0 %v3083
        %v3603 = vpop.f32.mrf.mxu0
        %v3604 = vadd.f32 %v3570, %v3603
        %v3605 = vpop.f32.mrf.mxu0
        %v3606 = vadd.f32 %v3572, %v3605
        %3607 = vmatmul.bf16.gmra.mxu0 %v3087
        %v3608 = vpop.f32.mrf.mxu0
        %v3609 = vadd.f32 %v3575, %v3608
        %v3610 = vpop.f32.mrf.mxu0
        %v3611 = vadd.f32 %v3577, %v3610
        %3612 = vmatmul.bf16.gmra.mxu0 %v3091
        %v3613 = vpop.f32.mrf.mxu0
        %v3614 = vadd.f32 %v3580, %v3613
        %v3615 = vpop.f32.mrf.mxu0
        %v3616 = vadd.f32 %v3582, %v3615
        %3617 = vdwg.mxu0
        %3618 = vmatpush.bf16.msra.mxu0 %v3369
        %3619 = vmatpush.bf16.msra.mxu0 %v3367
        %3620 = vmatpush.bf16.msra.mxu0 %v3365
        %3621 = vmatpush.bf16.msra.mxu0 %v3363
        %3622 = vmatpush.bf16.msra.mxu0 %v3361
        %3623 = vmatpush.bf16.msra.mxu0 %v3359
        %3624 = vmatpush.bf16.msra.mxu0 %v3357
        %3625 = vmatpush.bf16.msra.mxu0 %v3355
        %3626 = vmatmul.bf16.gmra.mxu0 %v3072
        %v3627 = vpop.f32.mrf.mxu0
        %v3628 = vadd.f32 %v3159, %v3627
        %v3629 = vpop.f32.mrf.mxu0
        %v3630 = vadd.f32 %v3159, %v3629
        %3631 = vmatmul.bf16.gmra.mxu0 %v3076
        %v3632 = vpop.f32.mrf.mxu0
        %v3633 = vadd.f32 %v3159, %v3632
        %v3634 = vpop.f32.mrf.mxu0
        %v3635 = vadd.f32 %v3159, %v3634
        %3636 = vmatmul.bf16.gmra.mxu0 %v3080
        %v3637 = vpop.f32.mrf.mxu0
        %v3638 = vadd.f32 %v3159, %v3637
        %v3639 = vpop.f32.mrf.mxu0
        %v3640 = vadd.f32 %v3159, %v3639
        %3641 = vmatmul.bf16.gmra.mxu0 %v3084
        %v3642 = vpop.f32.mrf.mxu0
        %v3643 = vadd.f32 %v3159, %v3642
        %v3644 = vpop.f32.mrf.mxu0
        %v3645 = vadd.f32 %v3159, %v3644
        %3646 = vmatmul.bf16.gmra.mxu0 %v3088
        %v3647 = vpop.f32.mrf.mxu0
        %v3648 = vadd.f32 %v3159, %v3647
        %v3649 = vpop.f32.mrf.mxu0
        %v3650 = vadd.f32 %v3159, %v3649
        %3651 = vdwg.mxu0
        %3652 = vmatpush.bf16.msra.mxu0 %v3385
        %3653 = vmatpush.bf16.msra.mxu0 %v3383
        %3654 = vmatpush.bf16.msra.mxu0 %v3381
        %3655 = vmatpush.bf16.msra.mxu0 %v3379
        %3656 = vmatpush.bf16.msra.mxu0 %v3377
        %3657 = vmatpush.bf16.msra.mxu0 %v3375
        %3658 = vmatpush.bf16.msra.mxu0 %v3373
        %3659 = vmatpush.bf16.msra.mxu0 %v3371
        %3660 = vmatmul.bf16.gmra.mxu0 %v3073
        %v3661 = vpop.f32.mrf.mxu0
        %v3662 = vadd.f32 %v3628, %v3661
        %v3663 = vpop.f32.mrf.mxu0
        %v3664 = vadd.f32 %v3630, %v3663
        %3665 = vmatmul.bf16.gmra.mxu0 %v3077
        %v3666 = vpop.f32.mrf.mxu0
        %v3667 = vadd.f32 %v3633, %v3666
        %v3668 = vpop.f32.mrf.mxu0
        %v3669 = vadd.f32 %v3635, %v3668
        %3670 = vmatmul.bf16.gmra.mxu0 %v3081
        %v3671 = vpop.f32.mrf.mxu0
        %v3672 = vadd.f32 %v3638, %v3671
        %v3673 = vpop.f32.mrf.mxu0
        %v3674 = vadd.f32 %v3640, %v3673
        %3675 = vmatmul.bf16.gmra.mxu0 %v3085
        %v3676 = vpop.f32.mrf.mxu0
        %v3677 = vadd.f32 %v3643, %v3676
        %v3678 = vpop.f32.mrf.mxu0
        %v3679 = vadd.f32 %v3645, %v3678
        %3680 = vmatmul.bf16.gmra.mxu0 %v3089
        %v3681 = vpop.f32.mrf.mxu0
        %v3682 = vadd.f32 %v3648, %v3681
        %v3683 = vpop.f32.mrf.mxu0
        %v3684 = vadd.f32 %v3650, %v3683
        %3685 = vdwg.mxu0
        %3686 = vmatpush.bf16.msra.mxu0 %v3401
        %3687 = vmatpush.bf16.msra.mxu0 %v3399
        %3688 = vmatpush.bf16.msra.mxu0 %v3397
        %3689 = vmatpush.bf16.msra.mxu0 %v3395
        %3690 = vmatpush.bf16.msra.mxu0 %v3393
        %3691 = vmatpush.bf16.msra.mxu0 %v3391
        %3692 = vmatpush.bf16.msra.mxu0 %v3389
        %3693 = vmatpush.bf16.msra.mxu0 %v3387
        %3694 = vmatmul.bf16.gmra.mxu0 %v3074
        %v3695 = vpop.f32.mrf.mxu0
        %v3696 = vadd.f32 %v3662, %v3695
        %v3697 = vpop.f32.mrf.mxu0
        %v3698 = vadd.f32 %v3664, %v3697
        %3699 = vmatmul.bf16.gmra.mxu0 %v3078
        %v3700 = vpop.f32.mrf.mxu0
        %v3701 = vadd.f32 %v3667, %v3700
        %v3702 = vpop.f32.mrf.mxu0
        %v3703 = vadd.f32 %v3669, %v3702
        %3704 = vmatmul.bf16.gmra.mxu0 %v3082
        %v3705 = vpop.f32.mrf.mxu0
        %v3706 = vadd.f32 %v3672, %v3705
        %v3707 = vpop.f32.mrf.mxu0
        %v3708 = vadd.f32 %v3674, %v3707
        %3709 = vmatmul.bf16.gmra.mxu0 %v3086
        %v3710 = vpop.f32.mrf.mxu0
        %v3711 = vadd.f32 %v3677, %v3710
        %v3712 = vpop.f32.mrf.mxu0
        %v3713 = vadd.f32 %v3679, %v3712
        %3714 = vmatmul.bf16.gmra.mxu0 %v3090
        %v3715 = vpop.f32.mrf.mxu0
        %v3716 = vadd.f32 %v3682, %v3715
        %v3717 = vpop.f32.mrf.mxu0
        %v3718 = vadd.f32 %v3684, %v3717
        %3719 = vdwg.mxu0
        %3720 = vmatpush.bf16.msra.mxu0 %v3417
        %3721 = vmatpush.bf16.msra.mxu0 %v3415
        %3722 = vmatpush.bf16.msra.mxu0 %v3413
        %3723 = vmatpush.bf16.msra.mxu0 %v3411
        %3724 = vmatpush.bf16.msra.mxu0 %v3409
        %3725 = vmatpush.bf16.msra.mxu0 %v3407
        %3726 = vmatpush.bf16.msra.mxu0 %v3405
        %3727 = vmatpush.bf16.msra.mxu0 %v3403
        %3728 = vmatmul.bf16.gmra.mxu0 %v3075
        %v3729 = vpop.f32.mrf.mxu0
        %v3730 = vadd.f32 %v3696, %v3729
        %v3731 = vpop.f32.mrf.mxu0
        %v3732 = vadd.f32 %v3698, %v3731
        %3733 = vmatmul.bf16.gmra.mxu0 %v3079
        %v3734 = vpop.f32.mrf.mxu0
        %v3735 = vadd.f32 %v3701, %v3734
        %v3736 = vpop.f32.mrf.mxu0
        %v3737 = vadd.f32 %v3703, %v3736
        %3738 = vmatmul.bf16.gmra.mxu0 %v3083
        %v3739 = vpop.f32.mrf.mxu0
        %v3740 = vadd.f32 %v3706, %v3739
        %v3741 = vpop.f32.mrf.mxu0
        %v3742 = vadd.f32 %v3708, %v3741
        %3743 = vmatmul.bf16.gmra.mxu0 %v3087
        %v3744 = vpop.f32.mrf.mxu0
        %v3745 = vadd.f32 %v3711, %v3744
        %v3746 = vpop.f32.mrf.mxu0
        %v3747 = vadd.f32 %v3713, %v3746
        %3748 = vmatmul.bf16.gmra.mxu0 %v3091
        %v3749 = vpop.f32.mrf.mxu0
        %v3750 = vadd.f32 %v3716, %v3749
        %v3751 = vpop.f32.mrf.mxu0
        %v3752 = vadd.f32 %v3718, %v3751
        %3753 = vdwg.mxu0
        %3754 = vst [vmem:[%s541] sm:$0xff] %v3594
        %3755 = vst [vmem:[%s541 + $0x8] sm:$0xff] %v3730
        %3756 = vst [vmem:[%s541 + $0x10] sm:$0xff] %v3596
        %3757 = vst [vmem:[%s541 + $0x18] sm:$0xff] %v3732
        %3758 = vst [vmem:[%s541 + $0x20] sm:$0xff] %v3599
        %3759 = vst [vmem:[%s541 + $0x28] sm:$0xff] %v3735
        %3760 = vst [vmem:[%s541 + $0x30] sm:$0xff] %v3601
        %3761 = vst [vmem:[%s541 + $0x38] sm:$0xff] %v3737
        %3762 = vst [vmem:[%s541 + $0x40] sm:$0xff] %v3604
        %3763 = vst [vmem:[%s541 + $0x48] sm:$0xff] %v3740
        %3764 = vst [vmem:[%s541 + $0x50] sm:$0xff] %v3606
        %3765 = vst [vmem:[%s541 + $0x58] sm:$0xff] %v3742
        %3766 = vst [vmem:[%s541 + $0x60] sm:$0xff] %v3609
        %3767 = vst [vmem:[%s541 + $0x68] sm:$0xff] %v3745
        %3768 = vst [vmem:[%s541 + $0x70] sm:$0xff] %v3611
        %3769 = vst [vmem:[%s541 + $0x78] sm:$0xff] %v3747
        %3770 = vst [vmem:[%s541 + $0x80] sm:$0xff] %v3614
        %3771 = vst [vmem:[%s541 + $0x88] sm:$0xff] %v3750
        %3772 = vst [vmem:[%s541 + $0x90] sm:$0xff] %v3616
        %3773 = vst [vmem:[%s541 + $0x98] sm:$0xff] %v3752
        %s3774 = sand.u32 %s276, 1
        %s3775 = scalar_lea.sflag [#allocation4], %s3774
        %s3776 = sand.u32 %s276, 1
        %s3777 = smul.addr %s3776, 160
        %s3778 = scalar_lea.vmem [#allocation17], %s3777
        // Predicated region
        $region101: #{autoencoder_forward.1} parent=63 // pred_check
          %p3779 = pneg %p286
        $region102: #{autoencoder_forward.1} parent=63 // pred_check_branch
          %3781 = sbr.rel (%p3779) target = $region104
        $region103: #{autoencoder_forward.1} parent=63 // pred_region
          %s3782 = smul.u32 10, %s32
          %s3783 = ssub.s32 38, %s3782
          %p3784 = scmp.lt.s32.totalorder %s3783, 10
          %s3785 = scalar_select %p3784, %s3783, 10
          %s3786 = smul.u32 8, %s3785
          %s3787 = smul.u32 %s3786, 2
          %s3788 = ssub.s32 160, %s3787
          %s3789 = sshll.u32 %s3788, 4
          %3790 = vsyncadd %s3775, %s3789
          %p3791 = scmp.ne.s32.totalorder 0, %s3787
          %s3792 = smul.addr %s3782, 2
          %s3793 = smul.addr %s3792, 8
          %s3794 = scalar_lea.hbm %s11, %s3793
          %s3795 = smul.u32 16, %s3785
          %s3796 = sshll.u32 %s3778, 4
          %s3797 = int_to_ptr.vmem [resolvable:$true] %s3796
          %s3798 = sshll.u32 %s3794, 4
          %s3799 = int_to_ptr.hbm [resolvable:$true] %s3798
          %s3800 = sshll.u32 %s3795, 4
          %3804 = dma.vmem_to_hbm [thread:$0]  (%p3791), %s3797, %s3800, %s3799, %s3775, 256, 256, 16
        $region104: #{autoencoder_forward.1} parent=63 // pred_fallthru
          _
      $region64: #{autoencoder_forward.1} parent=5 // pred_fallthru
        _
      %p3805 = scmp.le.s32.totalorder 2, %s27
      // Predicated region
      $region105: #{autoencoder_forward.1} parent=5 // pred_check
        %p3806 = pneg %p3805
      $region106: #{autoencoder_forward.1} parent=5 // pred_check_branch
        %3808 = sbr.rel (%p3806) target = $region108
      $region107: #{autoencoder_forward.1} parent=5 // pred_region
        %s3809 = ssub.s32 %s27, 2
        // Predicated region
        $region109: #{autoencoder_forward.1} parent=107 // pred_check
          %p3810 = pneg %p292
        $region110: #{autoencoder_forward.1} parent=107 // pred_check_branch
          %3812 = sbr.rel (%p3810) target = $region112
        $region111: #{autoencoder_forward.1} parent=107 // pred_region
          %s3813 = sand.u32 %s277, 1
          %s3814 = scalar_lea.sflag [#allocation4], %s3813
          %s3815 = sand.u32 %s277, 1
          %s3816 = smul.addr %s3815, 160
          %s3817 = scalar_lea.vmem [#allocation17], %s3816
          %3819 = dma.done %s3814, 2560
        $region112: #{autoencoder_forward.1} parent=107 // pred_fallthru
          _
      $region108: #{autoencoder_forward.1} parent=5 // pred_fallthru
        _
    $region6: #{autoencoder_forward.1} parent=1 // loop_footer
      %s31 = sadd.s32 1, %s27
    $region7: #{autoencoder_forward.1} parent=1 // loop_footer_branch
      %26 = sbr.rel target = $region3
    $region8: #{autoencoder_forward.1} parent=1 // loop_exit
      _
    %3820 = vsyncpa [#allocation3], 1
    %s3821 = scalar_lea.sflag [#allocation3], 1
    %3822 = vsyncpa %s3821, 1
    %3823 = vsyncpa [#allocation6], 1
    %3824 = vsyncpa [#allocation9], 1
    %3825 = vsyncpa [#allocation12], 1
    %3826 = vsyncpa [#allocation15], 1
    %3827 = vsyncpa [#allocation4], 1
    %s3828 = scalar_lea.sflag [#allocation4], 1
    %3829 = vsyncpa %s3828, 1

</llo_original>
